<compile_context>
chip_gen: v7x
topology: tpu7x:2x2x1
jax: 0.10.0
libtpu: 0.0.40
codegen_flags: <defaults>
</compile_context>

<pallas_src>
import functools

import jax
import jax.numpy as jnp
from jax.experimental import pallas as pl
from jax.experimental.pallas import tpu as pltpu

LANE = 128
VMEM_LIMIT = 48 * 1024 * 1024


def _round_up(x, m):
    return ((x + m - 1) // m) * m


def _cout_tile(c):
    # Keep the whole cout in one tile when it fits comfortably (n_co == 1 means the
    # taps are built exactly once per image block); otherwise fall back to MXU-width
    # tiles (256 fills v6e/v7x, 128 matches v5e and always divides).
    if c <= 512:
        return c
    return 256 if c % 256 == 0 else 128


def _pick_nb(N, H, W, cin_p, cout_p):
    """Largest divisor of N whose per-step VMEM footprint fits a ~24 MiB budget."""
    tco = _cout_tile(cout_p)
    per_img = ((H + 2) * (W + 2) * cin_p * 2     # padded bf16 scratch
               + 2 * H * W * cin_p * 2           # input block (double-buffered, bf16)
               + 2 * H * W * tco * 2             # output block (double-buffered, bf16)
               + H * W * tco * 4                 # f32 accumulator
               + H * W * cin_p * 4)              # f32 BN-applied temporary
    budget = 24 * 1024 * 1024
    cap = max(1, budget // max(per_img, 1))
    nb = 1
    for d in range(1, N + 1):
        if N % d == 0 and d <= cap:
            nb = d
    return nb


# ----------------------------------------------------------------------------
# Conv 3x3 (stride 1, zero padding done in-kernel), optionally fused with the
# BN-apply + ReLU of the *previous* stage.  Emits BN-stat partial sums.
# ----------------------------------------------------------------------------
def _conv3x3_kernel(*refs, H, W, nb, fuse):
    if fuse:
        x_ref, scale_ref, shift_ref, w_ref, y_ref, stats_ref, xpad_sc = refs
    else:
        x_ref, w_ref, y_ref, stats_ref, xpad_sc = refs

    cin_p = x_ref.shape[-1]
    tco = y_ref.shape[-1]
    M = nb * H * W

    # Optionally apply the previous stage's BN scale/shift + ReLU in f32 (v5e-safe),
    # then cast to bf16 for the MXU.
    if fuse:
        z = jnp.maximum(
            x_ref[...].astype(jnp.float32) * scale_ref[...] + shift_ref[...], 0.0
        ).astype(jnp.bfloat16)
    else:
        z = x_ref[...]

    # Zero-halo pad into VMEM scratch (all-VMEM stores; no padded HBM intermediate).
    xpad_sc[...] = jnp.zeros_like(xpad_sc)
    xpad_sc[:, 1:H + 1, 1:W + 1, :] = z
    xp = xpad_sc[...]                               # (nb, H+2, W+2, cin_p) bf16

    # 9 accumulated MXU matmuls, one per tap: no im2col concat, MXU starts after tap 0.
    acc = None
    for dy in range(3):
        for dx in range(3):
            tap = xp[:, dy:dy + H, dx:dx + W, :].reshape(M, cin_p)
            k0 = (dy * 3 + dx) * cin_p
            part = jnp.dot(tap, w_ref[k0:k0 + cin_p, :],
                           preferred_element_type=jnp.float32)
            acc = part if acc is None else acc + part

    y_ref[...] = acc.reshape(nb, H, W, tco).astype(y_ref.dtype)

    # BN batch-statistic partial sums for this block -- single store.
    s = jnp.sum(acc, axis=0, keepdims=True)
    sq = jnp.sum(acc * acc, axis=0, keepdims=True)
    stats_ref[0] = jnp.concatenate([s, sq], axis=0)


def conv3x3_pallas(x, w2d, scale=None, shift=None, *, nb):
    N, H, W, cin_p = x.shape
    k9, cout_p = w2d.shape
    tco = _cout_tile(cout_p)
    n_co = cout_p // tco
    n_img = N // nb
    fuse = scale is not None

    in_specs = [pl.BlockSpec((nb, H, W, cin_p), lambda c, b: (b, 0, 0, 0))]
    inputs = [x]
    if fuse:
        in_specs.append(pl.BlockSpec((1, 1, 1, cin_p), lambda c, b: (0, 0, 0, 0)))
        in_specs.append(pl.BlockSpec((1, 1, 1, cin_p), lambda c, b: (0, 0, 0, 0)))
        inputs += [scale, shift]
    # Weight indexed only by the OUTER grid axis -> DMA'd once per cout tile.
    in_specs.append(pl.BlockSpec((k9, tco), lambda c, b: (0, c)))
    inputs.append(w2d)

    kernel = functools.partial(_conv3x3_kernel, H=H, W=W, nb=nb, fuse=fuse)
    return pl.pallas_call(
        kernel,
        out_shape=(
            jax.ShapeDtypeStruct((N, H, W, cout_p), jnp.bfloat16),
            jax.ShapeDtypeStruct((n_img, 2, cout_p), jnp.float32),
        ),
        grid_spec=pltpu.PrefetchScalarGridSpec(
            num_scalar_prefetch=0,
            grid=(n_co, n_img),
            in_specs=in_specs,
            out_specs=(
                pl.BlockSpec((nb, H, W, tco), lambda c, b: (b, 0, 0, c)),
                pl.BlockSpec((1, 2, tco), lambda c, b: (b, 0, c)),
            ),
            scratch_shapes=[pltpu.VMEM((nb, H + 2, W + 2, cin_p), jnp.bfloat16)]),
        compiler_params=pltpu.CompilerParams(
            dimension_semantics=("parallel", "parallel"),
            vmem_limit_bytes=VMEM_LIMIT),
    )(*inputs)


# ----------------------------------------------------------------------------
# Final BN-apply + ReLU (stage 2 epilogue), f32 math, lane-dense output.
# ----------------------------------------------------------------------------
def _bn_relu_kernel(y_ref, scale_ref, shift_ref, out_ref):
    y = y_ref[...].astype(jnp.float32)
    out_ref[...] = jnp.maximum(y * scale_ref[...] + shift_ref[...],
                               0.0).astype(out_ref.dtype)


def bn_relu_pallas(y, scale, shift, *, nb, out_dtype):
    N, H, W, cp = y.shape
    tco = _cout_tile(cp)
    n_co = cp // tco
    n_img = N // nb
    return pl.pallas_call(
        _bn_relu_kernel,
        out_shape=jax.ShapeDtypeStruct((N, H, W, cp), out_dtype),
        grid_spec=pltpu.PrefetchScalarGridSpec(
            num_scalar_prefetch=0,
            grid=(n_co, n_img),
            in_specs=[
                pl.BlockSpec((nb, H, W, tco), lambda c, b: (b, 0, 0, c)),
                pl.BlockSpec((1, 1, 1, tco), lambda c, b: (0, 0, 0, c)),
                pl.BlockSpec((1, 1, 1, tco), lambda c, b: (0, 0, 0, c)),
            ],
            out_specs=pl.BlockSpec((nb, H, W, tco), lambda c, b: (b, 0, 0, c))),
        compiler_params=pltpu.CompilerParams(
            dimension_semantics=("parallel", "parallel"),
            vmem_limit_bytes=VMEM_LIMIT),
    )(y, scale, shift)


# ----------------------------------------------------------------------------
# Block forward glue
# ----------------------------------------------------------------------------
def _prep_weight(w_hwio, cin, cout, cin_p, cout_p):
    wpad = jnp.pad(w_hwio, ((0, 0), (0, 0), (0, cin_p - cin), (0, cout_p - cout)))
    return wpad.reshape(9 * cin_p, cout_p).astype(jnp.bfloat16)


def _bn_scale_shift(stats, count, gamma, beta, eps, cp):
    # Train-mode (biased) batch statistics from the fused f32 partial sums.
    s = jnp.sum(stats[:, 0, :], axis=0)
    sq = jnp.sum(stats[:, 1, :], axis=0)
    mean = s / count
    var = jnp.maximum(sq / count - mean * mean, 0.0)
    # Padded channels: gamma=1, var=0 -> huge inv, but mean=shift=0 and y=0 there,
    # so the padded lanes stay exactly zero.
    g = jnp.pad(gamma.astype(jnp.float32), (0, cp - gamma.shape[0]),
                constant_values=1.0)
    b = jnp.pad(beta.astype(jnp.float32), (0, cp - beta.shape[0]),
                constant_values=0.0)
    inv = g * jax.lax.rsqrt(var + eps)
    scale = inv.reshape(1, 1, 1, cp)
    shift = (b - mean * inv).reshape(1, 1, 1, cp)
    return scale, shift


def block_forward(x_nchw, params, eps=1e-5):
    N, cin, H, W = x_nchw.shape
    cout = params["gamma1"].shape[0]
    cin_p = _round_up(cin, LANE)
    cp = _round_up(cout, LANE)

    # NCHW -> NHWC, channel-pad to 128, cast bf16 (single wrapper pass; spatial halo
    # padding is done inside the conv kernels in VMEM).
    x = jnp.transpose(x_nchw, (0, 2, 3, 1))
    x = jnp.pad(x, ((0, 0), (0, 0), (0, 0), (0, cin_p - cin))).astype(jnp.bfloat16)

    # Conv biases (params["b1"/"b2"]) are intentionally NOT applied: a bias before
    # train-mode BatchNorm is exactly absorbed, so the output is identical.
    w1 = _prep_weight(params["w1"], cin, cout, cin_p, cp)
    w2 = _prep_weight(params["w2"], cout, cout, cp, cp)

    count = N * H * W
    nb1 = _pick_nb(N, H, W, cin_p, cp)
    nb2 = _pick_nb(N, H, W, cp, cp)

    # stage 1: conv -> (fused) BN stats
    y1, st1 = conv3x3_pallas(x, w1, nb=nb1)
    scale1, shift1 = _bn_scale_shift(st1, count, params["gamma1"], params["beta1"],
                                     eps, cp)

    # stage 2: BN1-apply + ReLU1 fused into conv2 (no padded HBM intermediate)
    y2, st2 = conv3x3_pallas(y1, w2, scale1, shift1, nb=nb2)
    scale2, shift2 = _bn_scale_shift(st2, count, params["gamma2"], params["beta2"],
                                     eps, cp)

    out = bn_relu_pallas(y2, scale2, shift2, nb=nb2, out_dtype=jnp.float32)

    return jnp.transpose(out[..., :cout], (0, 3, 1, 2))   # NHWC -> NCHW (spec parity)


def init_params(key, in_channels, out_channels):
    k1, k2, k3, k4 = jax.random.split(key, 4)
    fan1 = in_channels * 9
    fan2 = out_channels * 9
    bound1 = 1.0 / jnp.sqrt(fan1)
    bound2 = 1.0 / jnp.sqrt(fan2)
    # weights stored HWIO (PyTorch OIHW transposed)
    w1 = jax.random.uniform(k1, (3, 3, in_channels, out_channels),
                            jnp.float32, -bound1, bound1)
    b1 = jax.random.uniform(k2, (out_channels,), jnp.float32, -bound1, bound1)
    w2 = jax.random.uniform(k3, (3, 3, out_channels, out_channels),
                            jnp.float32, -bound2, bound2)
    b2 = jax.random.uniform(k4, (out_channels,), jnp.float32, -bound2, bound2)
    return {
        "w1": w1, "b1": b1,   # b1/b2 kept for parity; absorbed by train-mode BN
        "gamma1": jnp.ones((out_channels,), jnp.float32),
        "beta1": jnp.zeros((out_channels,), jnp.float32),
        "w2": w2, "b2": b2,
        "gamma2": jnp.ones((out_channels,), jnp.float32),
        "beta2": jnp.zeros((out_channels,), jnp.float32),
    }


if __name__ == "__main__":
    key = jax.random.PRNGKey(0)
    kx, kp = jax.random.split(key)

    N, Cin, Cout, H, W = 2, 4, 8, 16, 16
    x = jax.random.normal(kx, (N, Cin, H, W), jnp.float32)  # NCHW like PyTorch
    params = init_params(kp, Cin, Cout)

    out = jax.block_until_ready(block_forward(x, params))
    assert out.shape == (N, Cout, H, W)
    assert bool(jnp.all(jnp.isfinite(out))) and bool(jnp.all(out >= 0.0))
    print("KERNEL_OK")
</pallas_src>

<mosaic_0001>
module attributes {stable_mosaic.version = 11 : i64} {
  func.func @_conv3x3_kernel(%arg0: i32, %arg1: i32, %arg2: memref<2x16x16x128xbf16, #tpu.memory_space<vmem>>, %arg3: memref<1152x128xbf16, #tpu.memory_space<vmem>>, %arg4: memref<2x16x16x128xbf16, #tpu.memory_space<vmem>>, %arg5: memref<1x2x128xf32, #tpu.memory_space<vmem>>, %arg6: memref<2x18x18x128xbf16, #tpu.memory_space<vmem>>) attributes {dimension_semantics = [#tpu.dimension_semantics<parallel>, #tpu.dimension_semantics<parallel>], iteration_bounds = array<i64: 1, 1>, scalar_prefetch = 0 : i64, scratch_operands = 1 : i64, tpu.core_type = #tpu.core_type<tc>, window_params = [{transform_indices = @transform_0, window_bounds = array<i64: 2, 16, 16, 128>}, {transform_indices = @transform_1, window_bounds = array<i64: 1152, 128>}, {transform_indices = @transform_2, window_bounds = array<i64: 2, 16, 16, 128>}, {transform_indices = @transform_3, window_bounds = array<i64: 1, 2, 128>}]} {
    %c0 = arith.constant 0 : index
    %c0_0 = arith.constant 0 : index
    %c0_1 = arith.constant 0 : index
    %c0_2 = arith.constant 0 : index
    %0 = vector.load %arg2[%c0, %c0_0, %c0_1, %c0_2] : memref<2x16x16x128xbf16, #tpu.memory_space<vmem>>, vector<2x16x16x128xbf16>
    %cst = arith.constant 0.000000e+00 : bf16
    %1 = vector.broadcast %cst : bf16 to vector<2x18x18x128xbf16>
    %c0_3 = arith.constant 0 : index
    %c0_4 = arith.constant 0 : index
    %c0_5 = arith.constant 0 : index
    %c0_6 = arith.constant 0 : index
    %2 = vector.load %arg6[%c0_3, %c0_4, %c0_5, %c0_6] : memref<2x18x18x128xbf16, #tpu.memory_space<vmem>>, vector<2x18x18x128xbf16>
    tpu.vector_store %arg6[%c0_3, %c0_4, %c0_5, %c0_6], %1 {strides = array<i32>} : memref<2x18x18x128xbf16, #tpu.memory_space<vmem>>, vector<2x18x18x128xbf16>,
    %c0_7 = arith.constant 0 : index
    %c1 = arith.constant 1 : index
    %c1_8 = arith.constant 1 : index
    %c0_9 = arith.constant 0 : index
    %3 = vector.load %arg6[%c0_7, %c1, %c1_8, %c0_9] : memref<2x18x18x128xbf16, #tpu.memory_space<vmem>>, vector<2x16x16x128xbf16>
    tpu.vector_store %arg6[%c0_7, %c1, %c1_8, %c0_9], %0 {strides = array<i32>} : memref<2x18x18x128xbf16, #tpu.memory_space<vmem>>, vector<2x16x16x128xbf16>,
    %c0_10 = arith.constant 0 : index
    %c0_11 = arith.constant 0 : index
    %c0_12 = arith.constant 0 : index
    %c0_13 = arith.constant 0 : index
    %4 = vector.load %arg6[%c0_10, %c0_11, %c0_12, %c0_13] : memref<2x18x18x128xbf16, #tpu.memory_space<vmem>>, vector<2x18x18x128xbf16>
    %5 = vector.extract_strided_slice %4 {offsets = [0, 0, 0, 0], sizes = [2, 16, 16, 128], strides = [1, 1, 1, 1]} : vector<2x18x18x128xbf16> to vector<2x16x16x128xbf16>
    %6 = vector.shape_cast %5 : vector<2x16x16x128xbf16> to vector<512x128xbf16>
    %c0_14 = arith.constant 0 : index
    %c0_15 = arith.constant 0 : index
    %7 = vector.load %arg3[%c0_14, %c0_15] : memref<1152x128xbf16, #tpu.memory_space<vmem>>, vector<128x128xbf16>
    %cst_16 = arith.constant dense<0.000000e+00> : vector<512x128xf32>
    %8 = tpu.matmul %6, %7, %cst_16 {dimension_numbers = #tpu.dot_dimension_numbers<[1], [0], [0], [1], [0, 0, 1, 1], [], []>} : vector<512x128xbf16>, vector<128x128xbf16>, vector<512x128xf32> -> vector<512x128xf32>
    %9 = vector.extract_strided_slice %4 {offsets = [0, 0, 1, 0], sizes = [2, 16, 16, 128], strides = [1, 1, 1, 1]} : vector<2x18x18x128xbf16> to vector<2x16x16x128xbf16>
    %10 = vector.shape_cast %9 : vector<2x16x16x128xbf16> to vector<512x128xbf16>
    %c128 = arith.constant 128 : index
    %c0_17 = arith.constant 0 : index
    %11 = vector.load %arg3[%c128, %c0_17] : memref<1152x128xbf16, #tpu.memory_space<vmem>>, vector<128x128xbf16>
    %cst_18 = arith.constant dense<0.000000e+00> : vector<512x128xf32>
    %12 = tpu.matmul %10, %11, %cst_18 {dimension_numbers = #tpu.dot_dimension_numbers<[1], [0], [0], [1], [0, 0, 1, 1], [], []>} : vector<512x128xbf16>, vector<128x128xbf16>, vector<512x128xf32> -> vector<512x128xf32>
    %13 = arith.addf %8, %12 : vector<512x128xf32>
    %14 = vector.extract_strided_slice %4 {offsets = [0, 0, 2, 0], sizes = [2, 16, 16, 128], strides = [1, 1, 1, 1]} : vector<2x18x18x128xbf16> to vector<2x16x16x128xbf16>
    %15 = vector.shape_cast %14 : vector<2x16x16x128xbf16> to vector<512x128xbf16>
    %c256 = arith.constant 256 : index
    %c0_19 = arith.constant 0 : index
    %16 = vector.load %arg3[%c256, %c0_19] : memref<1152x128xbf16, #tpu.memory_space<vmem>>, vector<128x128xbf16>
    %cst_20 = arith.constant dense<0.000000e+00> : vector<512x128xf32>
    %17 = tpu.matmul %15, %16, %cst_20 {dimension_numbers = #tpu.dot_dimension_numbers<[1], [0], [0], [1], [0, 0, 1, 1], [], []>} : vector<512x128xbf16>, vector<128x128xbf16>, vector<512x128xf32> -> vector<512x128xf32>
    %18 = arith.addf %13, %17 : vector<512x128xf32>
    %19 = vector.extract_strided_slice %4 {offsets = [0, 1, 0, 0], sizes = [2, 16, 16, 128], strides = [1, 1, 1, 1]} : vector<2x18x18x128xbf16> to vector<2x16x16x128xbf16>
    %20 = vector.shape_cast %19 : vector<2x16x16x128xbf16> to vector<512x128xbf16>
    %c384 = arith.constant 384 : index
    %c0_21 = arith.constant 0 : index
    %21 = vector.load %arg3[%c384, %c0_21] : memref<1152x128xbf16, #tpu.memory_space<vmem>>, vector<128x128xbf16>
    %cst_22 = arith.constant dense<0.000000e+00> : vector<512x128xf32>
    %22 = tpu.matmul %20, %21, %cst_22 {dimension_numbers = #tpu.dot_dimension_numbers<[1], [0], [0], [1], [0, 0, 1, 1], [], []>} : vector<512x128xbf16>, vector<128x128xbf16>, vector<512x128xf32> -> vector<512x128xf32>
    %23 = arith.addf %18, %22 : vector<512x128xf32>
    %24 = vector.extract_strided_slice %4 {offsets = [0, 1, 1, 0], sizes = [2, 16, 16, 128], strides = [1, 1, 1, 1]} : vector<2x18x18x128xbf16> to vector<2x16x16x128xbf16>
    %25 = vector.shape_cast %24 : vector<2x16x16x128xbf16> to vector<512x128xbf16>
    %c512 = arith.constant 512 : index
    %c0_23 = arith.constant 0 : index
    %26 = vector.load %arg3[%c512, %c0_23] : memref<1152x128xbf16, #tpu.memory_space<vmem>>, vector<128x128xbf16>
    %cst_24 = arith.constant dense<0.000000e+00> : vector<512x128xf32>
    %27 = tpu.matmul %25, %26, %cst_24 {dimension_numbers = #tpu.dot_dimension_numbers<[1], [0], [0], [1], [0, 0, 1, 1], [], []>} : vector<512x128xbf16>, vector<128x128xbf16>, vector<512x128xf32> -> vector<512x128xf32>
    %28 = arith.addf %23, %27 : vector<512x128xf32>
    %29 = vector.extract_strided_slice %4 {offsets = [0, 1, 2, 0], sizes = [2, 16, 16, 128], strides = [1, 1, 1, 1]} : vector<2x18x18x128xbf16> to vector<2x16x16x128xbf16>
    %30 = vector.shape_cast %29 : vector<2x16x16x128xbf16> to vector<512x128xbf16>
    %c640 = arith.constant 640 : index
    %c0_25 = arith.constant 0 : index
    %31 = vector.load %arg3[%c640, %c0_25] : memref<1152x128xbf16, #tpu.memory_space<vmem>>, vector<128x128xbf16>
    %cst_26 = arith.constant dense<0.000000e+00> : vector<512x128xf32>
    %32 = tpu.matmul %30, %31, %cst_26 {dimension_numbers = #tpu.dot_dimension_numbers<[1], [0], [0], [1], [0, 0, 1, 1], [], []>} : vector<512x128xbf16>, vector<128x128xbf16>, vector<512x128xf32> -> vector<512x128xf32>
    %33 = arith.addf %28, %32 : vector<512x128xf32>
    %34 = vector.extract_strided_slice %4 {offsets = [0, 2, 0, 0], sizes = [2, 16, 16, 128], strides = [1, 1, 1, 1]} : vector<2x18x18x128xbf16> to vector<2x16x16x128xbf16>
    %35 = vector.shape_cast %34 : vector<2x16x16x128xbf16> to vector<512x128xbf16>
    %c768 = arith.constant 768 : index
    %c0_27 = arith.constant 0 : index
    %36 = vector.load %arg3[%c768, %c0_27] : memref<1152x128xbf16, #tpu.memory_space<vmem>>, vector<128x128xbf16>
    %cst_28 = arith.constant dense<0.000000e+00> : vector<512x128xf32>
    %37 = tpu.matmul %35, %36, %cst_28 {dimension_numbers = #tpu.dot_dimension_numbers<[1], [0], [0], [1], [0, 0, 1, 1], [], []>} : vector<512x128xbf16>, vector<128x128xbf16>, vector<512x128xf32> -> vector<512x128xf32>
    %38 = arith.addf %33, %37 : vector<512x128xf32>
    %39 = vector.extract_strided_slice %4 {offsets = [0, 2, 1, 0], sizes = [2, 16, 16, 128], strides = [1, 1, 1, 1]} : vector<2x18x18x128xbf16> to vector<2x16x16x128xbf16>
    %40 = vector.shape_cast %39 : vector<2x16x16x128xbf16> to vector<512x128xbf16>
    %c896 = arith.constant 896 : index
    %c0_29 = arith.constant 0 : index
    %41 = vector.load %arg3[%c896, %c0_29] : memref<1152x128xbf16, #tpu.memory_space<vmem>>, vector<128x128xbf16>
    %cst_30 = arith.constant dense<0.000000e+00> : vector<512x128xf32>
    %42 = tpu.matmul %40, %41, %cst_30 {dimension_numbers = #tpu.dot_dimension_numbers<[1], [0], [0], [1], [0, 0, 1, 1], [], []>} : vector<512x128xbf16>, vector<128x128xbf16>, vector<512x128xf32> -> vector<512x128xf32>
    %43 = arith.addf %38, %42 : vector<512x128xf32>
    %44 = vector.extract_strided_slice %4 {offsets = [0, 2, 2, 0], sizes = [2, 16, 16, 128], strides = [1, 1, 1, 1]} : vector<2x18x18x128xbf16> to vector<2x16x16x128xbf16>
    %45 = vector.shape_cast %44 : vector<2x16x16x128xbf16> to vector<512x128xbf16>
    %c1024 = arith.constant 1024 : index
    %c0_31 = arith.constant 0 : index
    %46 = vector.load %arg3[%c1024, %c0_31] : memref<1152x128xbf16, #tpu.memory_space<vmem>>, vector<128x128xbf16>
    %cst_32 = arith.constant dense<0.000000e+00> : vector<512x128xf32>
    %47 = tpu.matmul %45, %46, %cst_32 {dimension_numbers = #tpu.dot_dimension_numbers<[1], [0], [0], [1], [0, 0, 1, 1], [], []>} : vector<512x128xbf16>, vector<128x128xbf16>, vector<512x128xf32> -> vector<512x128xf32>
    %48 = arith.addf %43, %47 : vector<512x128xf32>
    %49 = vector.shape_cast %48 : vector<512x128xf32> to vector<2x16x16x128xf32>
    %50 = arith.truncf %49 : vector<2x16x16x128xf32> to vector<2x16x16x128xbf16>
    %c0_33 = arith.constant 0 : index
    %c0_34 = arith.constant 0 : index
    %c0_35 = arith.constant 0 : index
    %c0_36 = arith.constant 0 : index
    %51 = vector.load %arg4[%c0_33, %c0_34, %c0_35, %c0_36] : memref<2x16x16x128xbf16, #tpu.memory_space<vmem>>, vector<2x16x16x128xbf16>
    tpu.vector_store %arg4[%c0_33, %c0_34, %c0_35, %c0_36], %50 {strides = array<i32>} : memref<2x16x16x128xbf16, #tpu.memory_space<vmem>>, vector<2x16x16x128xbf16>,
    %cst_37 = arith.constant dense<0.000000e+00> : vector<128xf32>
    %52 = vector.multi_reduction <add>, %48, %cst_37 [0] : vector<512x128xf32> to vector<128xf32>
    %53 = vector.shape_cast %52 : vector<128xf32> to vector<1x128xf32>
    %54 = arith.mulf %48, %48 : vector<512x128xf32>
    %cst_38 = arith.constant dense<0.000000e+00> : vector<128xf32>
    %55 = vector.multi_reduction <add>, %54, %cst_38 [0] : vector<512x128xf32> to vector<128xf32>
    %56 = vector.shape_cast %55 : vector<128xf32> to vector<1x128xf32>
    %57 = tpu.concatenate %53, %56 in 0 : vector<1x128xf32>, vector<1x128xf32> -> vector<2x128xf32>
    %c0_39 = arith.constant 0 : index
    %c0_40 = arith.constant 0 : index
    %c0_41 = arith.constant 0 : index
    %58 = vector.load %arg5[%c0_39, %c0_40, %c0_41] : memref<1x2x128xf32, #tpu.memory_space<vmem>>, vector<1x2x128xf32>
    %59 = vector.shape_cast %58 : vector<1x2x128xf32> to vector<2x128xf32>
    %60 = vector.shape_cast %57 : vector<2x128xf32> to vector<1x2x128xf32>
    tpu.vector_store %arg5[%c0_39, %c0_40, %c0_41], %60 {strides = array<i32>} : memref<1x2x128xf32, #tpu.memory_space<vmem>>, vector<1x2x128xf32>,
    return
  }
  func.func @transform_0(%arg0: i32, %arg1: i32) -> (i32, i32, i32, i32) {
    %c0_i32 = arith.constant 0 : i32
    %c0_i32_0 = arith.constant 0 : i32
    %c0_i32_1 = arith.constant 0 : i32
    %c0_i32_2 = arith.constant 0 : i32
    return %arg1, %c0_i32, %c0_i32_0, %c0_i32_1 : i32, i32, i32, i32
  }
  func.func @transform_1(%arg0: i32, %arg1: i32) -> (i32, i32) {
    %c0_i32 = arith.constant 0 : i32
    %c0_i32_0 = arith.constant 0 : i32
    return %c0_i32, %arg0 : i32, i32
  }
  func.func @transform_2(%arg0: i32, %arg1: i32) -> (i32, i32, i32, i32) {
    %c0_i32 = arith.constant 0 : i32
    %c0_i32_0 = arith.constant 0 : i32
    %c0_i32_1 = arith.constant 0 : i32
    return %arg1, %c0_i32, %c0_i32_0, %arg0 : i32, i32, i32, i32
  }
  func.func @transform_3(%arg0: i32, %arg1: i32) -> (i32, i32, i32) {
    %c0_i32 = arith.constant 0 : i32
    %c0_i32_0 = arith.constant 0 : i32
    return %arg1, %c0_i32, %arg0 : i32, i32, i32
  }
}

</mosaic_0001>

<llo_original>
// kernel: tpu_custom_call.1
$region0: #{tpu_custom_call.1}
  #allocation0 [shape = 'u32[]', space=smem, size = 0x4, offset = 0x4, fixed_abs, tag = 'smem constant byte address 0x4 - core index']
  #allocation1 [shape = 'u32[144,128]{1,0:T(1,128)}', space=vmem, size = 0x12000, scoped, tag = 'internal scratch']
  #allocation2 [shape = 'bf16[2,18,18,128]{3,2,1,0:T(8,128)(2,1)}', space=vmem, size = 0x36000, scoped, tag = 'scratch operand']
  %s0 = inlined_call_operand.hbm [shape: bf16[2,16,16,128], index: 0, kind: input, shape index: {}]
  %s1 = inlined_call_operand.hbm [shape: bf16[1152,128], index: 1, kind: input, shape index: {}]
  %s2 = inlined_call_operand.hbm [shape: bf16[2,16,16,128], index: 2, kind: output, shape index: {0}]
  %s3 = inlined_call_operand.hbm [shape: f32[1,2,128], index: 3, kind: output, shape index: {1}]
  %4 = xla_tuple %s2, %s3
  %s5 = sld [smem:[#allocation0]]
  $region34: #{tpu_custom_call.1} parent=0
    _
  %s7 = ssub.s32 1, %s5
  %s8 = scalar_select 0, %s7, %s5
  $region1: #{tpu_custom_call.1} parent=0
    #allocation3 [shape = 'u8[131072]{0}', space=vmem, size = 0x20000, scoped, tag = 'input window, operand 0, single buffered']
    #allocation4 [shape = 's32[1]{0}', space=sflag, size = 0x4, scoped, tag = 'scoped memory for tpu_custom_call.1']
    #allocation5 [shape = 's32[1]{0}', space=sflag, size = 0x4, scoped, tag = 'scoped memory for tpu_custom_call.1']
    #allocation6 [shape = 'u8[294912]{0}', space=vmem, size = 0x48000, scoped, tag = 'input window, operand 1, single buffered']
    #allocation7 [shape = 's32[1]{0}', space=sflag, size = 0x4, scoped, tag = 'scoped memory for tpu_custom_call.1']
    #allocation8 [shape = 'u8[131072]{0}', space=vmem, size = 0x20000, scoped, tag = 'output window, operand 0, single buffered']
    #allocation9 [shape = 'u8[1024]{0}', space=vmem, size = 0x400, scoped, tag = 'output window, operand 1, single buffered']
    #allocation10 [shape = 's32[1]{0}', space=sflag, size = 0x4, scoped, tag = 'scoped memory for tpu_custom_call.1']
    %9 = vsyncpa [#allocation4], 0
    %10 = vsyncpa [#allocation7], 0
    %11 = vsyncpa [#allocation5], 0
    %12 = vsyncpa [#allocation10], 0
    // Predicated region
    $region2: #{tpu_custom_call.1} parent=1 // pred_check
      _
    $region3: #{tpu_custom_call.1} parent=1 // pred_check_branch
      %14 = sbr.rel (0) target = $region5
    $region4: #{tpu_custom_call.1} parent=1 // pred_region
      %s16 = ssub.s32 4096, 4096
      %17 = vsyncadd [#allocation4], %s16
      %s18 = sshll.u32 [#allocation3], 4
      %s19 = int_to_ptr.vmem [resolvable:$true] %s18
      %24 = dma.hbm_to_vmem [thread:$0]  %s0, 4096, %s19, [#allocation4], 64, 64, 4
    $region5: #{tpu_custom_call.1} parent=1 // pred_fallthru
      _
    // Predicated region
    $region6: #{tpu_custom_call.1} parent=1 // pred_check
      _
    $region7: #{tpu_custom_call.1} parent=1 // pred_check_branch
      %26 = sbr.rel (0) target = $region9
    $region8: #{tpu_custom_call.1} parent=1 // pred_region
      %s28 = ssub.s32 9216, 9216
      %29 = vsyncadd [#allocation7], %s28
      %s30 = sshll.u32 [#allocation6], 4
      %s31 = int_to_ptr.vmem [resolvable:$true] %s30
      %36 = dma.hbm_to_vmem [thread:$0]  %s1, 9216, %s31, [#allocation7], 64, 64, 4
    $region9: #{tpu_custom_call.1} parent=1 // pred_fallthru
      _
    // Predicated region
    $region10: #{tpu_custom_call.1} parent=1 // pred_check
      _
    $region11: #{tpu_custom_call.1} parent=1 // pred_check_branch
      %38 = sbr.rel (0) target = $region13
    $region12: #{tpu_custom_call.1} parent=1 // pred_region
      %39 = dma.done [#allocation4], 4096
    $region13: #{tpu_custom_call.1} parent=1 // pred_fallthru
      _
    // Predicated region
    $region14: #{tpu_custom_call.1} parent=1 // pred_check
      _
    $region15: #{tpu_custom_call.1} parent=1 // pred_check_branch
      %41 = sbr.rel (0) target = $region17
    $region16: #{tpu_custom_call.1} parent=1 // pred_region
      %42 = dma.done [#allocation7], 9216
    $region17: #{tpu_custom_call.1} parent=1 // pred_fallthru
      _
    %v44 = vld [vmem:[#allocation3] sm:$0xf]
    %v45 = vld [vmem:[#allocation3 + $0x4] sm:$0xf]
    %v46 = vld [vmem:[#allocation3 + $0x8] sm:$0xf]
    %v47 = vld [vmem:[#allocation3 + $0xc] sm:$0xf]
    %v48 = vld [vmem:[#allocation3 + $0x10] sm:$0xf]
    %v49 = vld [vmem:[#allocation3 + $0x14] sm:$0xf]
    %v50 = vld [vmem:[#allocation3 + $0x18] sm:$0xf]
    %v51 = vld [vmem:[#allocation3 + $0x1c] sm:$0xf]
    %v52 = vld [vmem:[#allocation3 + $0x20] sm:$0xf]
    %v53 = vld [vmem:[#allocation3 + $0x24] sm:$0xf]
    %v54 = vld [vmem:[#allocation3 + $0x28] sm:$0xf]
    %v55 = vld [vmem:[#allocation3 + $0x2c] sm:$0xf]
    %v56 = vld [vmem:[#allocation3 + $0x30] sm:$0xf]
    %v57 = vld [vmem:[#allocation3 + $0x34] sm:$0xf]
    %v58 = vld [vmem:[#allocation3 + $0x38] sm:$0xf]
    %v59 = vld [vmem:[#allocation3 + $0x3c] sm:$0xf]
    %v60 = vld [vmem:[#allocation3 + $0x40] sm:$0xf]
    %v61 = vld [vmem:[#allocation3 + $0x44] sm:$0xf]
    %v62 = vld [vmem:[#allocation3 + $0x48] sm:$0xf]
    %v63 = vld [vmem:[#allocation3 + $0x4c] sm:$0xf]
    %v64 = vld [vmem:[#allocation3 + $0x50] sm:$0xf]
    %v65 = vld [vmem:[#allocation3 + $0x54] sm:$0xf]
    %v66 = vld [vmem:[#allocation3 + $0x58] sm:$0xf]
    %v67 = vld [vmem:[#allocation3 + $0x5c] sm:$0xf]
    %v68 = vld [vmem:[#allocation3 + $0x60] sm:$0xf]
    %v69 = vld [vmem:[#allocation3 + $0x64] sm:$0xf]
    %v70 = vld [vmem:[#allocation3 + $0x68] sm:$0xf]
    %v71 = vld [vmem:[#allocation3 + $0x6c] sm:$0xf]
    %v72 = vld [vmem:[#allocation3 + $0x70] sm:$0xf]
    %v73 = vld [vmem:[#allocation3 + $0x74] sm:$0xf]
    %v74 = vld [vmem:[#allocation3 + $0x78] sm:$0xf]
    %v75 = vld [vmem:[#allocation3 + $0x7c] sm:$0xf]
    %v76 = vld [vmem:[#allocation3 + $0x80] sm:$0xf]
    %v77 = vld [vmem:[#allocation3 + $0x84] sm:$0xf]
    %v78 = vld [vmem:[#allocation3 + $0x88] sm:$0xf]
    %v79 = vld [vmem:[#allocation3 + $0x8c] sm:$0xf]
    %v80 = vld [vmem:[#allocation3 + $0x90] sm:$0xf]
    %v81 = vld [vmem:[#allocation3 + $0x94] sm:$0xf]
    %v82 = vld [vmem:[#allocation3 + $0x98] sm:$0xf]
    %v83 = vld [vmem:[#allocation3 + $0x9c] sm:$0xf]
    %v84 = vld [vmem:[#allocation3 + $0xa0] sm:$0xf]
    %v85 = vld [vmem:[#allocation3 + $0xa4] sm:$0xf]
    %v86 = vld [vmem:[#allocation3 + $0xa8] sm:$0xf]
    %v87 = vld [vmem:[#allocation3 + $0xac] sm:$0xf]
    %v88 = vld [vmem:[#allocation3 + $0xb0] sm:$0xf]
    %v89 = vld [vmem:[#allocation3 + $0xb4] sm:$0xf]
    %v90 = vld [vmem:[#allocation3 + $0xb8] sm:$0xf]
    %v91 = vld [vmem:[#allocation3 + $0xbc] sm:$0xf]
    %v92 = vld [vmem:[#allocation3 + $0xc0] sm:$0xf]
    %v93 = vld [vmem:[#allocation3 + $0xc4] sm:$0xf]
    %v94 = vld [vmem:[#allocation3 + $0xc8] sm:$0xf]
    %v95 = vld [vmem:[#allocation3 + $0xcc] sm:$0xf]
    %v96 = vld [vmem:[#allocation3 + $0xd0] sm:$0xf]
    %v97 = vld [vmem:[#allocation3 + $0xd4] sm:$0xf]
    %v98 = vld [vmem:[#allocation3 + $0xd8] sm:$0xf]
    %v99 = vld [vmem:[#allocation3 + $0xdc] sm:$0xf]
    %v100 = vld [vmem:[#allocation3 + $0xe0] sm:$0xf]
    %v101 = vld [vmem:[#allocation3 + $0xe4] sm:$0xf]
    %v102 = vld [vmem:[#allocation3 + $0xe8] sm:$0xf]
    %v103 = vld [vmem:[#allocation3 + $0xec] sm:$0xf]
    %v104 = vld [vmem:[#allocation3 + $0xf0] sm:$0xf]
    %v105 = vld [vmem:[#allocation3 + $0xf4] sm:$0xf]
    %v106 = vld [vmem:[#allocation3 + $0xf8] sm:$0xf]
    %v107 = vld [vmem:[#allocation3 + $0xfc] sm:$0xf]
    %108 = vst [vmem:[#allocation2] sm:$0xf] 0
    %109 = vst [vmem:[#allocation2 + $0x4] sm:$0xf] 0
    %110 = vst [vmem:[#allocation2 + $0x8] sm:$0x1] 0
    %111 = vst [vmem:[#allocation2 + $0xc] sm:$0xf] 0
    %112 = vst [vmem:[#allocation2 + $0x10] sm:$0xf] 0
    %113 = vst [vmem:[#allocation2 + $0x14] sm:$0x1] 0
    %114 = vst [vmem:[#allocation2 + $0x18] sm:$0xf] 0
    %115 = vst [vmem:[#allocation2 + $0x1c] sm:$0xf] 0
    %116 = vst [vmem:[#allocation2 + $0x20] sm:$0x1] 0
    %117 = vst [vmem:[#allocation2 + $0x24] sm:$0xf] 0
    %118 = vst [vmem:[#allocation2 + $0x28] sm:$0xf] 0
    %119 = vst [vmem:[#allocation2 + $0x2c] sm:$0x1] 0
    %120 = vst [vmem:[#allocation2 + $0x30] sm:$0xf] 0
    %121 = vst [vmem:[#allocation2 + $0x34] sm:$0xf] 0
    %122 = vst [vmem:[#allocation2 + $0x38] sm:$0x1] 0
    %123 = vst [vmem:[#allocation2 + $0x3c] sm:$0xf] 0
    %124 = vst [vmem:[#allocation2 + $0x40] sm:$0xf] 0
    %125 = vst [vmem:[#allocation2 + $0x44] sm:$0x1] 0
    %126 = vst [vmem:[#allocation2 + $0x48] sm:$0xf] 0
    %127 = vst [vmem:[#allocation2 + $0x4c] sm:$0xf] 0
    %128 = vst [vmem:[#allocation2 + $0x50] sm:$0x1] 0
    %129 = vst [vmem:[#allocation2 + $0x54] sm:$0xf] 0
    %130 = vst [vmem:[#allocation2 + $0x58] sm:$0xf] 0
    %131 = vst [vmem:[#allocation2 + $0x5c] sm:$0x1] 0
    %132 = vst [vmem:[#allocation2 + $0x60] sm:$0xf] 0
    %133 = vst [vmem:[#allocation2 + $0x64] sm:$0xf] 0
    %134 = vst [vmem:[#allocation2 + $0x68] sm:$0x1] 0
    %135 = vst [vmem:[#allocation2 + $0x6c] sm:$0xf] 0
    %136 = vst [vmem:[#allocation2 + $0x70] sm:$0xf] 0
    %137 = vst [vmem:[#allocation2 + $0x74] sm:$0x1] 0
    %138 = vst [vmem:[#allocation2 + $0x78] sm:$0xf] 0
    %139 = vst [vmem:[#allocation2 + $0x7c] sm:$0xf] 0
    %140 = vst [vmem:[#allocation2 + $0x80] sm:$0x1] 0
    %141 = vst [vmem:[#allocation2 + $0x84] sm:$0xf] 0
    %142 = vst [vmem:[#allocation2 + $0x88] sm:$0xf] 0
    %143 = vst [vmem:[#allocation2 + $0x8c] sm:$0x1] 0
    %144 = vst [vmem:[#allocation2 + $0x90] sm:$0xf] 0
    %145 = vst [vmem:[#allocation2 + $0x94] sm:$0xf] 0
    %146 = vst [vmem:[#allocation2 + $0x98] sm:$0x1] 0
    %147 = vst [vmem:[#allocation2 + $0x9c] sm:$0xf] 0
    %148 = vst [vmem:[#allocation2 + $0xa0] sm:$0xf] 0
    %149 = vst [vmem:[#allocation2 + $0xa4] sm:$0x1] 0
    %150 = vst [vmem:[#allocation2 + $0xa8] sm:$0xf] 0
    %151 = vst [vmem:[#allocation2 + $0xac] sm:$0xf] 0
    %152 = vst [vmem:[#allocation2 + $0xb0] sm:$0x1] 0
    %153 = vst [vmem:[#allocation2 + $0xb4] sm:$0xf] 0
    %154 = vst [vmem:[#allocation2 + $0xb8] sm:$0xf] 0
    %155 = vst [vmem:[#allocation2 + $0xbc] sm:$0x1] 0
    %156 = vst [vmem:[#allocation2 + $0xc0] sm:$0xf] 0
    %157 = vst [vmem:[#allocation2 + $0xc4] sm:$0xf] 0
    %158 = vst [vmem:[#allocation2 + $0xc8] sm:$0x1] 0
    %159 = vst [vmem:[#allocation2 + $0xcc] sm:$0xf] 0
    %160 = vst [vmem:[#allocation2 + $0xd0] sm:$0xf] 0
    %161 = vst [vmem:[#allocation2 + $0xd4] sm:$0x1] 0
    %162 = vst [vmem:[#allocation2 + $0xd8] sm:$0xf] 0
    %163 = vst [vmem:[#allocation2 + $0xdc] sm:$0xf] 0
    %164 = vst [vmem:[#allocation2 + $0xe0] sm:$0x1] 0
    %165 = vst [vmem:[#allocation2 + $0xe4] sm:$0xf] 0
    %166 = vst [vmem:[#allocation2 + $0xe8] sm:$0xf] 0
    %167 = vst [vmem:[#allocation2 + $0xec] sm:$0x1] 0
    %168 = vst [vmem:[#allocation2 + $0xf0] sm:$0xf] 0
    %169 = vst [vmem:[#allocation2 + $0xf4] sm:$0xf] 0
    %170 = vst [vmem:[#allocation2 + $0xf8] sm:$0x1] 0
    %171 = vst [vmem:[#allocation2 + $0xfc] sm:$0xf] 0
    %172 = vst [vmem:[#allocation2 + $0x100] sm:$0xf] 0
    %173 = vst [vmem:[#allocation2 + $0x104] sm:$0x1] 0
    %174 = vst [vmem:[#allocation2 + $0x108] sm:$0xf] 0
    %175 = vst [vmem:[#allocation2 + $0x10c] sm:$0xf] 0
    %176 = vst [vmem:[#allocation2 + $0x110] sm:$0x1] 0
    %177 = vst [vmem:[#allocation2 + $0x114] sm:$0xf] 0
    %178 = vst [vmem:[#allocation2 + $0x118] sm:$0xf] 0
    %179 = vst [vmem:[#allocation2 + $0x11c] sm:$0x1] 0
    %180 = vst [vmem:[#allocation2 + $0x120] sm:$0xf] 0
    %181 = vst [vmem:[#allocation2 + $0x124] sm:$0xf] 0
    %182 = vst [vmem:[#allocation2 + $0x128] sm:$0x1] 0
    %183 = vst [vmem:[#allocation2 + $0x12c] sm:$0xf] 0
    %184 = vst [vmem:[#allocation2 + $0x130] sm:$0xf] 0
    %185 = vst [vmem:[#allocation2 + $0x134] sm:$0x1] 0
    %186 = vst [vmem:[#allocation2 + $0x138] sm:$0xf] 0
    %187 = vst [vmem:[#allocation2 + $0x13c] sm:$0xf] 0
    %188 = vst [vmem:[#allocation2 + $0x140] sm:$0x1] 0
    %189 = vst [vmem:[#allocation2 + $0x144] sm:$0xf] 0
    %190 = vst [vmem:[#allocation2 + $0x148] sm:$0xf] 0
    %191 = vst [vmem:[#allocation2 + $0x14c] sm:$0x1] 0
    %192 = vst [vmem:[#allocation2 + $0x150] sm:$0xf] 0
    %193 = vst [vmem:[#allocation2 + $0x154] sm:$0xf] 0
    %194 = vst [vmem:[#allocation2 + $0x158] sm:$0x1] 0
    %195 = vst [vmem:[#allocation2 + $0x15c] sm:$0xf] 0
    %196 = vst [vmem:[#allocation2 + $0x160] sm:$0xf] 0
    %197 = vst [vmem:[#allocation2 + $0x164] sm:$0x1] 0
    %198 = vst [vmem:[#allocation2 + $0x168] sm:$0xf] 0
    %199 = vst [vmem:[#allocation2 + $0x16c] sm:$0xf] 0
    %200 = vst [vmem:[#allocation2 + $0x170] sm:$0x1] 0
    %201 = vst [vmem:[#allocation2 + $0x174] sm:$0xf] 0
    %202 = vst [vmem:[#allocation2 + $0x178] sm:$0xf] 0
    %203 = vst [vmem:[#allocation2 + $0x17c] sm:$0x1] 0
    %204 = vst [vmem:[#allocation2 + $0x180] sm:$0xf] 0
    %205 = vst [vmem:[#allocation2 + $0x184] sm:$0xf] 0
    %206 = vst [vmem:[#allocation2 + $0x188] sm:$0x1] 0
    %207 = vst [vmem:[#allocation2 + $0x18c] sm:$0xf] 0
    %208 = vst [vmem:[#allocation2 + $0x190] sm:$0xf] 0
    %209 = vst [vmem:[#allocation2 + $0x194] sm:$0x1] 0
    %210 = vst [vmem:[#allocation2 + $0x198] sm:$0xf] 0
    %211 = vst [vmem:[#allocation2 + $0x19c] sm:$0xf] 0
    %212 = vst [vmem:[#allocation2 + $0x1a0] sm:$0x1] 0
    %213 = vst [vmem:[#allocation2 + $0x1a4] sm:$0xf] 0
    %214 = vst [vmem:[#allocation2 + $0x1a8] sm:$0xf] 0
    %215 = vst [vmem:[#allocation2 + $0x1ac] sm:$0x1] 0
    %vm216 = vsmask.f32 256
    %vm217 = vsmask.f32 4368
    %vm218 = vmor %vm216, %vm217
    %v220 = vshrl.u32 %v44, 16
    %v222 = vrot.slane %v220, 7
    %v223 = vshll.u32 %v44, 16
    %v225 = vor.u32 %v222, %v223
    %v226 = vrot.slane %v222, 4
    %v228 = vshrl.u32 %v45, 16
    %v230 = vrot.slane %v228, 7
    %v231 = vshll.u32 %v45, 16
    %v233 = vor.u32 %v230, %v231
    %v234 = vsel %vm218, %v226, %v233
    %v235 = vrot.slane %v230, 4
    %v237 = vshrl.u32 %v46, 16
    %v239 = vrot.slane %v237, 7
    %v240 = vshll.u32 %v46, 16
    %v242 = vor.u32 %v239, %v240
    %v243 = vrot.slane %v239, 4
    %v245 = vshrl.u32 %v47, 16
    %v247 = vrot.slane %v245, 7
    %v248 = vshll.u32 %v47, 16
    %v250 = vor.u32 %v247, %v248
    %v251 = vsel %vm218, %v243, %v250
    %v252 = vrot.slane %v247, 4
    %v254 = vshrl.u32 %v48, 16
    %v256 = vrot.slane %v254, 7
    %v257 = vshll.u32 %v48, 16
    %v259 = vor.u32 %v256, %v257
    %v260 = vrot.slane %v256, 4
    %v262 = vshrl.u32 %v49, 16
    %v264 = vrot.slane %v262, 7
    %v265 = vshll.u32 %v49, 16
    %v267 = vor.u32 %v264, %v265
    %v268 = vsel %vm218, %v260, %v267
    %v269 = vrot.slane %v264, 4
    %v271 = vshrl.u32 %v50, 16
    %v273 = vrot.slane %v271, 7
    %v274 = vshll.u32 %v50, 16
    %v276 = vor.u32 %v273, %v274
    %v277 = vrot.slane %v273, 4
    %v279 = vshrl.u32 %v51, 16
    %v281 = vrot.slane %v279, 7
    %v282 = vshll.u32 %v51, 16
    %v284 = vor.u32 %v281, %v282
    %v285 = vsel %vm218, %v277, %v284
    %v286 = vrot.slane %v281, 4
    %v288 = vshrl.u32 %v52, 16
    %v290 = vrot.slane %v288, 7
    %v291 = vshll.u32 %v52, 16
    %v293 = vor.u32 %v290, %v291
    %v294 = vrot.slane %v290, 4
    %v296 = vshrl.u32 %v53, 16
    %v298 = vrot.slane %v296, 7
    %v299 = vshll.u32 %v53, 16
    %v301 = vor.u32 %v298, %v299
    %v302 = vsel %vm218, %v294, %v301
    %v303 = vrot.slane %v298, 4
    %v305 = vshrl.u32 %v54, 16
    %v307 = vrot.slane %v305, 7
    %v308 = vshll.u32 %v54, 16
    %v310 = vor.u32 %v307, %v308
    %v311 = vrot.slane %v307, 4
    %v313 = vshrl.u32 %v55, 16
    %v315 = vrot.slane %v313, 7
    %v316 = vshll.u32 %v55, 16
    %v318 = vor.u32 %v315, %v316
    %v319 = vsel %vm218, %v311, %v318
    %v320 = vrot.slane %v315, 4
    %v322 = vshrl.u32 %v56, 16
    %v324 = vrot.slane %v322, 7
    %v325 = vshll.u32 %v56, 16
    %v327 = vor.u32 %v324, %v325
    %v328 = vrot.slane %v324, 4
    %v330 = vshrl.u32 %v57, 16
    %v332 = vrot.slane %v330, 7
    %v333 = vshll.u32 %v57, 16
    %v335 = vor.u32 %v332, %v333
    %v336 = vsel %vm218, %v328, %v335
    %v337 = vrot.slane %v332, 4
    %v339 = vshrl.u32 %v58, 16
    %v341 = vrot.slane %v339, 7
    %v342 = vshll.u32 %v58, 16
    %v344 = vor.u32 %v341, %v342
    %v345 = vrot.slane %v341, 4
    %v347 = vshrl.u32 %v59, 16
    %v349 = vrot.slane %v347, 7
    %v350 = vshll.u32 %v59, 16
    %v352 = vor.u32 %v349, %v350
    %v353 = vsel %vm218, %v345, %v352
    %v354 = vrot.slane %v349, 4
    %v356 = vshrl.u32 %v60, 16
    %v358 = vrot.slane %v356, 7
    %v359 = vshll.u32 %v60, 16
    %v361 = vor.u32 %v358, %v359
    %v362 = vrot.slane %v358, 4
    %v364 = vshrl.u32 %v61, 16
    %v366 = vrot.slane %v364, 7
    %v367 = vshll.u32 %v61, 16
    %v369 = vor.u32 %v366, %v367
    %v370 = vsel %vm218, %v362, %v369
    %v371 = vrot.slane %v366, 4
    %v373 = vshrl.u32 %v62, 16
    %v375 = vrot.slane %v373, 7
    %v376 = vshll.u32 %v62, 16
    %v378 = vor.u32 %v375, %v376
    %v379 = vrot.slane %v375, 4
    %v381 = vshrl.u32 %v63, 16
    %v383 = vrot.slane %v381, 7
    %v384 = vshll.u32 %v63, 16
    %v386 = vor.u32 %v383, %v384
    %v387 = vsel %vm218, %v379, %v386
    %v388 = vrot.slane %v383, 4
    %v390 = vshrl.u32 %v64, 16
    %v392 = vrot.slane %v390, 7
    %v393 = vshll.u32 %v64, 16
    %v395 = vor.u32 %v392, %v393
    %v396 = vrot.slane %v392, 4
    %v398 = vshrl.u32 %v65, 16
    %v400 = vrot.slane %v398, 7
    %v401 = vshll.u32 %v65, 16
    %v403 = vor.u32 %v400, %v401
    %v404 = vsel %vm218, %v396, %v403
    %v405 = vrot.slane %v400, 4
    %v407 = vshrl.u32 %v66, 16
    %v409 = vrot.slane %v407, 7
    %v410 = vshll.u32 %v66, 16
    %v412 = vor.u32 %v409, %v410
    %v413 = vrot.slane %v409, 4
    %v415 = vshrl.u32 %v67, 16
    %v417 = vrot.slane %v415, 7
    %v418 = vshll.u32 %v67, 16
    %v420 = vor.u32 %v417, %v418
    %v421 = vsel %vm218, %v413, %v420
    %v422 = vrot.slane %v417, 4
    %v424 = vshrl.u32 %v68, 16
    %v426 = vrot.slane %v424, 7
    %v427 = vshll.u32 %v68, 16
    %v429 = vor.u32 %v426, %v427
    %v430 = vrot.slane %v426, 4
    %v432 = vshrl.u32 %v69, 16
    %v434 = vrot.slane %v432, 7
    %v435 = vshll.u32 %v69, 16
    %v437 = vor.u32 %v434, %v435
    %v438 = vsel %vm218, %v430, %v437
    %v439 = vrot.slane %v434, 4
    %v441 = vshrl.u32 %v70, 16
    %v443 = vrot.slane %v441, 7
    %v444 = vshll.u32 %v70, 16
    %v446 = vor.u32 %v443, %v444
    %v447 = vrot.slane %v443, 4
    %v449 = vshrl.u32 %v71, 16
    %v451 = vrot.slane %v449, 7
    %v452 = vshll.u32 %v71, 16
    %v454 = vor.u32 %v451, %v452
    %v455 = vsel %vm218, %v447, %v454
    %v456 = vrot.slane %v451, 4
    %v458 = vshrl.u32 %v72, 16
    %v460 = vrot.slane %v458, 7
    %v461 = vshll.u32 %v72, 16
    %v463 = vor.u32 %v460, %v461
    %v464 = vrot.slane %v460, 4
    %v466 = vshrl.u32 %v73, 16
    %v468 = vrot.slane %v466, 7
    %v469 = vshll.u32 %v73, 16
    %v471 = vor.u32 %v468, %v469
    %v472 = vsel %vm218, %v464, %v471
    %v473 = vrot.slane %v468, 4
    %v475 = vshrl.u32 %v74, 16
    %v477 = vrot.slane %v475, 7
    %v478 = vshll.u32 %v74, 16
    %v480 = vor.u32 %v477, %v478
    %v481 = vrot.slane %v477, 4
    %v483 = vshrl.u32 %v75, 16
    %v485 = vrot.slane %v483, 7
    %v486 = vshll.u32 %v75, 16
    %v488 = vor.u32 %v485, %v486
    %v489 = vsel %vm218, %v481, %v488
    %v490 = vrot.slane %v485, 4
    %v492 = vshrl.u32 %v76, 16
    %v494 = vrot.slane %v492, 7
    %v495 = vshll.u32 %v76, 16
    %v497 = vor.u32 %v494, %v495
    %v498 = vrot.slane %v494, 4
    %v500 = vshrl.u32 %v77, 16
    %v502 = vrot.slane %v500, 7
    %v503 = vshll.u32 %v77, 16
    %v505 = vor.u32 %v502, %v503
    %v506 = vsel %vm218, %v498, %v505
    %v507 = vrot.slane %v502, 4
    %v509 = vshrl.u32 %v78, 16
    %v511 = vrot.slane %v509, 7
    %v512 = vshll.u32 %v78, 16
    %v514 = vor.u32 %v511, %v512
    %v515 = vrot.slane %v511, 4
    %v517 = vshrl.u32 %v79, 16
    %v519 = vrot.slane %v517, 7
    %v520 = vshll.u32 %v79, 16
    %v522 = vor.u32 %v519, %v520
    %v523 = vsel %vm218, %v515, %v522
    %v524 = vrot.slane %v519, 4
    %v526 = vshrl.u32 %v80, 16
    %v528 = vrot.slane %v526, 7
    %v529 = vshll.u32 %v80, 16
    %v531 = vor.u32 %v528, %v529
    %v532 = vrot.slane %v528, 4
    %v534 = vshrl.u32 %v81, 16
    %v536 = vrot.slane %v534, 7
    %v537 = vshll.u32 %v81, 16
    %v539 = vor.u32 %v536, %v537
    %v540 = vsel %vm218, %v532, %v539
    %v541 = vrot.slane %v536, 4
    %v543 = vshrl.u32 %v82, 16
    %v545 = vrot.slane %v543, 7
    %v546 = vshll.u32 %v82, 16
    %v548 = vor.u32 %v545, %v546
    %v549 = vrot.slane %v545, 4
    %v551 = vshrl.u32 %v83, 16
    %v553 = vrot.slane %v551, 7
    %v554 = vshll.u32 %v83, 16
    %v556 = vor.u32 %v553, %v554
    %v557 = vsel %vm218, %v549, %v556
    %v558 = vrot.slane %v553, 4
    %v560 = vshrl.u32 %v84, 16
    %v562 = vrot.slane %v560, 7
    %v563 = vshll.u32 %v84, 16
    %v565 = vor.u32 %v562, %v563
    %v566 = vrot.slane %v562, 4
    %v568 = vshrl.u32 %v85, 16
    %v570 = vrot.slane %v568, 7
    %v571 = vshll.u32 %v85, 16
    %v573 = vor.u32 %v570, %v571
    %v574 = vsel %vm218, %v566, %v573
    %v575 = vrot.slane %v570, 4
    %v577 = vshrl.u32 %v86, 16
    %v579 = vrot.slane %v577, 7
    %v580 = vshll.u32 %v86, 16
    %v582 = vor.u32 %v579, %v580
    %v583 = vrot.slane %v579, 4
    %v585 = vshrl.u32 %v87, 16
    %v587 = vrot.slane %v585, 7
    %v588 = vshll.u32 %v87, 16
    %v590 = vor.u32 %v587, %v588
    %v591 = vsel %vm218, %v583, %v590
    %v592 = vrot.slane %v587, 4
    %v594 = vshrl.u32 %v88, 16
    %v596 = vrot.slane %v594, 7
    %v597 = vshll.u32 %v88, 16
    %v599 = vor.u32 %v596, %v597
    %v600 = vrot.slane %v596, 4
    %v602 = vshrl.u32 %v89, 16
    %v604 = vrot.slane %v602, 7
    %v605 = vshll.u32 %v89, 16
    %v607 = vor.u32 %v604, %v605
    %v608 = vsel %vm218, %v600, %v607
    %v609 = vrot.slane %v604, 4
    %v611 = vshrl.u32 %v90, 16
    %v613 = vrot.slane %v611, 7
    %v614 = vshll.u32 %v90, 16
    %v616 = vor.u32 %v613, %v614
    %v617 = vrot.slane %v613, 4
    %v619 = vshrl.u32 %v91, 16
    %v621 = vrot.slane %v619, 7
    %v622 = vshll.u32 %v91, 16
    %v624 = vor.u32 %v621, %v622
    %v625 = vsel %vm218, %v617, %v624
    %v626 = vrot.slane %v621, 4
    %v628 = vshrl.u32 %v92, 16
    %v630 = vrot.slane %v628, 7
    %v631 = vshll.u32 %v92, 16
    %v633 = vor.u32 %v630, %v631
    %v634 = vrot.slane %v630, 4
    %v636 = vshrl.u32 %v93, 16
    %v638 = vrot.slane %v636, 7
    %v639 = vshll.u32 %v93, 16
    %v641 = vor.u32 %v638, %v639
    %v642 = vsel %vm218, %v634, %v641
    %v643 = vrot.slane %v638, 4
    %v645 = vshrl.u32 %v94, 16
    %v647 = vrot.slane %v645, 7
    %v648 = vshll.u32 %v94, 16
    %v650 = vor.u32 %v647, %v648
    %v651 = vrot.slane %v647, 4
    %v653 = vshrl.u32 %v95, 16
    %v655 = vrot.slane %v653, 7
    %v656 = vshll.u32 %v95, 16
    %v658 = vor.u32 %v655, %v656
    %v659 = vsel %vm218, %v651, %v658
    %v660 = vrot.slane %v655, 4
    %v662 = vshrl.u32 %v96, 16
    %v664 = vrot.slane %v662, 7
    %v665 = vshll.u32 %v96, 16
    %v667 = vor.u32 %v664, %v665
    %v668 = vrot.slane %v664, 4
    %v670 = vshrl.u32 %v97, 16
    %v672 = vrot.slane %v670, 7
    %v673 = vshll.u32 %v97, 16
    %v675 = vor.u32 %v672, %v673
    %v676 = vsel %vm218, %v668, %v675
    %v677 = vrot.slane %v672, 4
    %v679 = vshrl.u32 %v98, 16
    %v681 = vrot.slane %v679, 7
    %v682 = vshll.u32 %v98, 16
    %v684 = vor.u32 %v681, %v682
    %v685 = vrot.slane %v681, 4
    %v687 = vshrl.u32 %v99, 16
    %v689 = vrot.slane %v687, 7
    %v690 = vshll.u32 %v99, 16
    %v692 = vor.u32 %v689, %v690
    %v693 = vsel %vm218, %v685, %v692
    %v694 = vrot.slane %v689, 4
    %v696 = vshrl.u32 %v100, 16
    %v698 = vrot.slane %v696, 7
    %v699 = vshll.u32 %v100, 16
    %v701 = vor.u32 %v698, %v699
    %v702 = vrot.slane %v698, 4
    %v704 = vshrl.u32 %v101, 16
    %v706 = vrot.slane %v704, 7
    %v707 = vshll.u32 %v101, 16
    %v709 = vor.u32 %v706, %v707
    %v710 = vsel %vm218, %v702, %v709
    %v711 = vrot.slane %v706, 4
    %v713 = vshrl.u32 %v102, 16
    %v715 = vrot.slane %v713, 7
    %v716 = vshll.u32 %v102, 16
    %v718 = vor.u32 %v715, %v716
    %v719 = vrot.slane %v715, 4
    %v721 = vshrl.u32 %v103, 16
    %v723 = vrot.slane %v721, 7
    %v724 = vshll.u32 %v103, 16
    %v726 = vor.u32 %v723, %v724
    %v727 = vsel %vm218, %v719, %v726
    %v728 = vrot.slane %v723, 4
    %v730 = vshrl.u32 %v104, 16
    %v732 = vrot.slane %v730, 7
    %v733 = vshll.u32 %v104, 16
    %v735 = vor.u32 %v732, %v733
    %v736 = vrot.slane %v732, 4
    %v738 = vshrl.u32 %v105, 16
    %v740 = vrot.slane %v738, 7
    %v741 = vshll.u32 %v105, 16
    %v743 = vor.u32 %v740, %v741
    %v744 = vsel %vm218, %v736, %v743
    %v745 = vrot.slane %v740, 4
    %v747 = vshrl.u32 %v106, 16
    %v749 = vrot.slane %v747, 7
    %v750 = vshll.u32 %v106, 16
    %v752 = vor.u32 %v749, %v750
    %v753 = vrot.slane %v749, 4
    %v755 = vshrl.u32 %v107, 16
    %v757 = vrot.slane %v755, 7
    %v758 = vshll.u32 %v107, 16
    %v760 = vor.u32 %v757, %v758
    %v761 = vsel %vm218, %v753, %v760
    %v762 = vrot.slane %v757, 4
    %s859 = scalar_lea.vmem [#allocation2], 12
    %vm860 = vcmask 1043456
    %vm861 = vsmask.f32 7938
    %vm862 = vmand %vm860, %vm861
    %v863 = vld [vmem:[%s859] sm:$0xf]
    %v864 = vsel %vm862, %v225, %v863
    %865 = vst [vmem:[%s859] sm:$0xf] %v864
    %866 = vst [vmem:[%s859 + $0x4] sm:$0xf] %v234
    %vm867 = vcmask 1040384
    %vm868 = vmand %vm867, %vm216
    %v869 = vld [vmem:[%s859 + $0x8] sm:$0x1]
    %v870 = vsel %vm868, %v235, %v869
    %871 = vst [vmem:[%s859 + $0x8] sm:$0x1] %v870
    %v872 = vld [vmem:[%s859 + $0xc] sm:$0xf]
    %v873 = vsel %vm862, %v242, %v872
    %874 = vst [vmem:[%s859 + $0xc] sm:$0xf] %v873
    %875 = vst [vmem:[%s859 + $0x10] sm:$0xf] %v251
    %v876 = vld [vmem:[%s859 + $0x14] sm:$0x1]
    %v877 = vsel %vm868, %v252, %v876
    %878 = vst [vmem:[%s859 + $0x14] sm:$0x1] %v877
    %v879 = vld [vmem:[%s859 + $0x18] sm:$0xf]
    %v880 = vsel %vm862, %v259, %v879
    %881 = vst [vmem:[%s859 + $0x18] sm:$0xf] %v880
    %882 = vst [vmem:[%s859 + $0x1c] sm:$0xf] %v268
    %v883 = vld [vmem:[%s859 + $0x20] sm:$0x1]
    %v884 = vsel %vm868, %v269, %v883
    %885 = vst [vmem:[%s859 + $0x20] sm:$0x1] %v884
    %v886 = vld [vmem:[%s859 + $0x24] sm:$0xf]
    %v887 = vsel %vm862, %v276, %v886
    %888 = vst [vmem:[%s859 + $0x24] sm:$0xf] %v887
    %889 = vst [vmem:[%s859 + $0x28] sm:$0xf] %v285
    %v890 = vld [vmem:[%s859 + $0x2c] sm:$0x1]
    %v891 = vsel %vm868, %v286, %v890
    %892 = vst [vmem:[%s859 + $0x2c] sm:$0x1] %v891
    %v893 = vld [vmem:[%s859 + $0x30] sm:$0xf]
    %v894 = vsel %vm862, %v293, %v893
    %895 = vst [vmem:[%s859 + $0x30] sm:$0xf] %v894
    %896 = vst [vmem:[%s859 + $0x34] sm:$0xf] %v302
    %v897 = vld [vmem:[%s859 + $0x38] sm:$0x1]
    %v898 = vsel %vm868, %v303, %v897
    %899 = vst [vmem:[%s859 + $0x38] sm:$0x1] %v898
    %v900 = vld [vmem:[%s859 + $0x3c] sm:$0xf]
    %v901 = vsel %vm862, %v310, %v900
    %902 = vst [vmem:[%s859 + $0x3c] sm:$0xf] %v901
    %903 = vst [vmem:[%s859 + $0x40] sm:$0xf] %v319
    %v904 = vld [vmem:[%s859 + $0x44] sm:$0x1]
    %v905 = vsel %vm868, %v320, %v904
    %906 = vst [vmem:[%s859 + $0x44] sm:$0x1] %v905
    %v907 = vld [vmem:[%s859 + $0x48] sm:$0xf]
    %v908 = vsel %vm862, %v327, %v907
    %909 = vst [vmem:[%s859 + $0x48] sm:$0xf] %v908
    %910 = vst [vmem:[%s859 + $0x4c] sm:$0xf] %v336
    %v911 = vld [vmem:[%s859 + $0x50] sm:$0x1]
    %v912 = vsel %vm868, %v337, %v911
    %913 = vst [vmem:[%s859 + $0x50] sm:$0x1] %v912
    %v914 = vld [vmem:[%s859 + $0x54] sm:$0xf]
    %v915 = vsel %vm862, %v344, %v914
    %916 = vst [vmem:[%s859 + $0x54] sm:$0xf] %v915
    %917 = vst [vmem:[%s859 + $0x58] sm:$0xf] %v353
    %v918 = vld [vmem:[%s859 + $0x5c] sm:$0x1]
    %v919 = vsel %vm868, %v354, %v918
    %920 = vst [vmem:[%s859 + $0x5c] sm:$0x1] %v919
    %v921 = vld [vmem:[%s859 + $0x60] sm:$0xf]
    %v922 = vsel %vm862, %v361, %v921
    %923 = vst [vmem:[%s859 + $0x60] sm:$0xf] %v922
    %924 = vst [vmem:[%s859 + $0x64] sm:$0xf] %v370
    %v925 = vld [vmem:[%s859 + $0x68] sm:$0x1]
    %v926 = vsel %vm868, %v371, %v925
    %927 = vst [vmem:[%s859 + $0x68] sm:$0x1] %v926
    %v928 = vld [vmem:[%s859 + $0x6c] sm:$0xf]
    %v929 = vsel %vm862, %v378, %v928
    %930 = vst [vmem:[%s859 + $0x6c] sm:$0xf] %v929
    %931 = vst [vmem:[%s859 + $0x70] sm:$0xf] %v387
    %v932 = vld [vmem:[%s859 + $0x74] sm:$0x1]
    %v933 = vsel %vm868, %v388, %v932
    %934 = vst [vmem:[%s859 + $0x74] sm:$0x1] %v933
    %v935 = vld [vmem:[%s859 + $0x78] sm:$0xf]
    %v936 = vsel %vm862, %v395, %v935
    %937 = vst [vmem:[%s859 + $0x78] sm:$0xf] %v936
    %938 = vst [vmem:[%s859 + $0x7c] sm:$0xf] %v404
    %v939 = vld [vmem:[%s859 + $0x80] sm:$0x1]
    %v940 = vsel %vm868, %v405, %v939
    %941 = vst [vmem:[%s859 + $0x80] sm:$0x1] %v940
    %v942 = vld [vmem:[%s859 + $0x84] sm:$0xf]
    %v943 = vsel %vm862, %v412, %v942
    %944 = vst [vmem:[%s859 + $0x84] sm:$0xf] %v943
    %945 = vst [vmem:[%s859 + $0x88] sm:$0xf] %v421
    %v946 = vld [vmem:[%s859 + $0x8c] sm:$0x1]
    %v947 = vsel %vm868, %v422, %v946
    %948 = vst [vmem:[%s859 + $0x8c] sm:$0x1] %v947
    %v949 = vld [vmem:[%s859 + $0x90] sm:$0xf]
    %v950 = vsel %vm862, %v429, %v949
    %951 = vst [vmem:[%s859 + $0x90] sm:$0xf] %v950
    %952 = vst [vmem:[%s859 + $0x94] sm:$0xf] %v438
    %v953 = vld [vmem:[%s859 + $0x98] sm:$0x1]
    %v954 = vsel %vm868, %v439, %v953
    %955 = vst [vmem:[%s859 + $0x98] sm:$0x1] %v954
    %v956 = vld [vmem:[%s859 + $0x9c] sm:$0xf]
    %v957 = vsel %vm862, %v446, %v956
    %958 = vst [vmem:[%s859 + $0x9c] sm:$0xf] %v957
    %959 = vst [vmem:[%s859 + $0xa0] sm:$0xf] %v455
    %v960 = vld [vmem:[%s859 + $0xa4] sm:$0x1]
    %v961 = vsel %vm868, %v456, %v960
    %962 = vst [vmem:[%s859 + $0xa4] sm:$0x1] %v961
    %v963 = vld [vmem:[%s859 + $0xa8] sm:$0xf]
    %v964 = vsel %vm862, %v463, %v963
    %965 = vst [vmem:[%s859 + $0xa8] sm:$0xf] %v964
    %966 = vst [vmem:[%s859 + $0xac] sm:$0xf] %v472
    %v967 = vld [vmem:[%s859 + $0xb0] sm:$0x1]
    %v968 = vsel %vm868, %v473, %v967
    %969 = vst [vmem:[%s859 + $0xb0] sm:$0x1] %v968
    %v970 = vld [vmem:[%s859 + $0xb4] sm:$0xf]
    %v971 = vsel %vm862, %v480, %v970
    %972 = vst [vmem:[%s859 + $0xb4] sm:$0xf] %v971
    %973 = vst [vmem:[%s859 + $0xb8] sm:$0xf] %v489
    %v974 = vld [vmem:[%s859 + $0xbc] sm:$0x1]
    %v975 = vsel %vm868, %v490, %v974
    %976 = vst [vmem:[%s859 + $0xbc] sm:$0x1] %v975
    %v977 = vld [vmem:[%s859 + $0xd8] sm:$0xf]
    %v978 = vsel %vm862, %v497, %v977
    %979 = vst [vmem:[%s859 + $0xd8] sm:$0xf] %v978
    %980 = vst [vmem:[%s859 + $0xdc] sm:$0xf] %v506
    %v981 = vld [vmem:[%s859 + $0xe0] sm:$0x1]
    %v982 = vsel %vm868, %v507, %v981
    %983 = vst [vmem:[%s859 + $0xe0] sm:$0x1] %v982
    %v984 = vld [vmem:[%s859 + $0xe4] sm:$0xf]
    %v985 = vsel %vm862, %v514, %v984
    %986 = vst [vmem:[%s859 + $0xe4] sm:$0xf] %v985
    %987 = vst [vmem:[%s859 + $0xe8] sm:$0xf] %v523
    %v988 = vld [vmem:[%s859 + $0xec] sm:$0x1]
    %v989 = vsel %vm868, %v524, %v988
    %990 = vst [vmem:[%s859 + $0xec] sm:$0x1] %v989
    %v991 = vld [vmem:[%s859 + $0xf0] sm:$0xf]
    %v992 = vsel %vm862, %v531, %v991
    %993 = vst [vmem:[%s859 + $0xf0] sm:$0xf] %v992
    %994 = vst [vmem:[%s859 + $0xf4] sm:$0xf] %v540
    %v995 = vld [vmem:[%s859 + $0xf8] sm:$0x1]
    %v996 = vsel %vm868, %v541, %v995
    %997 = vst [vmem:[%s859 + $0xf8] sm:$0x1] %v996
    %v998 = vld [vmem:[%s859 + $0xfc] sm:$0xf]
    %v999 = vsel %vm862, %v548, %v998
    %1000 = vst [vmem:[%s859 + $0xfc] sm:$0xf] %v999
    %1001 = vst [vmem:[%s859 + $0x100] sm:$0xf] %v557
    %v1002 = vld [vmem:[%s859 + $0x104] sm:$0x1]
    %v1003 = vsel %vm868, %v558, %v1002
    %1004 = vst [vmem:[%s859 + $0x104] sm:$0x1] %v1003
    %v1005 = vld [vmem:[%s859 + $0x108] sm:$0xf]
    %v1006 = vsel %vm862, %v565, %v1005
    %1007 = vst [vmem:[%s859 + $0x108] sm:$0xf] %v1006
    %1008 = vst [vmem:[%s859 + $0x10c] sm:$0xf] %v574
    %v1009 = vld [vmem:[%s859 + $0x110] sm:$0x1]
    %v1010 = vsel %vm868, %v575, %v1009
    %1011 = vst [vmem:[%s859 + $0x110] sm:$0x1] %v1010
    %v1012 = vld [vmem:[%s859 + $0x114] sm:$0xf]
    %v1013 = vsel %vm862, %v582, %v1012
    %1014 = vst [vmem:[%s859 + $0x114] sm:$0xf] %v1013
    %1015 = vst [vmem:[%s859 + $0x118] sm:$0xf] %v591
    %v1016 = vld [vmem:[%s859 + $0x11c] sm:$0x1]
    %v1017 = vsel %vm868, %v592, %v1016
    %1018 = vst [vmem:[%s859 + $0x11c] sm:$0x1] %v1017
    %v1019 = vld [vmem:[%s859 + $0x120] sm:$0xf]
    %v1020 = vsel %vm862, %v599, %v1019
    %1021 = vst [vmem:[%s859 + $0x120] sm:$0xf] %v1020
    %1022 = vst [vmem:[%s859 + $0x124] sm:$0xf] %v608
    %v1023 = vld [vmem:[%s859 + $0x128] sm:$0x1]
    %v1024 = vsel %vm868, %v609, %v1023
    %1025 = vst [vmem:[%s859 + $0x128] sm:$0x1] %v1024
    %v1026 = vld [vmem:[%s859 + $0x12c] sm:$0xf]
    %v1027 = vsel %vm862, %v616, %v1026
    %1028 = vst [vmem:[%s859 + $0x12c] sm:$0xf] %v1027
    %1029 = vst [vmem:[%s859 + $0x130] sm:$0xf] %v625
    %v1030 = vld [vmem:[%s859 + $0x134] sm:$0x1]
    %v1031 = vsel %vm868, %v626, %v1030
    %1032 = vst [vmem:[%s859 + $0x134] sm:$0x1] %v1031
    %v1033 = vld [vmem:[%s859 + $0x138] sm:$0xf]
    %v1034 = vsel %vm862, %v633, %v1033
    %1035 = vst [vmem:[%s859 + $0x138] sm:$0xf] %v1034
    %1036 = vst [vmem:[%s859 + $0x13c] sm:$0xf] %v642
    %v1037 = vld [vmem:[%s859 + $0x140] sm:$0x1]
    %v1038 = vsel %vm868, %v643, %v1037
    %1039 = vst [vmem:[%s859 + $0x140] sm:$0x1] %v1038
    %v1040 = vld [vmem:[%s859 + $0x144] sm:$0xf]
    %v1041 = vsel %vm862, %v650, %v1040
    %1042 = vst [vmem:[%s859 + $0x144] sm:$0xf] %v1041
    %1043 = vst [vmem:[%s859 + $0x148] sm:$0xf] %v659
    %v1044 = vld [vmem:[%s859 + $0x14c] sm:$0x1]
    %v1045 = vsel %vm868, %v660, %v1044
    %1046 = vst [vmem:[%s859 + $0x14c] sm:$0x1] %v1045
    %v1047 = vld [vmem:[%s859 + $0x150] sm:$0xf]
    %v1048 = vsel %vm862, %v667, %v1047
    %1049 = vst [vmem:[%s859 + $0x150] sm:$0xf] %v1048
    %1050 = vst [vmem:[%s859 + $0x154] sm:$0xf] %v676
    %v1051 = vld [vmem:[%s859 + $0x158] sm:$0x1]
    %v1052 = vsel %vm868, %v677, %v1051
    %1053 = vst [vmem:[%s859 + $0x158] sm:$0x1] %v1052
    %v1054 = vld [vmem:[%s859 + $0x15c] sm:$0xf]
    %v1055 = vsel %vm862, %v684, %v1054
    %1056 = vst [vmem:[%s859 + $0x15c] sm:$0xf] %v1055
    %1057 = vst [vmem:[%s859 + $0x160] sm:$0xf] %v693
    %v1058 = vld [vmem:[%s859 + $0x164] sm:$0x1]
    %v1059 = vsel %vm868, %v694, %v1058
    %1060 = vst [vmem:[%s859 + $0x164] sm:$0x1] %v1059
    %v1061 = vld [vmem:[%s859 + $0x168] sm:$0xf]
    %v1062 = vsel %vm862, %v701, %v1061
    %1063 = vst [vmem:[%s859 + $0x168] sm:$0xf] %v1062
    %1064 = vst [vmem:[%s859 + $0x16c] sm:$0xf] %v710
    %v1065 = vld [vmem:[%s859 + $0x170] sm:$0x1]
    %v1066 = vsel %vm868, %v711, %v1065
    %1067 = vst [vmem:[%s859 + $0x170] sm:$0x1] %v1066
    %v1068 = vld [vmem:[%s859 + $0x174] sm:$0xf]
    %v1069 = vsel %vm862, %v718, %v1068
    %1070 = vst [vmem:[%s859 + $0x174] sm:$0xf] %v1069
    %1071 = vst [vmem:[%s859 + $0x178] sm:$0xf] %v727
    %v1072 = vld [vmem:[%s859 + $0x17c] sm:$0x1]
    %v1073 = vsel %vm868, %v728, %v1072
    %1074 = vst [vmem:[%s859 + $0x17c] sm:$0x1] %v1073
    %v1075 = vld [vmem:[%s859 + $0x180] sm:$0xf]
    %v1076 = vsel %vm862, %v735, %v1075
    %1077 = vst [vmem:[%s859 + $0x180] sm:$0xf] %v1076
    %1078 = vst [vmem:[%s859 + $0x184] sm:$0xf] %v744
    %v1079 = vld [vmem:[%s859 + $0x188] sm:$0x1]
    %v1080 = vsel %vm868, %v745, %v1079
    %1081 = vst [vmem:[%s859 + $0x188] sm:$0x1] %v1080
    %v1082 = vld [vmem:[%s859 + $0x18c] sm:$0xf]
    %v1083 = vsel %vm862, %v752, %v1082
    %1084 = vst [vmem:[%s859 + $0x18c] sm:$0xf] %v1083
    %1085 = vst [vmem:[%s859 + $0x190] sm:$0xf] %v761
    %v1086 = vld [vmem:[%s859 + $0x194] sm:$0x1]
    %v1087 = vsel %vm868, %v762, %v1086
    %1088 = vst [vmem:[%s859 + $0x194] sm:$0x1] %v1087
    %v1089 = vld [vmem:[#allocation2] sm:$0xf]
    %v1090 = vld [vmem:[#allocation2 + $0x4] sm:$0xf]
    %v1091 = vld [vmem:[#allocation2 + $0x8] sm:$0x1]
    %v1092 = vld [vmem:[#allocation2 + $0xc] sm:$0xf]
    %v1093 = vld [vmem:[#allocation2 + $0x10] sm:$0xf]
    %v1094 = vld [vmem:[#allocation2 + $0x14] sm:$0x1]
    %v1095 = vld [vmem:[#allocation2 + $0x18] sm:$0xf]
    %v1096 = vld [vmem:[#allocation2 + $0x1c] sm:$0xf]
    %v1097 = vld [vmem:[#allocation2 + $0x20] sm:$0x1]
    %v1098 = vld [vmem:[#allocation2 + $0x24] sm:$0xf]
    %v1099 = vld [vmem:[#allocation2 + $0x28] sm:$0xf]
    %v1100 = vld [vmem:[#allocation2 + $0x2c] sm:$0x1]
    %v1101 = vld [vmem:[#allocation2 + $0x30] sm:$0xf]
    %v1102 = vld [vmem:[#allocation2 + $0x34] sm:$0xf]
    %v1103 = vld [vmem:[#allocation2 + $0x38] sm:$0x1]
    %v1104 = vld [vmem:[#allocation2 + $0x3c] sm:$0xf]
    %v1105 = vld [vmem:[#allocation2 + $0x40] sm:$0xf]
    %v1106 = vld [vmem:[#allocation2 + $0x44] sm:$0x1]
    %v1107 = vld [vmem:[#allocation2 + $0x48] sm:$0xf]
    %v1108 = vld [vmem:[#allocation2 + $0x4c] sm:$0xf]
    %v1109 = vld [vmem:[#allocation2 + $0x50] sm:$0x1]
    %v1110 = vld [vmem:[#allocation2 + $0x54] sm:$0xf]
    %v1111 = vld [vmem:[#allocation2 + $0x58] sm:$0xf]
    %v1112 = vld [vmem:[#allocation2 + $0x5c] sm:$0x1]
    %v1113 = vld [vmem:[#allocation2 + $0x60] sm:$0xf]
    %v1114 = vld [vmem:[#allocation2 + $0x64] sm:$0xf]
    %v1115 = vld [vmem:[#allocation2 + $0x68] sm:$0x1]
    %v1116 = vld [vmem:[#allocation2 + $0x6c] sm:$0xf]
    %v1117 = vld [vmem:[#allocation2 + $0x70] sm:$0xf]
    %v1118 = vld [vmem:[#allocation2 + $0x74] sm:$0x1]
    %v1119 = vld [vmem:[#allocation2 + $0x78] sm:$0xf]
    %v1120 = vld [vmem:[#allocation2 + $0x7c] sm:$0xf]
    %v1121 = vld [vmem:[#allocation2 + $0x80] sm:$0x1]
    %v1122 = vld [vmem:[#allocation2 + $0x84] sm:$0xf]
    %v1123 = vld [vmem:[#allocation2 + $0x88] sm:$0xf]
    %v1124 = vld [vmem:[#allocation2 + $0x8c] sm:$0x1]
    %v1125 = vld [vmem:[#allocation2 + $0x90] sm:$0xf]
    %v1126 = vld [vmem:[#allocation2 + $0x94] sm:$0xf]
    %v1127 = vld [vmem:[#allocation2 + $0x98] sm:$0x1]
    %v1128 = vld [vmem:[#allocation2 + $0x9c] sm:$0xf]
    %v1129 = vld [vmem:[#allocation2 + $0xa0] sm:$0xf]
    %v1130 = vld [vmem:[#allocation2 + $0xa4] sm:$0x1]
    %v1131 = vld [vmem:[#allocation2 + $0xa8] sm:$0xf]
    %v1132 = vld [vmem:[#allocation2 + $0xac] sm:$0xf]
    %v1133 = vld [vmem:[#allocation2 + $0xb0] sm:$0x1]
    %v1134 = vld [vmem:[#allocation2 + $0xb4] sm:$0xf]
    %v1135 = vld [vmem:[#allocation2 + $0xb8] sm:$0xf]
    %v1136 = vld [vmem:[#allocation2 + $0xbc] sm:$0x1]
    %v1137 = vld [vmem:[#allocation2 + $0xc0] sm:$0xf]
    %v1138 = vld [vmem:[#allocation2 + $0xc4] sm:$0xf]
    %v1139 = vld [vmem:[#allocation2 + $0xc8] sm:$0x1]
    %v1140 = vld [vmem:[#allocation2 + $0xcc] sm:$0xf]
    %v1141 = vld [vmem:[#allocation2 + $0xd0] sm:$0xf]
    %v1142 = vld [vmem:[#allocation2 + $0xd4] sm:$0x1]
    %v1143 = vld [vmem:[#allocation2 + $0xd8] sm:$0xf]
    %v1144 = vld [vmem:[#allocation2 + $0xdc] sm:$0xf]
    %v1145 = vld [vmem:[#allocation2 + $0xe0] sm:$0x1]
    %v1146 = vld [vmem:[#allocation2 + $0xe4] sm:$0xf]
    %v1147 = vld [vmem:[#allocation2 + $0xe8] sm:$0xf]
    %v1148 = vld [vmem:[#allocation2 + $0xec] sm:$0x1]
    %v1149 = vld [vmem:[#allocation2 + $0xf0] sm:$0xf]
    %v1150 = vld [vmem:[#allocation2 + $0xf4] sm:$0xf]
    %v1151 = vld [vmem:[#allocation2 + $0xf8] sm:$0x1]
    %v1152 = vld [vmem:[#allocation2 + $0xfc] sm:$0xf]
    %v1153 = vld [vmem:[#allocation2 + $0x100] sm:$0xf]
    %v1154 = vld [vmem:[#allocation2 + $0x104] sm:$0x1]
    %v1155 = vld [vmem:[#allocation2 + $0x108] sm:$0xf]
    %v1156 = vld [vmem:[#allocation2 + $0x10c] sm:$0xf]
    %v1157 = vld [vmem:[#allocation2 + $0x110] sm:$0x1]
    %v1158 = vld [vmem:[#allocation2 + $0x114] sm:$0xf]
    %v1159 = vld [vmem:[#allocation2 + $0x118] sm:$0xf]
    %v1160 = vld [vmem:[#allocation2 + $0x11c] sm:$0x1]
    %v1161 = vld [vmem:[#allocation2 + $0x120] sm:$0xf]
    %v1162 = vld [vmem:[#allocation2 + $0x124] sm:$0xf]
    %v1163 = vld [vmem:[#allocation2 + $0x128] sm:$0x1]
    %v1164 = vld [vmem:[#allocation2 + $0x12c] sm:$0xf]
    %v1165 = vld [vmem:[#allocation2 + $0x130] sm:$0xf]
    %v1166 = vld [vmem:[#allocation2 + $0x134] sm:$0x1]
    %v1167 = vld [vmem:[#allocation2 + $0x138] sm:$0xf]
    %v1168 = vld [vmem:[#allocation2 + $0x13c] sm:$0xf]
    %v1169 = vld [vmem:[#allocation2 + $0x140] sm:$0x1]
    %v1170 = vld [vmem:[#allocation2 + $0x144] sm:$0xf]
    %v1171 = vld [vmem:[#allocation2 + $0x148] sm:$0xf]
    %v1172 = vld [vmem:[#allocation2 + $0x14c] sm:$0x1]
    %v1173 = vld [vmem:[#allocation2 + $0x150] sm:$0xf]
    %v1174 = vld [vmem:[#allocation2 + $0x154] sm:$0xf]
    %v1175 = vld [vmem:[#allocation2 + $0x158] sm:$0x1]
    %v1176 = vld [vmem:[#allocation2 + $0x15c] sm:$0xf]
    %v1177 = vld [vmem:[#allocation2 + $0x160] sm:$0xf]
    %v1178 = vld [vmem:[#allocation2 + $0x164] sm:$0x1]
    %v1179 = vld [vmem:[#allocation2 + $0x168] sm:$0xf]
    %v1180 = vld [vmem:[#allocation2 + $0x16c] sm:$0xf]
    %v1181 = vld [vmem:[#allocation2 + $0x170] sm:$0x1]
    %v1182 = vld [vmem:[#allocation2 + $0x174] sm:$0xf]
    %v1183 = vld [vmem:[#allocation2 + $0x178] sm:$0xf]
    %v1184 = vld [vmem:[#allocation2 + $0x17c] sm:$0x1]
    %v1185 = vld [vmem:[#allocation2 + $0x180] sm:$0xf]
    %v1186 = vld [vmem:[#allocation2 + $0x184] sm:$0xf]
    %v1187 = vld [vmem:[#allocation2 + $0x188] sm:$0x1]
    %v1188 = vld [vmem:[#allocation2 + $0x18c] sm:$0xf]
    %v1189 = vld [vmem:[#allocation2 + $0x190] sm:$0xf]
    %v1190 = vld [vmem:[#allocation2 + $0x194] sm:$0x1]
    %v1191 = vld [vmem:[#allocation2 + $0x198] sm:$0xf]
    %v1192 = vld [vmem:[#allocation2 + $0x19c] sm:$0xf]
    %v1193 = vld [vmem:[#allocation2 + $0x1a0] sm:$0x1]
    %v1194 = vld [vmem:[#allocation2 + $0x1a4] sm:$0xf]
    %v1195 = vld [vmem:[#allocation2 + $0x1a8] sm:$0xf]
    %v1196 = vld [vmem:[#allocation2 + $0x1ac] sm:$0x1]
    %v1197 = vld [vmem:[#allocation6] sm:$0xf]
    %v1198 = vld [vmem:[#allocation6 + $0x4] sm:$0xf]
    %v1199 = vld [vmem:[#allocation6 + $0x8] sm:$0xf]
    %v1200 = vld [vmem:[#allocation6 + $0xc] sm:$0xf]
    %v1201 = vld [vmem:[#allocation6 + $0x10] sm:$0xf]
    %v1202 = vld [vmem:[#allocation6 + $0x14] sm:$0xf]
    %v1203 = vld [vmem:[#allocation6 + $0x18] sm:$0xf]
    %v1204 = vld [vmem:[#allocation6 + $0x1c] sm:$0xf]
    %v1205 = vld [vmem:[#allocation6 + $0x20] sm:$0xf]
    %v1206 = vld [vmem:[#allocation6 + $0x24] sm:$0xf]
    %v1207 = vld [vmem:[#allocation6 + $0x28] sm:$0xf]
    %v1208 = vld [vmem:[#allocation6 + $0x2c] sm:$0xf]
    %v1209 = vld [vmem:[#allocation6 + $0x30] sm:$0xf]
    %v1210 = vld [vmem:[#allocation6 + $0x34] sm:$0xf]
    %v1211 = vld [vmem:[#allocation6 + $0x38] sm:$0xf]
    %v1212 = vld [vmem:[#allocation6 + $0x3c] sm:$0xf]
    %vm1213 = vsmask.f32 3328
    %vm1214 = vsmask.f32 7440
    %vm1215 = vmor %vm1213, %vm1214
    %v1217 = vshrl.u32 %v1089, 16
    %v1219 = vrot.slane %v1217, 4
    %v1220 = vshll.u32 %v1089, 16
    %v1222 = vrot.slane %v1220, 5
    %v1223 = vor.u32 %v1219, %v1222
    %v1224 = vrot.slane %v1223, 4
    %v1226 = vshll.u32 %v1090, 16
    %v1228 = vrot.slane %v1226, 5
    %v1229 = vsel %vm1215, %v1224, %v1228
    %v1230 = vshrl.u32 %v1090, 16
    %v1232 = vrot.slane %v1230, 4
    %v1233 = vor.u32 %v1232, %v1228
    %v1234 = vrot.slane %v1233, 4
    %v1236 = vshll.u32 %v1091, 16
    %v1238 = vrot.slane %v1236, 5
    %v1239 = vsel %vm1215, %v1234, %v1238
    %v1241 = vshrl.u32 %v1092, 16
    %v1243 = vrot.slane %v1241, 4
    %v1244 = vshll.u32 %v1092, 16
    %v1246 = vrot.slane %v1244, 5
    %v1247 = vor.u32 %v1243, %v1246
    %v1248 = vrot.slane %v1247, 4
    %v1250 = vshll.u32 %v1093, 16
    %v1252 = vrot.slane %v1250, 5
    %v1253 = vsel %vm1215, %v1248, %v1252
    %v1254 = vshrl.u32 %v1093, 16
    %v1256 = vrot.slane %v1254, 4
    %v1257 = vor.u32 %v1256, %v1252
    %v1258 = vrot.slane %v1257, 4
    %v1260 = vshll.u32 %v1094, 16
    %v1262 = vrot.slane %v1260, 5
    %v1263 = vsel %vm1215, %v1258, %v1262
    %v1265 = vshrl.u32 %v1095, 16
    %v1267 = vrot.slane %v1265, 4
    %v1268 = vshll.u32 %v1095, 16
    %v1270 = vrot.slane %v1268, 5
    %v1271 = vor.u32 %v1267, %v1270
    %v1272 = vrot.slane %v1271, 4
    %v1274 = vshll.u32 %v1096, 16
    %v1276 = vrot.slane %v1274, 5
    %v1277 = vsel %vm1215, %v1272, %v1276
    %v1278 = vshrl.u32 %v1096, 16
    %v1280 = vrot.slane %v1278, 4
    %v1281 = vor.u32 %v1280, %v1276
    %v1282 = vrot.slane %v1281, 4
    %v1284 = vshll.u32 %v1097, 16
    %v1286 = vrot.slane %v1284, 5
    %v1287 = vsel %vm1215, %v1282, %v1286
    %v1289 = vshrl.u32 %v1098, 16
    %v1291 = vrot.slane %v1289, 4
    %v1292 = vshll.u32 %v1098, 16
    %v1294 = vrot.slane %v1292, 5
    %v1295 = vor.u32 %v1291, %v1294
    %v1296 = vrot.slane %v1295, 4
    %v1298 = vshll.u32 %v1099, 16
    %v1300 = vrot.slane %v1298, 5
    %v1301 = vsel %vm1215, %v1296, %v1300
    %v1302 = vshrl.u32 %v1099, 16
    %v1304 = vrot.slane %v1302, 4
    %v1305 = vor.u32 %v1304, %v1300
    %v1306 = vrot.slane %v1305, 4
    %v1308 = vshll.u32 %v1100, 16
    %v1310 = vrot.slane %v1308, 5
    %v1311 = vsel %vm1215, %v1306, %v1310
    %v1313 = vshrl.u32 %v1101, 16
    %v1315 = vrot.slane %v1313, 4
    %v1316 = vshll.u32 %v1101, 16
    %v1318 = vrot.slane %v1316, 5
    %v1319 = vor.u32 %v1315, %v1318
    %v1320 = vrot.slane %v1319, 4
    %v1322 = vshll.u32 %v1102, 16
    %v1324 = vrot.slane %v1322, 5
    %v1325 = vsel %vm1215, %v1320, %v1324
    %v1326 = vshrl.u32 %v1102, 16
    %v1328 = vrot.slane %v1326, 4
    %v1329 = vor.u32 %v1328, %v1324
    %v1330 = vrot.slane %v1329, 4
    %v1332 = vshll.u32 %v1103, 16
    %v1334 = vrot.slane %v1332, 5
    %v1335 = vsel %vm1215, %v1330, %v1334
    %v1337 = vshrl.u32 %v1104, 16
    %v1339 = vrot.slane %v1337, 4
    %v1340 = vshll.u32 %v1104, 16
    %v1342 = vrot.slane %v1340, 5
    %v1343 = vor.u32 %v1339, %v1342
    %v1344 = vrot.slane %v1343, 4
    %v1346 = vshll.u32 %v1105, 16
    %v1348 = vrot.slane %v1346, 5
    %v1349 = vsel %vm1215, %v1344, %v1348
    %v1350 = vshrl.u32 %v1105, 16
    %v1352 = vrot.slane %v1350, 4
    %v1353 = vor.u32 %v1352, %v1348
    %v1354 = vrot.slane %v1353, 4
    %v1356 = vshll.u32 %v1106, 16
    %v1358 = vrot.slane %v1356, 5
    %v1359 = vsel %vm1215, %v1354, %v1358
    %v1361 = vshrl.u32 %v1107, 16
    %v1363 = vrot.slane %v1361, 4
    %v1364 = vshll.u32 %v1107, 16
    %v1366 = vrot.slane %v1364, 5
    %v1367 = vor.u32 %v1363, %v1366
    %v1368 = vrot.slane %v1367, 4
    %v1370 = vshll.u32 %v1108, 16
    %v1372 = vrot.slane %v1370, 5
    %v1373 = vsel %vm1215, %v1368, %v1372
    %v1374 = vshrl.u32 %v1108, 16
    %v1376 = vrot.slane %v1374, 4
    %v1377 = vor.u32 %v1376, %v1372
    %v1378 = vrot.slane %v1377, 4
    %v1380 = vshll.u32 %v1109, 16
    %v1382 = vrot.slane %v1380, 5
    %v1383 = vsel %vm1215, %v1378, %v1382
    %v1385 = vshrl.u32 %v1110, 16
    %v1387 = vrot.slane %v1385, 4
    %v1388 = vshll.u32 %v1110, 16
    %v1390 = vrot.slane %v1388, 5
    %v1391 = vor.u32 %v1387, %v1390
    %v1392 = vrot.slane %v1391, 4
    %v1394 = vshll.u32 %v1111, 16
    %v1396 = vrot.slane %v1394, 5
    %v1397 = vsel %vm1215, %v1392, %v1396
    %v1398 = vshrl.u32 %v1111, 16
    %v1400 = vrot.slane %v1398, 4
    %v1401 = vor.u32 %v1400, %v1396
    %v1402 = vrot.slane %v1401, 4
    %v1404 = vshll.u32 %v1112, 16
    %v1406 = vrot.slane %v1404, 5
    %v1407 = vsel %vm1215, %v1402, %v1406
    %v1409 = vshrl.u32 %v1113, 16
    %v1411 = vrot.slane %v1409, 4
    %v1412 = vshll.u32 %v1113, 16
    %v1414 = vrot.slane %v1412, 5
    %v1415 = vor.u32 %v1411, %v1414
    %v1416 = vrot.slane %v1415, 4
    %v1418 = vshll.u32 %v1114, 16
    %v1420 = vrot.slane %v1418, 5
    %v1421 = vsel %vm1215, %v1416, %v1420
    %v1422 = vshrl.u32 %v1114, 16
    %v1424 = vrot.slane %v1422, 4
    %v1425 = vor.u32 %v1424, %v1420
    %v1426 = vrot.slane %v1425, 4
    %v1428 = vshll.u32 %v1115, 16
    %v1430 = vrot.slane %v1428, 5
    %v1431 = vsel %vm1215, %v1426, %v1430
    %v1433 = vshrl.u32 %v1116, 16
    %v1435 = vrot.slane %v1433, 4
    %v1436 = vshll.u32 %v1116, 16
    %v1438 = vrot.slane %v1436, 5
    %v1439 = vor.u32 %v1435, %v1438
    %v1440 = vrot.slane %v1439, 4
    %v1442 = vshll.u32 %v1117, 16
    %v1444 = vrot.slane %v1442, 5
    %v1445 = vsel %vm1215, %v1440, %v1444
    %v1446 = vshrl.u32 %v1117, 16
    %v1448 = vrot.slane %v1446, 4
    %v1449 = vor.u32 %v1448, %v1444
    %v1450 = vrot.slane %v1449, 4
    %v1452 = vshll.u32 %v1118, 16
    %v1454 = vrot.slane %v1452, 5
    %v1455 = vsel %vm1215, %v1450, %v1454
    %v1457 = vshrl.u32 %v1119, 16
    %v1459 = vrot.slane %v1457, 4
    %v1460 = vshll.u32 %v1119, 16
    %v1462 = vrot.slane %v1460, 5
    %v1463 = vor.u32 %v1459, %v1462
    %v1464 = vrot.slane %v1463, 4
    %v1466 = vshll.u32 %v1120, 16
    %v1468 = vrot.slane %v1466, 5
    %v1469 = vsel %vm1215, %v1464, %v1468
    %v1470 = vshrl.u32 %v1120, 16
    %v1472 = vrot.slane %v1470, 4
    %v1473 = vor.u32 %v1472, %v1468
    %v1474 = vrot.slane %v1473, 4
    %v1476 = vshll.u32 %v1121, 16
    %v1478 = vrot.slane %v1476, 5
    %v1479 = vsel %vm1215, %v1474, %v1478
    %v1481 = vshrl.u32 %v1122, 16
    %v1483 = vrot.slane %v1481, 4
    %v1484 = vshll.u32 %v1122, 16
    %v1486 = vrot.slane %v1484, 5
    %v1487 = vor.u32 %v1483, %v1486
    %v1488 = vrot.slane %v1487, 4
    %v1490 = vshll.u32 %v1123, 16
    %v1492 = vrot.slane %v1490, 5
    %v1493 = vsel %vm1215, %v1488, %v1492
    %v1494 = vshrl.u32 %v1123, 16
    %v1496 = vrot.slane %v1494, 4
    %v1497 = vor.u32 %v1496, %v1492
    %v1498 = vrot.slane %v1497, 4
    %v1500 = vshll.u32 %v1124, 16
    %v1502 = vrot.slane %v1500, 5
    %v1503 = vsel %vm1215, %v1498, %v1502
    %v1505 = vshrl.u32 %v1125, 16
    %v1507 = vrot.slane %v1505, 4
    %v1508 = vshll.u32 %v1125, 16
    %v1510 = vrot.slane %v1508, 5
    %v1511 = vor.u32 %v1507, %v1510
    %v1512 = vrot.slane %v1511, 4
    %v1514 = vshll.u32 %v1126, 16
    %v1516 = vrot.slane %v1514, 5
    %v1517 = vsel %vm1215, %v1512, %v1516
    %v1518 = vshrl.u32 %v1126, 16
    %v1520 = vrot.slane %v1518, 4
    %v1521 = vor.u32 %v1520, %v1516
    %v1522 = vrot.slane %v1521, 4
    %v1524 = vshll.u32 %v1127, 16
    %v1526 = vrot.slane %v1524, 5
    %v1527 = vsel %vm1215, %v1522, %v1526
    %v1529 = vshrl.u32 %v1128, 16
    %v1531 = vrot.slane %v1529, 4
    %v1532 = vshll.u32 %v1128, 16
    %v1534 = vrot.slane %v1532, 5
    %v1535 = vor.u32 %v1531, %v1534
    %v1536 = vrot.slane %v1535, 4
    %v1538 = vshll.u32 %v1129, 16
    %v1540 = vrot.slane %v1538, 5
    %v1541 = vsel %vm1215, %v1536, %v1540
    %v1542 = vshrl.u32 %v1129, 16
    %v1544 = vrot.slane %v1542, 4
    %v1545 = vor.u32 %v1544, %v1540
    %v1546 = vrot.slane %v1545, 4
    %v1548 = vshll.u32 %v1130, 16
    %v1550 = vrot.slane %v1548, 5
    %v1551 = vsel %vm1215, %v1546, %v1550
    %v1553 = vshrl.u32 %v1131, 16
    %v1555 = vrot.slane %v1553, 4
    %v1556 = vshll.u32 %v1131, 16
    %v1558 = vrot.slane %v1556, 5
    %v1559 = vor.u32 %v1555, %v1558
    %v1560 = vrot.slane %v1559, 4
    %v1562 = vshll.u32 %v1132, 16
    %v1564 = vrot.slane %v1562, 5
    %v1565 = vsel %vm1215, %v1560, %v1564
    %v1566 = vshrl.u32 %v1132, 16
    %v1568 = vrot.slane %v1566, 4
    %v1569 = vor.u32 %v1568, %v1564
    %v1570 = vrot.slane %v1569, 4
    %v1572 = vshll.u32 %v1133, 16
    %v1574 = vrot.slane %v1572, 5
    %v1575 = vsel %vm1215, %v1570, %v1574
    %v1577 = vshrl.u32 %v1134, 16
    %v1579 = vrot.slane %v1577, 4
    %v1580 = vshll.u32 %v1134, 16
    %v1582 = vrot.slane %v1580, 5
    %v1583 = vor.u32 %v1579, %v1582
    %v1584 = vrot.slane %v1583, 4
    %v1586 = vshll.u32 %v1135, 16
    %v1588 = vrot.slane %v1586, 5
    %v1589 = vsel %vm1215, %v1584, %v1588
    %v1590 = vshrl.u32 %v1135, 16
    %v1592 = vrot.slane %v1590, 4
    %v1593 = vor.u32 %v1592, %v1588
    %v1594 = vrot.slane %v1593, 4
    %v1596 = vshll.u32 %v1136, 16
    %v1598 = vrot.slane %v1596, 5
    %v1599 = vsel %vm1215, %v1594, %v1598
    %v1601 = vshrl.u32 %v1143, 16
    %v1603 = vrot.slane %v1601, 4
    %v1604 = vshll.u32 %v1143, 16
    %v1606 = vrot.slane %v1604, 5
    %v1607 = vor.u32 %v1603, %v1606
    %v1608 = vrot.slane %v1607, 4
    %v1610 = vshll.u32 %v1144, 16
    %v1612 = vrot.slane %v1610, 5
    %v1613 = vsel %vm1215, %v1608, %v1612
    %v1614 = vshrl.u32 %v1144, 16
    %v1616 = vrot.slane %v1614, 4
    %v1617 = vor.u32 %v1616, %v1612
    %v1618 = vrot.slane %v1617, 4
    %v1620 = vshll.u32 %v1145, 16
    %v1622 = vrot.slane %v1620, 5
    %v1623 = vsel %vm1215, %v1618, %v1622
    %v1625 = vshrl.u32 %v1146, 16
    %v1627 = vrot.slane %v1625, 4
    %v1628 = vshll.u32 %v1146, 16
    %v1630 = vrot.slane %v1628, 5
    %v1631 = vor.u32 %v1627, %v1630
    %v1632 = vrot.slane %v1631, 4
    %v1634 = vshll.u32 %v1147, 16
    %v1636 = vrot.slane %v1634, 5
    %v1637 = vsel %vm1215, %v1632, %v1636
    %v1638 = vshrl.u32 %v1147, 16
    %v1640 = vrot.slane %v1638, 4
    %v1641 = vor.u32 %v1640, %v1636
    %v1642 = vrot.slane %v1641, 4
    %v1644 = vshll.u32 %v1148, 16
    %v1646 = vrot.slane %v1644, 5
    %v1647 = vsel %vm1215, %v1642, %v1646
    %v1649 = vshrl.u32 %v1149, 16
    %v1651 = vrot.slane %v1649, 4
    %v1652 = vshll.u32 %v1149, 16
    %v1654 = vrot.slane %v1652, 5
    %v1655 = vor.u32 %v1651, %v1654
    %v1656 = vrot.slane %v1655, 4
    %v1658 = vshll.u32 %v1150, 16
    %v1660 = vrot.slane %v1658, 5
    %v1661 = vsel %vm1215, %v1656, %v1660
    %v1662 = vshrl.u32 %v1150, 16
    %v1664 = vrot.slane %v1662, 4
    %v1665 = vor.u32 %v1664, %v1660
    %v1666 = vrot.slane %v1665, 4
    %v1668 = vshll.u32 %v1151, 16
    %v1670 = vrot.slane %v1668, 5
    %v1671 = vsel %vm1215, %v1666, %v1670
    %v1673 = vshrl.u32 %v1152, 16
    %v1675 = vrot.slane %v1673, 4
    %v1676 = vshll.u32 %v1152, 16
    %v1678 = vrot.slane %v1676, 5
    %v1679 = vor.u32 %v1675, %v1678
    %v1680 = vrot.slane %v1679, 4
    %v1682 = vshll.u32 %v1153, 16
    %v1684 = vrot.slane %v1682, 5
    %v1685 = vsel %vm1215, %v1680, %v1684
    %v1686 = vshrl.u32 %v1153, 16
    %v1688 = vrot.slane %v1686, 4
    %v1689 = vor.u32 %v1688, %v1684
    %v1690 = vrot.slane %v1689, 4
    %v1692 = vshll.u32 %v1154, 16
    %v1694 = vrot.slane %v1692, 5
    %v1695 = vsel %vm1215, %v1690, %v1694
    %v1697 = vshrl.u32 %v1155, 16
    %v1699 = vrot.slane %v1697, 4
    %v1700 = vshll.u32 %v1155, 16
    %v1702 = vrot.slane %v1700, 5
    %v1703 = vor.u32 %v1699, %v1702
    %v1704 = vrot.slane %v1703, 4
    %v1706 = vshll.u32 %v1156, 16
    %v1708 = vrot.slane %v1706, 5
    %v1709 = vsel %vm1215, %v1704, %v1708
    %v1710 = vshrl.u32 %v1156, 16
    %v1712 = vrot.slane %v1710, 4
    %v1713 = vor.u32 %v1712, %v1708
    %v1714 = vrot.slane %v1713, 4
    %v1716 = vshll.u32 %v1157, 16
    %v1718 = vrot.slane %v1716, 5
    %v1719 = vsel %vm1215, %v1714, %v1718
    %v1721 = vshrl.u32 %v1158, 16
    %v1723 = vrot.slane %v1721, 4
    %v1724 = vshll.u32 %v1158, 16
    %v1726 = vrot.slane %v1724, 5
    %v1727 = vor.u32 %v1723, %v1726
    %v1728 = vrot.slane %v1727, 4
    %v1730 = vshll.u32 %v1159, 16
    %v1732 = vrot.slane %v1730, 5
    %v1733 = vsel %vm1215, %v1728, %v1732
    %v1734 = vshrl.u32 %v1159, 16
    %v1736 = vrot.slane %v1734, 4
    %v1737 = vor.u32 %v1736, %v1732
    %v1738 = vrot.slane %v1737, 4
    %v1740 = vshll.u32 %v1160, 16
    %v1742 = vrot.slane %v1740, 5
    %v1743 = vsel %vm1215, %v1738, %v1742
    %v1745 = vshrl.u32 %v1161, 16
    %v1747 = vrot.slane %v1745, 4
    %v1748 = vshll.u32 %v1161, 16
    %v1750 = vrot.slane %v1748, 5
    %v1751 = vor.u32 %v1747, %v1750
    %v1752 = vrot.slane %v1751, 4
    %v1754 = vshll.u32 %v1162, 16
    %v1756 = vrot.slane %v1754, 5
    %v1757 = vsel %vm1215, %v1752, %v1756
    %v1758 = vshrl.u32 %v1162, 16
    %v1760 = vrot.slane %v1758, 4
    %v1761 = vor.u32 %v1760, %v1756
    %v1762 = vrot.slane %v1761, 4
    %v1764 = vshll.u32 %v1163, 16
    %v1766 = vrot.slane %v1764, 5
    %v1767 = vsel %vm1215, %v1762, %v1766
    %v1769 = vshrl.u32 %v1164, 16
    %v1771 = vrot.slane %v1769, 4
    %v1772 = vshll.u32 %v1164, 16
    %v1774 = vrot.slane %v1772, 5
    %v1775 = vor.u32 %v1771, %v1774
    %v1776 = vrot.slane %v1775, 4
    %v1778 = vshll.u32 %v1165, 16
    %v1780 = vrot.slane %v1778, 5
    %v1781 = vsel %vm1215, %v1776, %v1780
    %v1782 = vshrl.u32 %v1165, 16
    %v1784 = vrot.slane %v1782, 4
    %v1785 = vor.u32 %v1784, %v1780
    %v1786 = vrot.slane %v1785, 4
    %v1788 = vshll.u32 %v1166, 16
    %v1790 = vrot.slane %v1788, 5
    %v1791 = vsel %vm1215, %v1786, %v1790
    %v1793 = vshrl.u32 %v1167, 16
    %v1795 = vrot.slane %v1793, 4
    %v1796 = vshll.u32 %v1167, 16
    %v1798 = vrot.slane %v1796, 5
    %v1799 = vor.u32 %v1795, %v1798
    %v1800 = vrot.slane %v1799, 4
    %v1802 = vshll.u32 %v1168, 16
    %v1804 = vrot.slane %v1802, 5
    %v1805 = vsel %vm1215, %v1800, %v1804
    %v1806 = vshrl.u32 %v1168, 16
    %v1808 = vrot.slane %v1806, 4
    %v1809 = vor.u32 %v1808, %v1804
    %v1810 = vrot.slane %v1809, 4
    %v1812 = vshll.u32 %v1169, 16
    %v1814 = vrot.slane %v1812, 5
    %v1815 = vsel %vm1215, %v1810, %v1814
    %v1817 = vshrl.u32 %v1170, 16
    %v1819 = vrot.slane %v1817, 4
    %v1820 = vshll.u32 %v1170, 16
    %v1822 = vrot.slane %v1820, 5
    %v1823 = vor.u32 %v1819, %v1822
    %v1824 = vrot.slane %v1823, 4
    %v1826 = vshll.u32 %v1171, 16
    %v1828 = vrot.slane %v1826, 5
    %v1829 = vsel %vm1215, %v1824, %v1828
    %v1830 = vshrl.u32 %v1171, 16
    %v1832 = vrot.slane %v1830, 4
    %v1833 = vor.u32 %v1832, %v1828
    %v1834 = vrot.slane %v1833, 4
    %v1836 = vshll.u32 %v1172, 16
    %v1838 = vrot.slane %v1836, 5
    %v1839 = vsel %vm1215, %v1834, %v1838
    %v1841 = vshrl.u32 %v1173, 16
    %v1843 = vrot.slane %v1841, 4
    %v1844 = vshll.u32 %v1173, 16
    %v1846 = vrot.slane %v1844, 5
    %v1847 = vor.u32 %v1843, %v1846
    %v1848 = vrot.slane %v1847, 4
    %v1850 = vshll.u32 %v1174, 16
    %v1852 = vrot.slane %v1850, 5
    %v1853 = vsel %vm1215, %v1848, %v1852
    %v1854 = vshrl.u32 %v1174, 16
    %v1856 = vrot.slane %v1854, 4
    %v1857 = vor.u32 %v1856, %v1852
    %v1858 = vrot.slane %v1857, 4
    %v1860 = vshll.u32 %v1175, 16
    %v1862 = vrot.slane %v1860, 5
    %v1863 = vsel %vm1215, %v1858, %v1862
    %v1865 = vshrl.u32 %v1176, 16
    %v1867 = vrot.slane %v1865, 4
    %v1868 = vshll.u32 %v1176, 16
    %v1870 = vrot.slane %v1868, 5
    %v1871 = vor.u32 %v1867, %v1870
    %v1872 = vrot.slane %v1871, 4
    %v1874 = vshll.u32 %v1177, 16
    %v1876 = vrot.slane %v1874, 5
    %v1877 = vsel %vm1215, %v1872, %v1876
    %v1878 = vshrl.u32 %v1177, 16
    %v1880 = vrot.slane %v1878, 4
    %v1881 = vor.u32 %v1880, %v1876
    %v1882 = vrot.slane %v1881, 4
    %v1884 = vshll.u32 %v1178, 16
    %v1886 = vrot.slane %v1884, 5
    %v1887 = vsel %vm1215, %v1882, %v1886
    %v1889 = vshrl.u32 %v1179, 16
    %v1891 = vrot.slane %v1889, 4
    %v1892 = vshll.u32 %v1179, 16
    %v1894 = vrot.slane %v1892, 5
    %v1895 = vor.u32 %v1891, %v1894
    %v1896 = vrot.slane %v1895, 4
    %v1898 = vshll.u32 %v1180, 16
    %v1900 = vrot.slane %v1898, 5
    %v1901 = vsel %vm1215, %v1896, %v1900
    %v1902 = vshrl.u32 %v1180, 16
    %v1904 = vrot.slane %v1902, 4
    %v1905 = vor.u32 %v1904, %v1900
    %v1906 = vrot.slane %v1905, 4
    %v1908 = vshll.u32 %v1181, 16
    %v1910 = vrot.slane %v1908, 5
    %v1911 = vsel %vm1215, %v1906, %v1910
    %v1913 = vshrl.u32 %v1182, 16
    %v1915 = vrot.slane %v1913, 4
    %v1916 = vshll.u32 %v1182, 16
    %v1918 = vrot.slane %v1916, 5
    %v1919 = vor.u32 %v1915, %v1918
    %v1920 = vrot.slane %v1919, 4
    %v1922 = vshll.u32 %v1183, 16
    %v1924 = vrot.slane %v1922, 5
    %v1925 = vsel %vm1215, %v1920, %v1924
    %v1926 = vshrl.u32 %v1183, 16
    %v1928 = vrot.slane %v1926, 4
    %v1929 = vor.u32 %v1928, %v1924
    %v1930 = vrot.slane %v1929, 4
    %v1932 = vshll.u32 %v1184, 16
    %v1934 = vrot.slane %v1932, 5
    %v1935 = vsel %vm1215, %v1930, %v1934
    %v1937 = vshrl.u32 %v1185, 16
    %v1939 = vrot.slane %v1937, 4
    %v1940 = vshll.u32 %v1185, 16
    %v1942 = vrot.slane %v1940, 5
    %v1943 = vor.u32 %v1939, %v1942
    %v1944 = vrot.slane %v1943, 4
    %v1946 = vshll.u32 %v1186, 16
    %v1948 = vrot.slane %v1946, 5
    %v1949 = vsel %vm1215, %v1944, %v1948
    %v1950 = vshrl.u32 %v1186, 16
    %v1952 = vrot.slane %v1950, 4
    %v1953 = vor.u32 %v1952, %v1948
    %v1954 = vrot.slane %v1953, 4
    %v1956 = vshll.u32 %v1187, 16
    %v1958 = vrot.slane %v1956, 5
    %v1959 = vsel %vm1215, %v1954, %v1958
    %v1961 = vshrl.u32 %v1188, 16
    %v1963 = vrot.slane %v1961, 4
    %v1964 = vshll.u32 %v1188, 16
    %v1966 = vrot.slane %v1964, 5
    %v1967 = vor.u32 %v1963, %v1966
    %v1968 = vrot.slane %v1967, 4
    %v1970 = vshll.u32 %v1189, 16
    %v1972 = vrot.slane %v1970, 5
    %v1973 = vsel %vm1215, %v1968, %v1972
    %v1974 = vshrl.u32 %v1189, 16
    %v1976 = vrot.slane %v1974, 4
    %v1977 = vor.u32 %v1976, %v1972
    %v1978 = vrot.slane %v1977, 4
    %v1980 = vshll.u32 %v1190, 16
    %v1982 = vrot.slane %v1980, 5
    %v1983 = vsel %vm1215, %v1978, %v1982
    %v1984 = vld [vmem:[#allocation6 + $0x40] sm:$0xf]
    %v1985 = vld [vmem:[#allocation6 + $0x44] sm:$0xf]
    %v1986 = vld [vmem:[#allocation6 + $0x48] sm:$0xf]
    %v1987 = vld [vmem:[#allocation6 + $0x4c] sm:$0xf]
    %v1988 = vld [vmem:[#allocation6 + $0x50] sm:$0xf]
    %v1989 = vld [vmem:[#allocation6 + $0x54] sm:$0xf]
    %v1990 = vld [vmem:[#allocation6 + $0x58] sm:$0xf]
    %v1991 = vld [vmem:[#allocation6 + $0x5c] sm:$0xf]
    %v1992 = vld [vmem:[#allocation6 + $0x60] sm:$0xf]
    %v1993 = vld [vmem:[#allocation6 + $0x64] sm:$0xf]
    %v1994 = vld [vmem:[#allocation6 + $0x68] sm:$0xf]
    %v1995 = vld [vmem:[#allocation6 + $0x6c] sm:$0xf]
    %v1996 = vld [vmem:[#allocation6 + $0x70] sm:$0xf]
    %v1997 = vld [vmem:[#allocation6 + $0x74] sm:$0xf]
    %v1998 = vld [vmem:[#allocation6 + $0x78] sm:$0xf]
    %v1999 = vld [vmem:[#allocation6 + $0x7c] sm:$0xf]
    %v2000 = vunpack.c.l.b16 %v1229
    %v2001 = vunpack.c.l.b16 %v1239
    %v2002 = vunpack.c.l.b16 %v1253
    %v2003 = vunpack.c.l.b16 %v1263
    %v2004 = vunpack.c.l.b16 %v1277
    %v2005 = vunpack.c.l.b16 %v1287
    %v2006 = vunpack.c.l.b16 %v1301
    %v2007 = vunpack.c.l.b16 %v1311
    %v2008 = vunpack.c.l.b16 %v1325
    %v2009 = vunpack.c.l.b16 %v1335
    %v2010 = vunpack.c.l.b16 %v1349
    %v2011 = vunpack.c.l.b16 %v1359
    %v2012 = vunpack.c.l.b16 %v1373
    %v2013 = vunpack.c.l.b16 %v1383
    %v2014 = vunpack.c.l.b16 %v1397
    %v2015 = vunpack.c.l.b16 %v1407
    %v2016 = vunpack.c.l.b16 %v1421
    %v2017 = vunpack.c.l.b16 %v1431
    %v2018 = vunpack.c.l.b16 %v1445
    %v2019 = vunpack.c.l.b16 %v1455
    %v2020 = vunpack.c.l.b16 %v1469
    %v2021 = vunpack.c.l.b16 %v1479
    %v2022 = vunpack.c.l.b16 %v1493
    %v2023 = vunpack.c.l.b16 %v1503
    %v2024 = vunpack.c.l.b16 %v1517
    %v2025 = vunpack.c.l.b16 %v1527
    %v2026 = vunpack.c.l.b16 %v1541
    %v2027 = vunpack.c.l.b16 %v1551
    %v2028 = vunpack.c.l.b16 %v1565
    %v2029 = vunpack.c.l.b16 %v1575
    %v2030 = vunpack.c.l.b16 %v1589
    %v2031 = vunpack.c.l.b16 %v1599
    %v2032 = vunpack.c.l.b16 %v1613
    %v2033 = vunpack.c.l.b16 %v1623
    %v2034 = vunpack.c.l.b16 %v1637
    %v2035 = vunpack.c.l.b16 %v1647
    %v2036 = vunpack.c.l.b16 %v1661
    %v2037 = vunpack.c.l.b16 %v1671
    %v2038 = vunpack.c.l.b16 %v1685
    %v2039 = vunpack.c.l.b16 %v1695
    %v2040 = vunpack.c.l.b16 %v1709
    %v2041 = vunpack.c.l.b16 %v1719
    %v2042 = vunpack.c.l.b16 %v1733
    %v2043 = vunpack.c.l.b16 %v1743
    %v2044 = vunpack.c.l.b16 %v1757
    %v2045 = vunpack.c.l.b16 %v1767
    %v2046 = vunpack.c.l.b16 %v1781
    %v2047 = vunpack.c.l.b16 %v1791
    %v2048 = vunpack.c.l.b16 %v1805
    %v2049 = vunpack.c.l.b16 %v1815
    %v2050 = vunpack.c.l.b16 %v1829
    %v2051 = vunpack.c.l.b16 %v1839
    %v2052 = vunpack.c.l.b16 %v1853
    %v2053 = vunpack.c.l.b16 %v1863
    %v2054 = vunpack.c.l.b16 %v1877
    %v2055 = vunpack.c.l.b16 %v1887
    %v2056 = vunpack.c.l.b16 %v1901
    %v2057 = vunpack.c.l.b16 %v1911
    %v2058 = vunpack.c.l.b16 %v1925
    %v2059 = vunpack.c.l.b16 %v1935
    %v2060 = vunpack.c.l.b16 %v1949
    %v2061 = vunpack.c.l.b16 %v1959
    %v2062 = vunpack.c.l.b16 %v1973
    %v2063 = vunpack.c.l.b16 %v1983
    %v2064 = vpack.c.b16 %v2001, %v2000
    %v2065 = vpack.c.b16 %v2003, %v2002
    %v2066 = vpack.c.b16 %v2005, %v2004
    %v2067 = vpack.c.b16 %v2007, %v2006
    %v2068 = vpack.c.b16 %v2009, %v2008
    %v2069 = vpack.c.b16 %v2011, %v2010
    %v2070 = vpack.c.b16 %v2013, %v2012
    %v2071 = vpack.c.b16 %v2015, %v2014
    %v2072 = vpack.c.b16 %v2017, %v2016
    %v2073 = vpack.c.b16 %v2019, %v2018
    %v2074 = vpack.c.b16 %v2021, %v2020
    %v2075 = vpack.c.b16 %v2023, %v2022
    %v2076 = vpack.c.b16 %v2025, %v2024
    %v2077 = vpack.c.b16 %v2027, %v2026
    %v2078 = vpack.c.b16 %v2029, %v2028
    %v2079 = vpack.c.b16 %v2031, %v2030
    %v2080 = vpack.c.b16 %v2033, %v2032
    %v2081 = vpack.c.b16 %v2035, %v2034
    %v2082 = vpack.c.b16 %v2037, %v2036
    %v2083 = vpack.c.b16 %v2039, %v2038
    %v2084 = vpack.c.b16 %v2041, %v2040
    %v2085 = vpack.c.b16 %v2043, %v2042
    %v2086 = vpack.c.b16 %v2045, %v2044
    %v2087 = vpack.c.b16 %v2047, %v2046
    %v2088 = vpack.c.b16 %v2049, %v2048
    %v2089 = vpack.c.b16 %v2051, %v2050
    %v2090 = vpack.c.b16 %v2053, %v2052
    %v2091 = vpack.c.b16 %v2055, %v2054
    %v2092 = vpack.c.b16 %v2057, %v2056
    %v2093 = vpack.c.b16 %v2059, %v2058
    %v2094 = vpack.c.b16 %v2061, %v2060
    %v2095 = vpack.c.b16 %v2063, %v2062
    %v2144 = vunpack.c.l.b16 %v1984
    %v2145 = vunpack.c.l.b16 %v1985
    %v2146 = vunpack.c.l.b16 %v1986
    %v2147 = vunpack.c.l.b16 %v1987
    %v2148 = vunpack.c.l.b16 %v1988
    %v2149 = vunpack.c.l.b16 %v1989
    %v2150 = vunpack.c.l.b16 %v1990
    %v2151 = vunpack.c.l.b16 %v1991
    %v2152 = vunpack.c.l.b16 %v1992
    %v2153 = vunpack.c.l.b16 %v1993
    %v2154 = vunpack.c.l.b16 %v1994
    %v2155 = vunpack.c.l.b16 %v1995
    %v2156 = vunpack.c.l.b16 %v1996
    %v2157 = vunpack.c.l.b16 %v1997
    %v2158 = vunpack.c.l.b16 %v1998
    %v2159 = vunpack.c.l.b16 %v1999
    %v2160 = vpack.c.b16 %v2145, %v2144
    %v2161 = vpack.c.b16 %v2147, %v2146
    %v2162 = vpack.c.b16 %v2149, %v2148
    %v2163 = vpack.c.b16 %v2151, %v2150
    %v2164 = vpack.c.b16 %v2153, %v2152
    %v2165 = vpack.c.b16 %v2155, %v2154
    %v2166 = vpack.c.b16 %v2157, %v2156
    %v2167 = vpack.c.b16 %v2159, %v2158
    %2176 = vmatprep.subr.bf16.mxu0 0
    %2177 = vmatpush1.bf16.msra.mxu0 %v2160
    %2178 = vmatprep.subr.bf16.mxu0 0
    %2179 = vmatpush1.bf16.msra.mxu0 %v2161
    %2180 = vmatprep.subr.bf16.mxu0 0
    %2181 = vmatpush1.bf16.msra.mxu0 %v2162
    %2182 = vmatprep.subr.bf16.mxu0 0
    %2183 = vmatpush1.bf16.msra.mxu0 %v2163
    %2184 = vmatprep.subr.bf16.mxu0 0
    %2185 = vmatpush1.bf16.msra.mxu0 %v2164
    %2186 = vmatprep.subr.bf16.mxu0 0
    %2187 = vmatpush1.bf16.msra.mxu0 %v2165
    %2188 = vmatprep.subr.bf16.mxu0 0
    %2189 = vmatpush1.bf16.msra.mxu0 %v2166
    %2190 = vmatprep.subr.bf16.mxu0 0
    %2191 = vmatpush1.bf16.msra.mxu0 %v2167
    %2192 = vmatprep.subr.bf16.mxu0 0
    %2193 = vmatpush1.bf16.msra.mxu0 0
    %2194 = vmatprep.subr.bf16.mxu0 0
    %2195 = vmatpush1.bf16.msra.mxu0 0
    %2196 = vmatprep.subr.bf16.mxu0 0
    %2197 = vmatpush1.bf16.msra.mxu0 0
    %2198 = vmatprep.subr.bf16.mxu0 0
    %2199 = vmatpush1.bf16.msra.mxu0 0
    %2200 = vmatprep.subr.bf16.mxu0 0
    %2201 = vmatpush1.bf16.msra.mxu0 0
    %2202 = vmatprep.subr.bf16.mxu0 0
    %2203 = vmatpush1.bf16.msra.mxu0 0
    %2204 = vmatprep.subr.bf16.mxu0 0
    %2205 = vmatpush1.bf16.msra.mxu0 0
    %2206 = vmatprep.subr.bf16.mxu0 0
    %2207 = vmatpush1.bf16.msra.mxu0 0
    %2208 = vmatprep.mubr.bf16.mxu0 0
    %2209 = vmatmul.mubr.bf16.gmra.mrb[0].mxu0 %v2064
    %v2210 = vpop.f32.mrb[0].mxu0
    %v2211 = vadd.f32 0.0, %v2210
    %v2212 = vpop.f32.mrb[0].mxu0
    %v2213 = vpop.f32.mrb[0].mxu0
    %v2214 = vadd.f32 0.0, %v2213
    %v2215 = vpop.f32.mrb[0].mxu0
    %2216 = vmatprep.mubr.bf16.mxu0 0
    %2217 = vmatmul.mubr.bf16.gmra.mrb[0].mxu0 %v2065
    %v2218 = vpop.f32.mrb[0].mxu0
    %v2219 = vadd.f32 0.0, %v2218
    %v2220 = vpop.f32.mrb[0].mxu0
    %v2221 = vpop.f32.mrb[0].mxu0
    %v2222 = vadd.f32 0.0, %v2221
    %v2223 = vpop.f32.mrb[0].mxu0
    %2224 = vmatprep.mubr.bf16.mxu0 0
    %2225 = vmatmul.mubr.bf16.gmra.mrb[0].mxu0 %v2066
    %v2226 = vpop.f32.mrb[0].mxu0
    %v2227 = vadd.f32 0.0, %v2226
    %v2228 = vpop.f32.mrb[0].mxu0
    %v2229 = vpop.f32.mrb[0].mxu0
    %v2230 = vadd.f32 0.0, %v2229
    %v2231 = vpop.f32.mrb[0].mxu0
    %2232 = vmatprep.mubr.bf16.mxu0 0
    %2233 = vmatmul.mubr.bf16.gmra.mrb[0].mxu0 %v2067
    %v2234 = vpop.f32.mrb[0].mxu0
    %v2235 = vadd.f32 0.0, %v2234
    %v2236 = vpop.f32.mrb[0].mxu0
    %v2237 = vpop.f32.mrb[0].mxu0
    %v2238 = vadd.f32 0.0, %v2237
    %v2239 = vpop.f32.mrb[0].mxu0
    %2240 = vmatprep.mubr.bf16.mxu0 0
    %2241 = vmatmul.mubr.bf16.gmra.mrb[0].mxu0 %v2068
    %v2242 = vpop.f32.mrb[0].mxu0
    %v2243 = vadd.f32 0.0, %v2242
    %v2244 = vpop.f32.mrb[0].mxu0
    %v2245 = vpop.f32.mrb[0].mxu0
    %v2246 = vadd.f32 0.0, %v2245
    %v2247 = vpop.f32.mrb[0].mxu0
    %2248 = vmatprep.mubr.bf16.mxu0 0
    %2249 = vmatmul.mubr.bf16.gmra.mrb[0].mxu0 %v2069
    %v2250 = vpop.f32.mrb[0].mxu0
    %v2251 = vadd.f32 0.0, %v2250
    %v2252 = vpop.f32.mrb[0].mxu0
    %v2253 = vpop.f32.mrb[0].mxu0
    %v2254 = vadd.f32 0.0, %v2253
    %v2255 = vpop.f32.mrb[0].mxu0
    %2256 = vmatprep.mubr.bf16.mxu0 0
    %2257 = vmatmul.mubr.bf16.gmra.mrb[0].mxu0 %v2070
    %v2258 = vpop.f32.mrb[0].mxu0
    %v2259 = vadd.f32 0.0, %v2258
    %v2260 = vpop.f32.mrb[0].mxu0
    %v2261 = vpop.f32.mrb[0].mxu0
    %v2262 = vadd.f32 0.0, %v2261
    %v2263 = vpop.f32.mrb[0].mxu0
    %2264 = vmatprep.mubr.bf16.mxu0 0
    %2265 = vmatmul.mubr.bf16.gmra.mrb[0].mxu0 %v2071
    %v2266 = vpop.f32.mrb[0].mxu0
    %v2267 = vadd.f32 0.0, %v2266
    %v2268 = vpop.f32.mrb[0].mxu0
    %v2269 = vpop.f32.mrb[0].mxu0
    %v2270 = vadd.f32 0.0, %v2269
    %v2271 = vpop.f32.mrb[0].mxu0
    %2272 = vmatprep.mubr.bf16.mxu0 0
    %2273 = vmatmul.mubr.bf16.gmra.mrb[0].mxu0 %v2072
    %v2274 = vpop.f32.mrb[0].mxu0
    %v2275 = vadd.f32 0.0, %v2274
    %v2276 = vpop.f32.mrb[0].mxu0
    %v2277 = vpop.f32.mrb[0].mxu0
    %v2278 = vadd.f32 0.0, %v2277
    %v2279 = vpop.f32.mrb[0].mxu0
    %2280 = vmatprep.mubr.bf16.mxu0 0
    %2281 = vmatmul.mubr.bf16.gmra.mrb[0].mxu0 %v2073
    %v2282 = vpop.f32.mrb[0].mxu0
    %v2283 = vadd.f32 0.0, %v2282
    %v2284 = vpop.f32.mrb[0].mxu0
    %v2285 = vpop.f32.mrb[0].mxu0
    %v2286 = vadd.f32 0.0, %v2285
    %v2287 = vpop.f32.mrb[0].mxu0
    %2288 = vmatprep.mubr.bf16.mxu0 0
    %2289 = vmatmul.mubr.bf16.gmra.mrb[0].mxu0 %v2074
    %v2290 = vpop.f32.mrb[0].mxu0
    %v2291 = vadd.f32 0.0, %v2290
    %v2292 = vpop.f32.mrb[0].mxu0
    %v2293 = vpop.f32.mrb[0].mxu0
    %v2294 = vadd.f32 0.0, %v2293
    %v2295 = vpop.f32.mrb[0].mxu0
    %2296 = vmatprep.mubr.bf16.mxu0 0
    %2297 = vmatmul.mubr.bf16.gmra.mrb[0].mxu0 %v2075
    %v2298 = vpop.f32.mrb[0].mxu0
    %v2299 = vadd.f32 0.0, %v2298
    %v2300 = vpop.f32.mrb[0].mxu0
    %v2301 = vpop.f32.mrb[0].mxu0
    %v2302 = vadd.f32 0.0, %v2301
    %v2303 = vpop.f32.mrb[0].mxu0
    %2304 = vmatprep.mubr.bf16.mxu0 0
    %2305 = vmatmul.mubr.bf16.gmra.mrb[0].mxu0 %v2076
    %v2306 = vpop.f32.mrb[0].mxu0
    %v2307 = vadd.f32 0.0, %v2306
    %v2308 = vpop.f32.mrb[0].mxu0
    %v2309 = vpop.f32.mrb[0].mxu0
    %v2310 = vadd.f32 0.0, %v2309
    %v2311 = vpop.f32.mrb[0].mxu0
    %2312 = vmatprep.mubr.bf16.mxu0 0
    %2313 = vmatmul.mubr.bf16.gmra.mrb[0].mxu0 %v2077
    %v2314 = vpop.f32.mrb[0].mxu0
    %v2315 = vadd.f32 0.0, %v2314
    %v2316 = vpop.f32.mrb[0].mxu0
    %v2317 = vpop.f32.mrb[0].mxu0
    %v2318 = vadd.f32 0.0, %v2317
    %v2319 = vpop.f32.mrb[0].mxu0
    %2320 = vmatprep.mubr.bf16.mxu0 0
    %2321 = vmatmul.mubr.bf16.gmra.mrb[0].mxu0 %v2078
    %v2322 = vpop.f32.mrb[0].mxu0
    %v2323 = vadd.f32 0.0, %v2322
    %v2324 = vpop.f32.mrb[0].mxu0
    %v2325 = vpop.f32.mrb[0].mxu0
    %v2326 = vadd.f32 0.0, %v2325
    %v2327 = vpop.f32.mrb[0].mxu0
    %2328 = vmatprep.mubr.bf16.mxu0 0
    %2329 = vmatmul.mubr.bf16.gmra.mrb[0].mxu0 %v2079
    %v2330 = vpop.f32.mrb[0].mxu0
    %v2331 = vadd.f32 0.0, %v2330
    %v2332 = vpop.f32.mrb[0].mxu0
    %v2333 = vpop.f32.mrb[0].mxu0
    %v2334 = vadd.f32 0.0, %v2333
    %v2335 = vpop.f32.mrb[0].mxu0
    %2336 = vmatprep.mubr.bf16.mxu0 0
    %2337 = vmatmul.mubr.bf16.gmra.mrb[0].mxu0 %v2080
    %v2338 = vpop.f32.mrb[0].mxu0
    %v2339 = vadd.f32 0.0, %v2338
    %v2340 = vpop.f32.mrb[0].mxu0
    %v2341 = vpop.f32.mrb[0].mxu0
    %v2342 = vadd.f32 0.0, %v2341
    %v2343 = vpop.f32.mrb[0].mxu0
    %2344 = vmatprep.mubr.bf16.mxu0 0
    %2345 = vmatmul.mubr.bf16.gmra.mrb[0].mxu0 %v2081
    %v2346 = vpop.f32.mrb[0].mxu0
    %v2347 = vadd.f32 0.0, %v2346
    %v2348 = vpop.f32.mrb[0].mxu0
    %v2349 = vpop.f32.mrb[0].mxu0
    %v2350 = vadd.f32 0.0, %v2349
    %v2351 = vpop.f32.mrb[0].mxu0
    %2352 = vmatprep.mubr.bf16.mxu0 0
    %2353 = vmatmul.mubr.bf16.gmra.mrb[0].mxu0 %v2082
    %v2354 = vpop.f32.mrb[0].mxu0
    %v2355 = vadd.f32 0.0, %v2354
    %v2356 = vpop.f32.mrb[0].mxu0
    %v2357 = vpop.f32.mrb[0].mxu0
    %v2358 = vadd.f32 0.0, %v2357
    %v2359 = vpop.f32.mrb[0].mxu0
    %2360 = vmatprep.mubr.bf16.mxu0 0
    %2361 = vmatmul.mubr.bf16.gmra.mrb[0].mxu0 %v2083
    %v2362 = vpop.f32.mrb[0].mxu0
    %v2363 = vadd.f32 0.0, %v2362
    %v2364 = vpop.f32.mrb[0].mxu0
    %v2365 = vpop.f32.mrb[0].mxu0
    %v2366 = vadd.f32 0.0, %v2365
    %v2367 = vpop.f32.mrb[0].mxu0
    %2368 = vmatprep.mubr.bf16.mxu0 0
    %2369 = vmatmul.mubr.bf16.gmra.mrb[0].mxu0 %v2084
    %v2370 = vpop.f32.mrb[0].mxu0
    %v2371 = vadd.f32 0.0, %v2370
    %v2372 = vpop.f32.mrb[0].mxu0
    %v2373 = vpop.f32.mrb[0].mxu0
    %v2374 = vadd.f32 0.0, %v2373
    %v2375 = vpop.f32.mrb[0].mxu0
    %2376 = vmatprep.mubr.bf16.mxu0 0
    %2377 = vmatmul.mubr.bf16.gmra.mrb[0].mxu0 %v2085
    %v2378 = vpop.f32.mrb[0].mxu0
    %v2379 = vadd.f32 0.0, %v2378
    %v2380 = vpop.f32.mrb[0].mxu0
    %v2381 = vpop.f32.mrb[0].mxu0
    %v2382 = vadd.f32 0.0, %v2381
    %v2383 = vpop.f32.mrb[0].mxu0
    %2384 = vmatprep.mubr.bf16.mxu0 0
    %2385 = vmatmul.mubr.bf16.gmra.mrb[0].mxu0 %v2086
    %v2386 = vpop.f32.mrb[0].mxu0
    %v2387 = vadd.f32 0.0, %v2386
    %v2388 = vpop.f32.mrb[0].mxu0
    %v2389 = vpop.f32.mrb[0].mxu0
    %v2390 = vadd.f32 0.0, %v2389
    %v2391 = vpop.f32.mrb[0].mxu0
    %2392 = vmatprep.mubr.bf16.mxu0 0
    %2393 = vmatmul.mubr.bf16.gmra.mrb[0].mxu0 %v2087
    %v2394 = vpop.f32.mrb[0].mxu0
    %v2395 = vadd.f32 0.0, %v2394
    %v2396 = vpop.f32.mrb[0].mxu0
    %v2397 = vpop.f32.mrb[0].mxu0
    %v2398 = vadd.f32 0.0, %v2397
    %v2399 = vpop.f32.mrb[0].mxu0
    %2400 = vmatprep.mubr.bf16.mxu0 0
    %2401 = vmatmul.mubr.bf16.gmra.mrb[0].mxu0 %v2088
    %v2402 = vpop.f32.mrb[0].mxu0
    %v2403 = vadd.f32 0.0, %v2402
    %v2404 = vpop.f32.mrb[0].mxu0
    %v2405 = vpop.f32.mrb[0].mxu0
    %v2406 = vadd.f32 0.0, %v2405
    %v2407 = vpop.f32.mrb[0].mxu0
    %2408 = vmatprep.mubr.bf16.mxu0 0
    %2409 = vmatmul.mubr.bf16.gmra.mrb[0].mxu0 %v2089
    %v2410 = vpop.f32.mrb[0].mxu0
    %v2411 = vadd.f32 0.0, %v2410
    %v2412 = vpop.f32.mrb[0].mxu0
    %v2413 = vpop.f32.mrb[0].mxu0
    %v2414 = vadd.f32 0.0, %v2413
    %v2415 = vpop.f32.mrb[0].mxu0
    %2416 = vmatprep.mubr.bf16.mxu0 0
    %2417 = vmatmul.mubr.bf16.gmra.mrb[0].mxu0 %v2090
    %v2418 = vpop.f32.mrb[0].mxu0
    %v2419 = vadd.f32 0.0, %v2418
    %v2420 = vpop.f32.mrb[0].mxu0
    %v2421 = vpop.f32.mrb[0].mxu0
    %v2422 = vadd.f32 0.0, %v2421
    %v2423 = vpop.f32.mrb[0].mxu0
    %2424 = vmatprep.mubr.bf16.mxu0 0
    %2425 = vmatmul.mubr.bf16.gmra.mrb[0].mxu0 %v2091
    %v2426 = vpop.f32.mrb[0].mxu0
    %v2427 = vadd.f32 0.0, %v2426
    %v2428 = vpop.f32.mrb[0].mxu0
    %v2429 = vpop.f32.mrb[0].mxu0
    %v2430 = vadd.f32 0.0, %v2429
    %v2431 = vpop.f32.mrb[0].mxu0
    %2432 = vmatprep.mubr.bf16.mxu0 0
    %2433 = vmatmul.mubr.bf16.gmra.mrb[0].mxu0 %v2092
    %v2434 = vpop.f32.mrb[0].mxu0
    %v2435 = vadd.f32 0.0, %v2434
    %v2436 = vpop.f32.mrb[0].mxu0
    %v2437 = vpop.f32.mrb[0].mxu0
    %v2438 = vadd.f32 0.0, %v2437
    %v2439 = vpop.f32.mrb[0].mxu0
    %2440 = vmatprep.mubr.bf16.mxu0 0
    %2441 = vmatmul.mubr.bf16.gmra.mrb[0].mxu0 %v2093
    %v2442 = vpop.f32.mrb[0].mxu0
    %v2443 = vadd.f32 0.0, %v2442
    %v2444 = vpop.f32.mrb[0].mxu0
    %v2445 = vpop.f32.mrb[0].mxu0
    %v2446 = vadd.f32 0.0, %v2445
    %v2447 = vpop.f32.mrb[0].mxu0
    %2448 = vmatprep.mubr.bf16.mxu0 0
    %2449 = vmatmul.mubr.bf16.gmra.mrb[0].mxu0 %v2094
    %v2450 = vpop.f32.mrb[0].mxu0
    %v2451 = vadd.f32 0.0, %v2450
    %v2452 = vpop.f32.mrb[0].mxu0
    %v2453 = vpop.f32.mrb[0].mxu0
    %v2454 = vadd.f32 0.0, %v2453
    %v2455 = vpop.f32.mrb[0].mxu0
    %2456 = vmatprep.mubr.bf16.mxu0 0
    %2457 = vmatmul.mubr.bf16.gmra.mrb[0].mxu0 %v2095
    %v2458 = vpop.f32.mrb[0].mxu0
    %v2459 = vadd.f32 0.0, %v2458
    %v2460 = vpop.f32.mrb[0].mxu0
    %v2461 = vpop.f32.mrb[0].mxu0
    %v2462 = vadd.f32 0.0, %v2461
    %v2463 = vpop.f32.mrb[0].mxu0
    %2464 = vdwg.mxu0
    %v2529 = vunpack.c.l.b16 %v1089
    %v2530 = vunpack.c.l.b16 %v1090
    %v2531 = vunpack.c.l.b16 %v1092
    %v2532 = vunpack.c.l.b16 %v1093
    %v2533 = vunpack.c.l.b16 %v1095
    %v2534 = vunpack.c.l.b16 %v1096
    %v2535 = vunpack.c.l.b16 %v1098
    %v2536 = vunpack.c.l.b16 %v1099
    %v2537 = vunpack.c.l.b16 %v1101
    %v2538 = vunpack.c.l.b16 %v1102
    %v2539 = vunpack.c.l.b16 %v1104
    %v2540 = vunpack.c.l.b16 %v1105
    %v2541 = vunpack.c.l.b16 %v1107
    %v2542 = vunpack.c.l.b16 %v1108
    %v2543 = vunpack.c.l.b16 %v1110
    %v2544 = vunpack.c.l.b16 %v1111
    %v2545 = vunpack.c.l.b16 %v1113
    %v2546 = vunpack.c.l.b16 %v1114
    %v2547 = vunpack.c.l.b16 %v1116
    %v2548 = vunpack.c.l.b16 %v1117
    %v2549 = vunpack.c.l.b16 %v1119
    %v2550 = vunpack.c.l.b16 %v1120
    %v2551 = vunpack.c.l.b16 %v1122
    %v2552 = vunpack.c.l.b16 %v1123
    %v2553 = vunpack.c.l.b16 %v1125
    %v2554 = vunpack.c.l.b16 %v1126
    %v2555 = vunpack.c.l.b16 %v1128
    %v2556 = vunpack.c.l.b16 %v1129
    %v2557 = vunpack.c.l.b16 %v1131
    %v2558 = vunpack.c.l.b16 %v1132
    %v2559 = vunpack.c.l.b16 %v1134
    %v2560 = vunpack.c.l.b16 %v1135
    %v2561 = vunpack.c.l.b16 %v1143
    %v2562 = vunpack.c.l.b16 %v1144
    %v2563 = vunpack.c.l.b16 %v1146
    %v2564 = vunpack.c.l.b16 %v1147
    %v2565 = vunpack.c.l.b16 %v1149
    %v2566 = vunpack.c.l.b16 %v1150
    %v2567 = vunpack.c.l.b16 %v1152
    %v2568 = vunpack.c.l.b16 %v1153
    %v2569 = vunpack.c.l.b16 %v1155
    %v2570 = vunpack.c.l.b16 %v1156
    %v2571 = vunpack.c.l.b16 %v1158
    %v2572 = vunpack.c.l.b16 %v1159
    %v2573 = vunpack.c.l.b16 %v1161
    %v2574 = vunpack.c.l.b16 %v1162
    %v2575 = vunpack.c.l.b16 %v1164
    %v2576 = vunpack.c.l.b16 %v1165
    %v2577 = vunpack.c.l.b16 %v1167
    %v2578 = vunpack.c.l.b16 %v1168
    %v2579 = vunpack.c.l.b16 %v1170
    %v2580 = vunpack.c.l.b16 %v1171
    %v2581 = vunpack.c.l.b16 %v1173
    %v2582 = vunpack.c.l.b16 %v1174
    %v2583 = vunpack.c.l.b16 %v1176
    %v2584 = vunpack.c.l.b16 %v1177
    %v2585 = vunpack.c.l.b16 %v1179
    %v2586 = vunpack.c.l.b16 %v1180
    %v2587 = vunpack.c.l.b16 %v1182
    %v2588 = vunpack.c.l.b16 %v1183
    %v2589 = vunpack.c.l.b16 %v1185
    %v2590 = vunpack.c.l.b16 %v1186
    %v2591 = vunpack.c.l.b16 %v1188
    %v2592 = vunpack.c.l.b16 %v1189
    %v2593 = vpack.c.b16 %v2530, %v2529
    %v2594 = vpack.c.b16 %v2532, %v2531
    %v2595 = vpack.c.b16 %v2534, %v2533
    %v2596 = vpack.c.b16 %v2536, %v2535
    %v2597 = vpack.c.b16 %v2538, %v2537
    %v2598 = vpack.c.b16 %v2540, %v2539
    %v2599 = vpack.c.b16 %v2542, %v2541
    %v2600 = vpack.c.b16 %v2544, %v2543
    %v2601 = vpack.c.b16 %v2546, %v2545
    %v2602 = vpack.c.b16 %v2548, %v2547
    %v2603 = vpack.c.b16 %v2550, %v2549
    %v2604 = vpack.c.b16 %v2552, %v2551
    %v2605 = vpack.c.b16 %v2554, %v2553
    %v2606 = vpack.c.b16 %v2556, %v2555
    %v2607 = vpack.c.b16 %v2558, %v2557
    %v2608 = vpack.c.b16 %v2560, %v2559
    %v2609 = vpack.c.b16 %v2562, %v2561
    %v2610 = vpack.c.b16 %v2564, %v2563
    %v2611 = vpack.c.b16 %v2566, %v2565
    %v2612 = vpack.c.b16 %v2568, %v2567
    %v2613 = vpack.c.b16 %v2570, %v2569
    %v2614 = vpack.c.b16 %v2572, %v2571
    %v2615 = vpack.c.b16 %v2574, %v2573
    %v2616 = vpack.c.b16 %v2576, %v2575
    %v2617 = vpack.c.b16 %v2578, %v2577
    %v2618 = vpack.c.b16 %v2580, %v2579
    %v2619 = vpack.c.b16 %v2582, %v2581
    %v2620 = vpack.c.b16 %v2584, %v2583
    %v2621 = vpack.c.b16 %v2586, %v2585
    %v2622 = vpack.c.b16 %v2588, %v2587
    %v2623 = vpack.c.b16 %v2590, %v2589
    %v2624 = vpack.c.b16 %v2592, %v2591
    %v2673 = vunpack.c.l.b16 %v1197
    %v2674 = vunpack.c.l.b16 %v1198
    %v2675 = vunpack.c.l.b16 %v1199
    %v2676 = vunpack.c.l.b16 %v1200
    %v2677 = vunpack.c.l.b16 %v1201
    %v2678 = vunpack.c.l.b16 %v1202
    %v2679 = vunpack.c.l.b16 %v1203
    %v2680 = vunpack.c.l.b16 %v1204
    %v2681 = vunpack.c.l.b16 %v1205
    %v2682 = vunpack.c.l.b16 %v1206
    %v2683 = vunpack.c.l.b16 %v1207
    %v2684 = vunpack.c.l.b16 %v1208
    %v2685 = vunpack.c.l.b16 %v1209
    %v2686 = vunpack.c.l.b16 %v1210
    %v2687 = vunpack.c.l.b16 %v1211
    %v2688 = vunpack.c.l.b16 %v1212
    %v2689 = vpack.c.b16 %v2674, %v2673
    %v2690 = vpack.c.b16 %v2676, %v2675
    %v2691 = vpack.c.b16 %v2678, %v2677
    %v2692 = vpack.c.b16 %v2680, %v2679
    %v2693 = vpack.c.b16 %v2682, %v2681
    %v2694 = vpack.c.b16 %v2684, %v2683
    %v2695 = vpack.c.b16 %v2686, %v2685
    %v2696 = vpack.c.b16 %v2688, %v2687
    %2705 = vmatprep.subr.bf16.mxu0 0
    %2706 = vmatpush1.bf16.msra.mxu0 %v2689
    %2707 = vmatprep.subr.bf16.mxu0 0
    %2708 = vmatpush1.bf16.msra.mxu0 %v2690
    %2709 = vmatprep.subr.bf16.mxu0 0
    %2710 = vmatpush1.bf16.msra.mxu0 %v2691
    %2711 = vmatprep.subr.bf16.mxu0 0
    %2712 = vmatpush1.bf16.msra.mxu0 %v2692
    %2713 = vmatprep.subr.bf16.mxu0 0
    %2714 = vmatpush1.bf16.msra.mxu0 %v2693
    %2715 = vmatprep.subr.bf16.mxu0 0
    %2716 = vmatpush1.bf16.msra.mxu0 %v2694
    %2717 = vmatprep.subr.bf16.mxu0 0
    %2718 = vmatpush1.bf16.msra.mxu0 %v2695
    %2719 = vmatprep.subr.bf16.mxu0 0
    %2720 = vmatpush1.bf16.msra.mxu0 %v2696
    %2721 = vmatprep.subr.bf16.mxu0 0
    %2722 = vmatpush1.bf16.msra.mxu0 0
    %2723 = vmatprep.subr.bf16.mxu0 0
    %2724 = vmatpush1.bf16.msra.mxu0 0
    %2725 = vmatprep.subr.bf16.mxu0 0
    %2726 = vmatpush1.bf16.msra.mxu0 0
    %2727 = vmatprep.subr.bf16.mxu0 0
    %2728 = vmatpush1.bf16.msra.mxu0 0
    %2729 = vmatprep.subr.bf16.mxu0 0
    %2730 = vmatpush1.bf16.msra.mxu0 0
    %2731 = vmatprep.subr.bf16.mxu0 0
    %2732 = vmatpush1.bf16.msra.mxu0 0
    %2733 = vmatprep.subr.bf16.mxu0 0
    %2734 = vmatpush1.bf16.msra.mxu0 0
    %2735 = vmatprep.subr.bf16.mxu0 0
    %2736 = vmatpush1.bf16.msra.mxu0 0
    %2737 = vmatprep.mubr.bf16.mxu0 0
    %2738 = vmatmul.mubr.bf16.gmra.mrb[0].mxu0 %v2593
    %v2739 = vpop.f32.mrb[0].mxu0
    %v2740 = vadd.f32 %v2211, %v2739
    %v2741 = vpop.f32.mrb[0].mxu0
    %v2742 = vpop.f32.mrb[0].mxu0
    %v2743 = vadd.f32 %v2214, %v2742
    %v2744 = vpop.f32.mrb[0].mxu0
    %2745 = vmatprep.mubr.bf16.mxu0 0
    %2746 = vmatmul.mubr.bf16.gmra.mrb[0].mxu0 %v2594
    %v2747 = vpop.f32.mrb[0].mxu0
    %v2748 = vadd.f32 %v2219, %v2747
    %v2749 = vpop.f32.mrb[0].mxu0
    %v2750 = vpop.f32.mrb[0].mxu0
    %v2751 = vadd.f32 %v2222, %v2750
    %v2752 = vpop.f32.mrb[0].mxu0
    %2753 = vmatprep.mubr.bf16.mxu0 0
    %2754 = vmatmul.mubr.bf16.gmra.mrb[0].mxu0 %v2595
    %v2755 = vpop.f32.mrb[0].mxu0
    %v2756 = vadd.f32 %v2227, %v2755
    %v2757 = vpop.f32.mrb[0].mxu0
    %v2758 = vpop.f32.mrb[0].mxu0
    %v2759 = vadd.f32 %v2230, %v2758
    %v2760 = vpop.f32.mrb[0].mxu0
    %2761 = vmatprep.mubr.bf16.mxu0 0
    %2762 = vmatmul.mubr.bf16.gmra.mrb[0].mxu0 %v2596
    %v2763 = vpop.f32.mrb[0].mxu0
    %v2764 = vadd.f32 %v2235, %v2763
    %v2765 = vpop.f32.mrb[0].mxu0
    %v2766 = vpop.f32.mrb[0].mxu0
    %v2767 = vadd.f32 %v2238, %v2766
    %v2768 = vpop.f32.mrb[0].mxu0
    %2769 = vmatprep.mubr.bf16.mxu0 0
    %2770 = vmatmul.mubr.bf16.gmra.mrb[0].mxu0 %v2597
    %v2771 = vpop.f32.mrb[0].mxu0
    %v2772 = vadd.f32 %v2243, %v2771
    %v2773 = vpop.f32.mrb[0].mxu0
    %v2774 = vpop.f32.mrb[0].mxu0
    %v2775 = vadd.f32 %v2246, %v2774
    %v2776 = vpop.f32.mrb[0].mxu0
    %2777 = vmatprep.mubr.bf16.mxu0 0
    %2778 = vmatmul.mubr.bf16.gmra.mrb[0].mxu0 %v2598
    %v2779 = vpop.f32.mrb[0].mxu0
    %v2780 = vadd.f32 %v2251, %v2779
    %v2781 = vpop.f32.mrb[0].mxu0
    %v2782 = vpop.f32.mrb[0].mxu0
    %v2783 = vadd.f32 %v2254, %v2782
    %v2784 = vpop.f32.mrb[0].mxu0
    %2785 = vmatprep.mubr.bf16.mxu0 0
    %2786 = vmatmul.mubr.bf16.gmra.mrb[0].mxu0 %v2599
    %v2787 = vpop.f32.mrb[0].mxu0
    %v2788 = vadd.f32 %v2259, %v2787
    %v2789 = vpop.f32.mrb[0].mxu0
    %v2790 = vpop.f32.mrb[0].mxu0
    %v2791 = vadd.f32 %v2262, %v2790
    %v2792 = vpop.f32.mrb[0].mxu0
    %2793 = vmatprep.mubr.bf16.mxu0 0
    %2794 = vmatmul.mubr.bf16.gmra.mrb[0].mxu0 %v2600
    %v2795 = vpop.f32.mrb[0].mxu0
    %v2796 = vadd.f32 %v2267, %v2795
    %v2797 = vpop.f32.mrb[0].mxu0
    %v2798 = vpop.f32.mrb[0].mxu0
    %v2799 = vadd.f32 %v2270, %v2798
    %v2800 = vpop.f32.mrb[0].mxu0
    %2801 = vmatprep.mubr.bf16.mxu0 0
    %2802 = vmatmul.mubr.bf16.gmra.mrb[0].mxu0 %v2601
    %v2803 = vpop.f32.mrb[0].mxu0
    %v2804 = vadd.f32 %v2275, %v2803
    %v2805 = vpop.f32.mrb[0].mxu0
    %v2806 = vpop.f32.mrb[0].mxu0
    %v2807 = vadd.f32 %v2278, %v2806
    %v2808 = vpop.f32.mrb[0].mxu0
    %2809 = vmatprep.mubr.bf16.mxu0 0
    %2810 = vmatmul.mubr.bf16.gmra.mrb[0].mxu0 %v2602
    %v2811 = vpop.f32.mrb[0].mxu0
    %v2812 = vadd.f32 %v2283, %v2811
    %v2813 = vpop.f32.mrb[0].mxu0
    %v2814 = vpop.f32.mrb[0].mxu0
    %v2815 = vadd.f32 %v2286, %v2814
    %v2816 = vpop.f32.mrb[0].mxu0
    %2817 = vmatprep.mubr.bf16.mxu0 0
    %2818 = vmatmul.mubr.bf16.gmra.mrb[0].mxu0 %v2603
    %v2819 = vpop.f32.mrb[0].mxu0
    %v2820 = vadd.f32 %v2291, %v2819
    %v2821 = vpop.f32.mrb[0].mxu0
    %v2822 = vpop.f32.mrb[0].mxu0
    %v2823 = vadd.f32 %v2294, %v2822
    %v2824 = vpop.f32.mrb[0].mxu0
    %2825 = vmatprep.mubr.bf16.mxu0 0
    %2826 = vmatmul.mubr.bf16.gmra.mrb[0].mxu0 %v2604
    %v2827 = vpop.f32.mrb[0].mxu0
    %v2828 = vadd.f32 %v2299, %v2827
    %v2829 = vpop.f32.mrb[0].mxu0
    %v2830 = vpop.f32.mrb[0].mxu0
    %v2831 = vadd.f32 %v2302, %v2830
    %v2832 = vpop.f32.mrb[0].mxu0
    %2833 = vmatprep.mubr.bf16.mxu0 0
    %2834 = vmatmul.mubr.bf16.gmra.mrb[0].mxu0 %v2605
    %v2835 = vpop.f32.mrb[0].mxu0
    %v2836 = vadd.f32 %v2307, %v2835
    %v2837 = vpop.f32.mrb[0].mxu0
    %v2838 = vpop.f32.mrb[0].mxu0
    %v2839 = vadd.f32 %v2310, %v2838
    %v2840 = vpop.f32.mrb[0].mxu0
    %2841 = vmatprep.mubr.bf16.mxu0 0
    %2842 = vmatmul.mubr.bf16.gmra.mrb[0].mxu0 %v2606
    %v2843 = vpop.f32.mrb[0].mxu0
    %v2844 = vadd.f32 %v2315, %v2843
    %v2845 = vpop.f32.mrb[0].mxu0
    %v2846 = vpop.f32.mrb[0].mxu0
    %v2847 = vadd.f32 %v2318, %v2846
    %v2848 = vpop.f32.mrb[0].mxu0
    %2849 = vmatprep.mubr.bf16.mxu0 0
    %2850 = vmatmul.mubr.bf16.gmra.mrb[0].mxu0 %v2607
    %v2851 = vpop.f32.mrb[0].mxu0
    %v2852 = vadd.f32 %v2323, %v2851
    %v2853 = vpop.f32.mrb[0].mxu0
    %v2854 = vpop.f32.mrb[0].mxu0
    %v2855 = vadd.f32 %v2326, %v2854
    %v2856 = vpop.f32.mrb[0].mxu0
    %2857 = vmatprep.mubr.bf16.mxu0 0
    %2858 = vmatmul.mubr.bf16.gmra.mrb[0].mxu0 %v2608
    %v2859 = vpop.f32.mrb[0].mxu0
    %v2860 = vadd.f32 %v2331, %v2859
    %v2861 = vpop.f32.mrb[0].mxu0
    %v2862 = vpop.f32.mrb[0].mxu0
    %v2863 = vadd.f32 %v2334, %v2862
    %v2864 = vpop.f32.mrb[0].mxu0
    %2865 = vmatprep.mubr.bf16.mxu0 0
    %2866 = vmatmul.mubr.bf16.gmra.mrb[0].mxu0 %v2609
    %v2867 = vpop.f32.mrb[0].mxu0
    %v2868 = vadd.f32 %v2339, %v2867
    %v2869 = vpop.f32.mrb[0].mxu0
    %v2870 = vpop.f32.mrb[0].mxu0
    %v2871 = vadd.f32 %v2342, %v2870
    %v2872 = vpop.f32.mrb[0].mxu0
    %2873 = vmatprep.mubr.bf16.mxu0 0
    %2874 = vmatmul.mubr.bf16.gmra.mrb[0].mxu0 %v2610
    %v2875 = vpop.f32.mrb[0].mxu0
    %v2876 = vadd.f32 %v2347, %v2875
    %v2877 = vpop.f32.mrb[0].mxu0
    %v2878 = vpop.f32.mrb[0].mxu0
    %v2879 = vadd.f32 %v2350, %v2878
    %v2880 = vpop.f32.mrb[0].mxu0
    %2881 = vmatprep.mubr.bf16.mxu0 0
    %2882 = vmatmul.mubr.bf16.gmra.mrb[0].mxu0 %v2611
    %v2883 = vpop.f32.mrb[0].mxu0
    %v2884 = vadd.f32 %v2355, %v2883
    %v2885 = vpop.f32.mrb[0].mxu0
    %v2886 = vpop.f32.mrb[0].mxu0
    %v2887 = vadd.f32 %v2358, %v2886
    %v2888 = vpop.f32.mrb[0].mxu0
    %2889 = vmatprep.mubr.bf16.mxu0 0
    %2890 = vmatmul.mubr.bf16.gmra.mrb[0].mxu0 %v2612
    %v2891 = vpop.f32.mrb[0].mxu0
    %v2892 = vadd.f32 %v2363, %v2891
    %v2893 = vpop.f32.mrb[0].mxu0
    %v2894 = vpop.f32.mrb[0].mxu0
    %v2895 = vadd.f32 %v2366, %v2894
    %v2896 = vpop.f32.mrb[0].mxu0
    %2897 = vmatprep.mubr.bf16.mxu0 0
    %2898 = vmatmul.mubr.bf16.gmra.mrb[0].mxu0 %v2613
    %v2899 = vpop.f32.mrb[0].mxu0
    %v2900 = vadd.f32 %v2371, %v2899
    %v2901 = vpop.f32.mrb[0].mxu0
    %v2902 = vpop.f32.mrb[0].mxu0
    %v2903 = vadd.f32 %v2374, %v2902
    %v2904 = vpop.f32.mrb[0].mxu0
    %2905 = vmatprep.mubr.bf16.mxu0 0
    %2906 = vmatmul.mubr.bf16.gmra.mrb[0].mxu0 %v2614
    %v2907 = vpop.f32.mrb[0].mxu0
    %v2908 = vadd.f32 %v2379, %v2907
    %v2909 = vpop.f32.mrb[0].mxu0
    %v2910 = vpop.f32.mrb[0].mxu0
    %v2911 = vadd.f32 %v2382, %v2910
    %v2912 = vpop.f32.mrb[0].mxu0
    %2913 = vmatprep.mubr.bf16.mxu0 0
    %2914 = vmatmul.mubr.bf16.gmra.mrb[0].mxu0 %v2615
    %v2915 = vpop.f32.mrb[0].mxu0
    %v2916 = vadd.f32 %v2387, %v2915
    %v2917 = vpop.f32.mrb[0].mxu0
    %v2918 = vpop.f32.mrb[0].mxu0
    %v2919 = vadd.f32 %v2390, %v2918
    %v2920 = vpop.f32.mrb[0].mxu0
    %2921 = vmatprep.mubr.bf16.mxu0 0
    %2922 = vmatmul.mubr.bf16.gmra.mrb[0].mxu0 %v2616
    %v2923 = vpop.f32.mrb[0].mxu0
    %v2924 = vadd.f32 %v2395, %v2923
    %v2925 = vpop.f32.mrb[0].mxu0
    %v2926 = vpop.f32.mrb[0].mxu0
    %v2927 = vadd.f32 %v2398, %v2926
    %v2928 = vpop.f32.mrb[0].mxu0
    %2929 = vmatprep.mubr.bf16.mxu0 0
    %2930 = vmatmul.mubr.bf16.gmra.mrb[0].mxu0 %v2617
    %v2931 = vpop.f32.mrb[0].mxu0
    %v2932 = vadd.f32 %v2403, %v2931
    %v2933 = vpop.f32.mrb[0].mxu0
    %v2934 = vpop.f32.mrb[0].mxu0
    %v2935 = vadd.f32 %v2406, %v2934
    %v2936 = vpop.f32.mrb[0].mxu0
    %2937 = vmatprep.mubr.bf16.mxu0 0
    %2938 = vmatmul.mubr.bf16.gmra.mrb[0].mxu0 %v2618
    %v2939 = vpop.f32.mrb[0].mxu0
    %v2940 = vadd.f32 %v2411, %v2939
    %v2941 = vpop.f32.mrb[0].mxu0
    %v2942 = vpop.f32.mrb[0].mxu0
    %v2943 = vadd.f32 %v2414, %v2942
    %v2944 = vpop.f32.mrb[0].mxu0
    %2945 = vmatprep.mubr.bf16.mxu0 0
    %2946 = vmatmul.mubr.bf16.gmra.mrb[0].mxu0 %v2619
    %v2947 = vpop.f32.mrb[0].mxu0
    %v2948 = vadd.f32 %v2419, %v2947
    %v2949 = vpop.f32.mrb[0].mxu0
    %v2950 = vpop.f32.mrb[0].mxu0
    %v2951 = vadd.f32 %v2422, %v2950
    %v2952 = vpop.f32.mrb[0].mxu0
    %2953 = vmatprep.mubr.bf16.mxu0 0
    %2954 = vmatmul.mubr.bf16.gmra.mrb[0].mxu0 %v2620
    %v2955 = vpop.f32.mrb[0].mxu0
    %v2956 = vadd.f32 %v2427, %v2955
    %v2957 = vpop.f32.mrb[0].mxu0
    %v2958 = vpop.f32.mrb[0].mxu0
    %v2959 = vadd.f32 %v2430, %v2958
    %v2960 = vpop.f32.mrb[0].mxu0
    %2961 = vmatprep.mubr.bf16.mxu0 0
    %2962 = vmatmul.mubr.bf16.gmra.mrb[0].mxu0 %v2621
    %v2963 = vpop.f32.mrb[0].mxu0
    %v2964 = vadd.f32 %v2435, %v2963
    %v2965 = vpop.f32.mrb[0].mxu0
    %v2966 = vpop.f32.mrb[0].mxu0
    %v2967 = vadd.f32 %v2438, %v2966
    %v2968 = vpop.f32.mrb[0].mxu0
    %2969 = vmatprep.mubr.bf16.mxu0 0
    %2970 = vmatmul.mubr.bf16.gmra.mrb[0].mxu0 %v2622
    %v2971 = vpop.f32.mrb[0].mxu0
    %v2972 = vadd.f32 %v2443, %v2971
    %v2973 = vpop.f32.mrb[0].mxu0
    %v2974 = vpop.f32.mrb[0].mxu0
    %v2975 = vadd.f32 %v2446, %v2974
    %v2976 = vpop.f32.mrb[0].mxu0
    %2977 = vmatprep.mubr.bf16.mxu0 0
    %2978 = vmatmul.mubr.bf16.gmra.mrb[0].mxu0 %v2623
    %v2979 = vpop.f32.mrb[0].mxu0
    %v2980 = vadd.f32 %v2451, %v2979
    %v2981 = vpop.f32.mrb[0].mxu0
    %v2982 = vpop.f32.mrb[0].mxu0
    %v2983 = vadd.f32 %v2454, %v2982
    %v2984 = vpop.f32.mrb[0].mxu0
    %2985 = vmatprep.mubr.bf16.mxu0 0
    %2986 = vmatmul.mubr.bf16.gmra.mrb[0].mxu0 %v2624
    %v2987 = vpop.f32.mrb[0].mxu0
    %v2988 = vadd.f32 %v2459, %v2987
    %v2989 = vpop.f32.mrb[0].mxu0
    %v2990 = vpop.f32.mrb[0].mxu0
    %v2991 = vadd.f32 %v2462, %v2990
    %v2992 = vpop.f32.mrb[0].mxu0
    %2993 = vdwg.mxu0
    %vm3026 = vcmask 1042432
    %vm3027 = vcmask 1046532
    %vm3028 = vmor %vm3026, %vm3027
    %v3029 = vrot.slane %v1089, 5
    %v3030 = vrot.slane %v3029, 4
    %v3031 = vrot.slane %v1090, 5
    %v3032 = vsel %vm3028, %v3030, %v3031
    %v3033 = vrot.slane %v3031, 4
    %v3034 = vrot.slane %v1091, 5
    %v3035 = vsel %vm3028, %v3033, %v3034
    %v3036 = vrot.slane %v1092, 5
    %v3037 = vrot.slane %v3036, 4
    %v3038 = vrot.slane %v1093, 5
    %v3039 = vsel %vm3028, %v3037, %v3038
    %v3040 = vrot.slane %v3038, 4
    %v3041 = vrot.slane %v1094, 5
    %v3042 = vsel %vm3028, %v3040, %v3041
    %v3043 = vrot.slane %v1095, 5
    %v3044 = vrot.slane %v3043, 4
    %v3045 = vrot.slane %v1096, 5
    %v3046 = vsel %vm3028, %v3044, %v3045
    %v3047 = vrot.slane %v3045, 4
    %v3048 = vrot.slane %v1097, 5
    %v3049 = vsel %vm3028, %v3047, %v3048
    %v3050 = vrot.slane %v1098, 5
    %v3051 = vrot.slane %v3050, 4
    %v3052 = vrot.slane %v1099, 5
    %v3053 = vsel %vm3028, %v3051, %v3052
    %v3054 = vrot.slane %v3052, 4
    %v3055 = vrot.slane %v1100, 5
    %v3056 = vsel %vm3028, %v3054, %v3055
    %v3057 = vrot.slane %v1101, 5
    %v3058 = vrot.slane %v3057, 4
    %v3059 = vrot.slane %v1102, 5
    %v3060 = vsel %vm3028, %v3058, %v3059
    %v3061 = vrot.slane %v3059, 4
    %v3062 = vrot.slane %v1103, 5
    %v3063 = vsel %vm3028, %v3061, %v3062
    %v3064 = vrot.slane %v1104, 5
    %v3065 = vrot.slane %v3064, 4
    %v3066 = vrot.slane %v1105, 5
    %v3067 = vsel %vm3028, %v3065, %v3066
    %v3068 = vrot.slane %v3066, 4
    %v3069 = vrot.slane %v1106, 5
    %v3070 = vsel %vm3028, %v3068, %v3069
    %v3071 = vrot.slane %v1107, 5
    %v3072 = vrot.slane %v3071, 4
    %v3073 = vrot.slane %v1108, 5
    %v3074 = vsel %vm3028, %v3072, %v3073
    %v3075 = vrot.slane %v3073, 4
    %v3076 = vrot.slane %v1109, 5
    %v3077 = vsel %vm3028, %v3075, %v3076
    %v3078 = vrot.slane %v1110, 5
    %v3079 = vrot.slane %v3078, 4
    %v3080 = vrot.slane %v1111, 5
    %v3081 = vsel %vm3028, %v3079, %v3080
    %v3082 = vrot.slane %v3080, 4
    %v3083 = vrot.slane %v1112, 5
    %v3084 = vsel %vm3028, %v3082, %v3083
    %v3085 = vrot.slane %v1113, 5
    %v3086 = vrot.slane %v3085, 4
    %v3087 = vrot.slane %v1114, 5
    %v3088 = vsel %vm3028, %v3086, %v3087
    %v3089 = vrot.slane %v3087, 4
    %v3090 = vrot.slane %v1115, 5
    %v3091 = vsel %vm3028, %v3089, %v3090
    %v3092 = vrot.slane %v1116, 5
    %v3093 = vrot.slane %v3092, 4
    %v3094 = vrot.slane %v1117, 5
    %v3095 = vsel %vm3028, %v3093, %v3094
    %v3096 = vrot.slane %v3094, 4
    %v3097 = vrot.slane %v1118, 5
    %v3098 = vsel %vm3028, %v3096, %v3097
    %v3099 = vrot.slane %v1119, 5
    %v3100 = vrot.slane %v3099, 4
    %v3101 = vrot.slane %v1120, 5
    %v3102 = vsel %vm3028, %v3100, %v3101
    %v3103 = vrot.slane %v3101, 4
    %v3104 = vrot.slane %v1121, 5
    %v3105 = vsel %vm3028, %v3103, %v3104
    %v3106 = vrot.slane %v1122, 5
    %v3107 = vrot.slane %v3106, 4
    %v3108 = vrot.slane %v1123, 5
    %v3109 = vsel %vm3028, %v3107, %v3108
    %v3110 = vrot.slane %v3108, 4
    %v3111 = vrot.slane %v1124, 5
    %v3112 = vsel %vm3028, %v3110, %v3111
    %v3113 = vrot.slane %v1125, 5
    %v3114 = vrot.slane %v3113, 4
    %v3115 = vrot.slane %v1126, 5
    %v3116 = vsel %vm3028, %v3114, %v3115
    %v3117 = vrot.slane %v3115, 4
    %v3118 = vrot.slane %v1127, 5
    %v3119 = vsel %vm3028, %v3117, %v3118
    %v3120 = vrot.slane %v1128, 5
    %v3121 = vrot.slane %v3120, 4
    %v3122 = vrot.slane %v1129, 5
    %v3123 = vsel %vm3028, %v3121, %v3122
    %v3124 = vrot.slane %v3122, 4
    %v3125 = vrot.slane %v1130, 5
    %v3126 = vsel %vm3028, %v3124, %v3125
    %v3127 = vrot.slane %v1131, 5
    %v3128 = vrot.slane %v3127, 4
    %v3129 = vrot.slane %v1132, 5
    %v3130 = vsel %vm3028, %v3128, %v3129
    %v3131 = vrot.slane %v3129, 4
    %v3132 = vrot.slane %v1133, 5
    %v3133 = vsel %vm3028, %v3131, %v3132
    %v3134 = vrot.slane %v1134, 5
    %v3135 = vrot.slane %v3134, 4
    %v3136 = vrot.slane %v1135, 5
    %v3137 = vsel %vm3028, %v3135, %v3136
    %v3138 = vrot.slane %v3136, 4
    %v3139 = vrot.slane %v1136, 5
    %v3140 = vsel %vm3028, %v3138, %v3139
    %v3141 = vrot.slane %v1143, 5
    %v3142 = vrot.slane %v3141, 4
    %v3143 = vrot.slane %v1144, 5
    %v3144 = vsel %vm3028, %v3142, %v3143
    %v3145 = vrot.slane %v3143, 4
    %v3146 = vrot.slane %v1145, 5
    %v3147 = vsel %vm3028, %v3145, %v3146
    %v3148 = vrot.slane %v1146, 5
    %v3149 = vrot.slane %v3148, 4
    %v3150 = vrot.slane %v1147, 5
    %v3151 = vsel %vm3028, %v3149, %v3150
    %v3152 = vrot.slane %v3150, 4
    %v3153 = vrot.slane %v1148, 5
    %v3154 = vsel %vm3028, %v3152, %v3153
    %v3155 = vrot.slane %v1149, 5
    %v3156 = vrot.slane %v3155, 4
    %v3157 = vrot.slane %v1150, 5
    %v3158 = vsel %vm3028, %v3156, %v3157
    %v3159 = vrot.slane %v3157, 4
    %v3160 = vrot.slane %v1151, 5
    %v3161 = vsel %vm3028, %v3159, %v3160
    %v3162 = vrot.slane %v1152, 5
    %v3163 = vrot.slane %v3162, 4
    %v3164 = vrot.slane %v1153, 5
    %v3165 = vsel %vm3028, %v3163, %v3164
    %v3166 = vrot.slane %v3164, 4
    %v3167 = vrot.slane %v1154, 5
    %v3168 = vsel %vm3028, %v3166, %v3167
    %v3169 = vrot.slane %v1155, 5
    %v3170 = vrot.slane %v3169, 4
    %v3171 = vrot.slane %v1156, 5
    %v3172 = vsel %vm3028, %v3170, %v3171
    %v3173 = vrot.slane %v3171, 4
    %v3174 = vrot.slane %v1157, 5
    %v3175 = vsel %vm3028, %v3173, %v3174
    %v3176 = vrot.slane %v1158, 5
    %v3177 = vrot.slane %v3176, 4
    %v3178 = vrot.slane %v1159, 5
    %v3179 = vsel %vm3028, %v3177, %v3178
    %v3180 = vrot.slane %v3178, 4
    %v3181 = vrot.slane %v1160, 5
    %v3182 = vsel %vm3028, %v3180, %v3181
    %v3183 = vrot.slane %v1161, 5
    %v3184 = vrot.slane %v3183, 4
    %v3185 = vrot.slane %v1162, 5
    %v3186 = vsel %vm3028, %v3184, %v3185
    %v3187 = vrot.slane %v3185, 4
    %v3188 = vrot.slane %v1163, 5
    %v3189 = vsel %vm3028, %v3187, %v3188
    %v3190 = vrot.slane %v1164, 5
    %v3191 = vrot.slane %v3190, 4
    %v3192 = vrot.slane %v1165, 5
    %v3193 = vsel %vm3028, %v3191, %v3192
    %v3194 = vrot.slane %v3192, 4
    %v3195 = vrot.slane %v1166, 5
    %v3196 = vsel %vm3028, %v3194, %v3195
    %v3197 = vrot.slane %v1167, 5
    %v3198 = vrot.slane %v3197, 4
    %v3199 = vrot.slane %v1168, 5
    %v3200 = vsel %vm3028, %v3198, %v3199
    %v3201 = vrot.slane %v3199, 4
    %v3202 = vrot.slane %v1169, 5
    %v3203 = vsel %vm3028, %v3201, %v3202
    %v3204 = vrot.slane %v1170, 5
    %v3205 = vrot.slane %v3204, 4
    %v3206 = vrot.slane %v1171, 5
    %v3207 = vsel %vm3028, %v3205, %v3206
    %v3208 = vrot.slane %v3206, 4
    %v3209 = vrot.slane %v1172, 5
    %v3210 = vsel %vm3028, %v3208, %v3209
    %v3211 = vrot.slane %v1173, 5
    %v3212 = vrot.slane %v3211, 4
    %v3213 = vrot.slane %v1174, 5
    %v3214 = vsel %vm3028, %v3212, %v3213
    %v3215 = vrot.slane %v3213, 4
    %v3216 = vrot.slane %v1175, 5
    %v3217 = vsel %vm3028, %v3215, %v3216
    %v3218 = vrot.slane %v1176, 5
    %v3219 = vrot.slane %v3218, 4
    %v3220 = vrot.slane %v1177, 5
    %v3221 = vsel %vm3028, %v3219, %v3220
    %v3222 = vrot.slane %v3220, 4
    %v3223 = vrot.slane %v1178, 5
    %v3224 = vsel %vm3028, %v3222, %v3223
    %v3225 = vrot.slane %v1179, 5
    %v3226 = vrot.slane %v3225, 4
    %v3227 = vrot.slane %v1180, 5
    %v3228 = vsel %vm3028, %v3226, %v3227
    %v3229 = vrot.slane %v3227, 4
    %v3230 = vrot.slane %v1181, 5
    %v3231 = vsel %vm3028, %v3229, %v3230
    %v3232 = vrot.slane %v1182, 5
    %v3233 = vrot.slane %v3232, 4
    %v3234 = vrot.slane %v1183, 5
    %v3235 = vsel %vm3028, %v3233, %v3234
    %v3236 = vrot.slane %v3234, 4
    %v3237 = vrot.slane %v1184, 5
    %v3238 = vsel %vm3028, %v3236, %v3237
    %v3239 = vrot.slane %v1185, 5
    %v3240 = vrot.slane %v3239, 4
    %v3241 = vrot.slane %v1186, 5
    %v3242 = vsel %vm3028, %v3240, %v3241
    %v3243 = vrot.slane %v3241, 4
    %v3244 = vrot.slane %v1187, 5
    %v3245 = vsel %vm3028, %v3243, %v3244
    %v3246 = vrot.slane %v1188, 5
    %v3247 = vrot.slane %v3246, 4
    %v3248 = vrot.slane %v1189, 5
    %v3249 = vsel %vm3028, %v3247, %v3248
    %v3250 = vrot.slane %v3248, 4
    %v3251 = vrot.slane %v1190, 5
    %v3252 = vsel %vm3028, %v3250, %v3251
    %v3253 = vld [vmem:[#allocation6 + $0x80] sm:$0xf]
    %v3254 = vld [vmem:[#allocation6 + $0x84] sm:$0xf]
    %v3255 = vld [vmem:[#allocation6 + $0x88] sm:$0xf]
    %v3256 = vld [vmem:[#allocation6 + $0x8c] sm:$0xf]
    %v3257 = vld [vmem:[#allocation6 + $0x90] sm:$0xf]
    %v3258 = vld [vmem:[#allocation6 + $0x94] sm:$0xf]
    %v3259 = vld [vmem:[#allocation6 + $0x98] sm:$0xf]
    %v3260 = vld [vmem:[#allocation6 + $0x9c] sm:$0xf]
    %v3261 = vld [vmem:[#allocation6 + $0xa0] sm:$0xf]
    %v3262 = vld [vmem:[#allocation6 + $0xa4] sm:$0xf]
    %v3263 = vld [vmem:[#allocation6 + $0xa8] sm:$0xf]
    %v3264 = vld [vmem:[#allocation6 + $0xac] sm:$0xf]
    %v3265 = vld [vmem:[#allocation6 + $0xb0] sm:$0xf]
    %v3266 = vld [vmem:[#allocation6 + $0xb4] sm:$0xf]
    %v3267 = vld [vmem:[#allocation6 + $0xb8] sm:$0xf]
    %v3268 = vld [vmem:[#allocation6 + $0xbc] sm:$0xf]
    %v3269 = vunpack.c.l.b16 %v3032
    %v3270 = vunpack.c.l.b16 %v3035
    %v3271 = vunpack.c.l.b16 %v3039
    %v3272 = vunpack.c.l.b16 %v3042
    %v3273 = vunpack.c.l.b16 %v3046
    %v3274 = vunpack.c.l.b16 %v3049
    %v3275 = vunpack.c.l.b16 %v3053
    %v3276 = vunpack.c.l.b16 %v3056
    %v3277 = vunpack.c.l.b16 %v3060
    %v3278 = vunpack.c.l.b16 %v3063
    %v3279 = vunpack.c.l.b16 %v3067
    %v3280 = vunpack.c.l.b16 %v3070
    %v3281 = vunpack.c.l.b16 %v3074
    %v3282 = vunpack.c.l.b16 %v3077
    %v3283 = vunpack.c.l.b16 %v3081
    %v3284 = vunpack.c.l.b16 %v3084
    %v3285 = vunpack.c.l.b16 %v3088
    %v3286 = vunpack.c.l.b16 %v3091
    %v3287 = vunpack.c.l.b16 %v3095
    %v3288 = vunpack.c.l.b16 %v3098
    %v3289 = vunpack.c.l.b16 %v3102
    %v3290 = vunpack.c.l.b16 %v3105
    %v3291 = vunpack.c.l.b16 %v3109
    %v3292 = vunpack.c.l.b16 %v3112
    %v3293 = vunpack.c.l.b16 %v3116
    %v3294 = vunpack.c.l.b16 %v3119
    %v3295 = vunpack.c.l.b16 %v3123
    %v3296 = vunpack.c.l.b16 %v3126
    %v3297 = vunpack.c.l.b16 %v3130
    %v3298 = vunpack.c.l.b16 %v3133
    %v3299 = vunpack.c.l.b16 %v3137
    %v3300 = vunpack.c.l.b16 %v3140
    %v3301 = vunpack.c.l.b16 %v3144
    %v3302 = vunpack.c.l.b16 %v3147
    %v3303 = vunpack.c.l.b16 %v3151
    %v3304 = vunpack.c.l.b16 %v3154
    %v3305 = vunpack.c.l.b16 %v3158
    %v3306 = vunpack.c.l.b16 %v3161
    %v3307 = vunpack.c.l.b16 %v3165
    %v3308 = vunpack.c.l.b16 %v3168
    %v3309 = vunpack.c.l.b16 %v3172
    %v3310 = vunpack.c.l.b16 %v3175
    %v3311 = vunpack.c.l.b16 %v3179
    %v3312 = vunpack.c.l.b16 %v3182
    %v3313 = vunpack.c.l.b16 %v3186
    %v3314 = vunpack.c.l.b16 %v3189
    %v3315 = vunpack.c.l.b16 %v3193
    %v3316 = vunpack.c.l.b16 %v3196
    %v3317 = vunpack.c.l.b16 %v3200
    %v3318 = vunpack.c.l.b16 %v3203
    %v3319 = vunpack.c.l.b16 %v3207
    %v3320 = vunpack.c.l.b16 %v3210
    %v3321 = vunpack.c.l.b16 %v3214
    %v3322 = vunpack.c.l.b16 %v3217
    %v3323 = vunpack.c.l.b16 %v3221
    %v3324 = vunpack.c.l.b16 %v3224
    %v3325 = vunpack.c.l.b16 %v3228
    %v3326 = vunpack.c.l.b16 %v3231
    %v3327 = vunpack.c.l.b16 %v3235
    %v3328 = vunpack.c.l.b16 %v3238
    %v3329 = vunpack.c.l.b16 %v3242
    %v3330 = vunpack.c.l.b16 %v3245
    %v3331 = vunpack.c.l.b16 %v3249
    %v3332 = vunpack.c.l.b16 %v3252
    %v3333 = vpack.c.b16 %v3270, %v3269
    %v3334 = vpack.c.b16 %v3272, %v3271
    %v3335 = vpack.c.b16 %v3274, %v3273
    %v3336 = vpack.c.b16 %v3276, %v3275
    %v3337 = vpack.c.b16 %v3278, %v3277
    %v3338 = vpack.c.b16 %v3280, %v3279
    %v3339 = vpack.c.b16 %v3282, %v3281
    %v3340 = vpack.c.b16 %v3284, %v3283
    %v3341 = vpack.c.b16 %v3286, %v3285
    %v3342 = vpack.c.b16 %v3288, %v3287
    %v3343 = vpack.c.b16 %v3290, %v3289
    %v3344 = vpack.c.b16 %v3292, %v3291
    %v3345 = vpack.c.b16 %v3294, %v3293
    %v3346 = vpack.c.b16 %v3296, %v3295
    %v3347 = vpack.c.b16 %v3298, %v3297
    %v3348 = vpack.c.b16 %v3300, %v3299
    %v3349 = vpack.c.b16 %v3302, %v3301
    %v3350 = vpack.c.b16 %v3304, %v3303
    %v3351 = vpack.c.b16 %v3306, %v3305
    %v3352 = vpack.c.b16 %v3308, %v3307
    %v3353 = vpack.c.b16 %v3310, %v3309
    %v3354 = vpack.c.b16 %v3312, %v3311
    %v3355 = vpack.c.b16 %v3314, %v3313
    %v3356 = vpack.c.b16 %v3316, %v3315
    %v3357 = vpack.c.b16 %v3318, %v3317
    %v3358 = vpack.c.b16 %v3320, %v3319
    %v3359 = vpack.c.b16 %v3322, %v3321
    %v3360 = vpack.c.b16 %v3324, %v3323
    %v3361 = vpack.c.b16 %v3326, %v3325
    %v3362 = vpack.c.b16 %v3328, %v3327
    %v3363 = vpack.c.b16 %v3330, %v3329
    %v3364 = vpack.c.b16 %v3332, %v3331
    %v3413 = vunpack.c.l.b16 %v3253
    %v3414 = vunpack.c.l.b16 %v3254
    %v3415 = vunpack.c.l.b16 %v3255
    %v3416 = vunpack.c.l.b16 %v3256
    %v3417 = vunpack.c.l.b16 %v3257
    %v3418 = vunpack.c.l.b16 %v3258
    %v3419 = vunpack.c.l.b16 %v3259
    %v3420 = vunpack.c.l.b16 %v3260
    %v3421 = vunpack.c.l.b16 %v3261
    %v3422 = vunpack.c.l.b16 %v3262
    %v3423 = vunpack.c.l.b16 %v3263
    %v3424 = vunpack.c.l.b16 %v3264
    %v3425 = vunpack.c.l.b16 %v3265
    %v3426 = vunpack.c.l.b16 %v3266
    %v3427 = vunpack.c.l.b16 %v3267
    %v3428 = vunpack.c.l.b16 %v3268
    %v3429 = vpack.c.b16 %v3414, %v3413
    %v3430 = vpack.c.b16 %v3416, %v3415
    %v3431 = vpack.c.b16 %v3418, %v3417
    %v3432 = vpack.c.b16 %v3420, %v3419
    %v3433 = vpack.c.b16 %v3422, %v3421
    %v3434 = vpack.c.b16 %v3424, %v3423
    %v3435 = vpack.c.b16 %v3426, %v3425
    %v3436 = vpack.c.b16 %v3428, %v3427
    %3445 = vmatprep.subr.bf16.mxu0 0
    %3446 = vmatpush1.bf16.msra.mxu0 %v3429
    %3447 = vmatprep.subr.bf16.mxu0 0
    %3448 = vmatpush1.bf16.msra.mxu0 %v3430
    %3449 = vmatprep.subr.bf16.mxu0 0
    %3450 = vmatpush1.bf16.msra.mxu0 %v3431
    %3451 = vmatprep.subr.bf16.mxu0 0
    %3452 = vmatpush1.bf16.msra.mxu0 %v3432
    %3453 = vmatprep.subr.bf16.mxu0 0
    %3454 = vmatpush1.bf16.msra.mxu0 %v3433
    %3455 = vmatprep.subr.bf16.mxu0 0
    %3456 = vmatpush1.bf16.msra.mxu0 %v3434
    %3457 = vmatprep.subr.bf16.mxu0 0
    %3458 = vmatpush1.bf16.msra.mxu0 %v3435
    %3459 = vmatprep.subr.bf16.mxu0 0
    %3460 = vmatpush1.bf16.msra.mxu0 %v3436
    %3461 = vmatprep.subr.bf16.mxu0 0
    %3462 = vmatpush1.bf16.msra.mxu0 0
    %3463 = vmatprep.subr.bf16.mxu0 0
    %3464 = vmatpush1.bf16.msra.mxu0 0
    %3465 = vmatprep.subr.bf16.mxu0 0
    %3466 = vmatpush1.bf16.msra.mxu0 0
    %3467 = vmatprep.subr.bf16.mxu0 0
    %3468 = vmatpush1.bf16.msra.mxu0 0
    %3469 = vmatprep.subr.bf16.mxu0 0
    %3470 = vmatpush1.bf16.msra.mxu0 0
    %3471 = vmatprep.subr.bf16.mxu0 0
    %3472 = vmatpush1.bf16.msra.mxu0 0
    %3473 = vmatprep.subr.bf16.mxu0 0
    %3474 = vmatpush1.bf16.msra.mxu0 0
    %3475 = vmatprep.subr.bf16.mxu0 0
    %3476 = vmatpush1.bf16.msra.mxu0 0
    %3477 = vmatprep.mubr.bf16.mxu0 0
    %3478 = vmatmul.mubr.bf16.gmra.mrb[0].mxu0 %v3333
    %v3479 = vpop.f32.mrb[0].mxu0
    %v3480 = vadd.f32 0.0, %v3479
    %v3481 = vpop.f32.mrb[0].mxu0
    %v3482 = vpop.f32.mrb[0].mxu0
    %v3483 = vadd.f32 0.0, %v3482
    %v3484 = vpop.f32.mrb[0].mxu0
    %3485 = vmatprep.mubr.bf16.mxu0 0
    %3486 = vmatmul.mubr.bf16.gmra.mrb[0].mxu0 %v3334
    %v3487 = vpop.f32.mrb[0].mxu0
    %v3488 = vadd.f32 0.0, %v3487
    %v3489 = vpop.f32.mrb[0].mxu0
    %v3490 = vpop.f32.mrb[0].mxu0
    %v3491 = vadd.f32 0.0, %v3490
    %v3492 = vpop.f32.mrb[0].mxu0
    %3493 = vmatprep.mubr.bf16.mxu0 0
    %3494 = vmatmul.mubr.bf16.gmra.mrb[0].mxu0 %v3335
    %v3495 = vpop.f32.mrb[0].mxu0
    %v3496 = vadd.f32 0.0, %v3495
    %v3497 = vpop.f32.mrb[0].mxu0
    %v3498 = vpop.f32.mrb[0].mxu0
    %v3499 = vadd.f32 0.0, %v3498
    %v3500 = vpop.f32.mrb[0].mxu0
    %3501 = vmatprep.mubr.bf16.mxu0 0
    %3502 = vmatmul.mubr.bf16.gmra.mrb[0].mxu0 %v3336
    %v3503 = vpop.f32.mrb[0].mxu0
    %v3504 = vadd.f32 0.0, %v3503
    %v3505 = vpop.f32.mrb[0].mxu0
    %v3506 = vpop.f32.mrb[0].mxu0
    %v3507 = vadd.f32 0.0, %v3506
    %v3508 = vpop.f32.mrb[0].mxu0
    %3509 = vmatprep.mubr.bf16.mxu0 0
    %3510 = vmatmul.mubr.bf16.gmra.mrb[0].mxu0 %v3337
    %v3511 = vpop.f32.mrb[0].mxu0
    %v3512 = vadd.f32 0.0, %v3511
    %v3513 = vpop.f32.mrb[0].mxu0
    %v3514 = vpop.f32.mrb[0].mxu0
    %v3515 = vadd.f32 0.0, %v3514
    %v3516 = vpop.f32.mrb[0].mxu0
    %3517 = vmatprep.mubr.bf16.mxu0 0
    %3518 = vmatmul.mubr.bf16.gmra.mrb[0].mxu0 %v3338
    %v3519 = vpop.f32.mrb[0].mxu0
    %v3520 = vadd.f32 0.0, %v3519
    %v3521 = vpop.f32.mrb[0].mxu0
    %v3522 = vpop.f32.mrb[0].mxu0
    %v3523 = vadd.f32 0.0, %v3522
    %v3524 = vpop.f32.mrb[0].mxu0
    %3525 = vmatprep.mubr.bf16.mxu0 0
    %3526 = vmatmul.mubr.bf16.gmra.mrb[0].mxu0 %v3339
    %v3527 = vpop.f32.mrb[0].mxu0
    %v3528 = vadd.f32 0.0, %v3527
    %v3529 = vpop.f32.mrb[0].mxu0
    %v3530 = vpop.f32.mrb[0].mxu0
    %v3531 = vadd.f32 0.0, %v3530
    %v3532 = vpop.f32.mrb[0].mxu0
    %3533 = vmatprep.mubr.bf16.mxu0 0
    %3534 = vmatmul.mubr.bf16.gmra.mrb[0].mxu0 %v3340
    %v3535 = vpop.f32.mrb[0].mxu0
    %v3536 = vadd.f32 0.0, %v3535
    %v3537 = vpop.f32.mrb[0].mxu0
    %v3538 = vpop.f32.mrb[0].mxu0
    %v3539 = vadd.f32 0.0, %v3538
    %v3540 = vpop.f32.mrb[0].mxu0
    %3541 = vmatprep.mubr.bf16.mxu0 0
    %3542 = vmatmul.mubr.bf16.gmra.mrb[0].mxu0 %v3341
    %v3543 = vpop.f32.mrb[0].mxu0
    %v3544 = vadd.f32 0.0, %v3543
    %v3545 = vpop.f32.mrb[0].mxu0
    %v3546 = vpop.f32.mrb[0].mxu0
    %v3547 = vadd.f32 0.0, %v3546
    %v3548 = vpop.f32.mrb[0].mxu0
    %3549 = vmatprep.mubr.bf16.mxu0 0
    %3550 = vmatmul.mubr.bf16.gmra.mrb[0].mxu0 %v3342
    %v3551 = vpop.f32.mrb[0].mxu0
    %v3552 = vadd.f32 0.0, %v3551
    %v3553 = vpop.f32.mrb[0].mxu0
    %v3554 = vpop.f32.mrb[0].mxu0
    %v3555 = vadd.f32 0.0, %v3554
    %v3556 = vpop.f32.mrb[0].mxu0
    %3557 = vmatprep.mubr.bf16.mxu0 0
    %3558 = vmatmul.mubr.bf16.gmra.mrb[0].mxu0 %v3343
    %v3559 = vpop.f32.mrb[0].mxu0
    %v3560 = vadd.f32 0.0, %v3559
    %v3561 = vpop.f32.mrb[0].mxu0
    %v3562 = vpop.f32.mrb[0].mxu0
    %v3563 = vadd.f32 0.0, %v3562
    %v3564 = vpop.f32.mrb[0].mxu0
    %3565 = vmatprep.mubr.bf16.mxu0 0
    %3566 = vmatmul.mubr.bf16.gmra.mrb[0].mxu0 %v3344
    %v3567 = vpop.f32.mrb[0].mxu0
    %v3568 = vadd.f32 0.0, %v3567
    %v3569 = vpop.f32.mrb[0].mxu0
    %v3570 = vpop.f32.mrb[0].mxu0
    %v3571 = vadd.f32 0.0, %v3570
    %v3572 = vpop.f32.mrb[0].mxu0
    %3573 = vmatprep.mubr.bf16.mxu0 0
    %3574 = vmatmul.mubr.bf16.gmra.mrb[0].mxu0 %v3345
    %v3575 = vpop.f32.mrb[0].mxu0
    %v3576 = vadd.f32 0.0, %v3575
    %v3577 = vpop.f32.mrb[0].mxu0
    %v3578 = vpop.f32.mrb[0].mxu0
    %v3579 = vadd.f32 0.0, %v3578
    %v3580 = vpop.f32.mrb[0].mxu0
    %3581 = vmatprep.mubr.bf16.mxu0 0
    %3582 = vmatmul.mubr.bf16.gmra.mrb[0].mxu0 %v3346
    %v3583 = vpop.f32.mrb[0].mxu0
    %v3584 = vadd.f32 0.0, %v3583
    %v3585 = vpop.f32.mrb[0].mxu0
    %v3586 = vpop.f32.mrb[0].mxu0
    %v3587 = vadd.f32 0.0, %v3586
    %v3588 = vpop.f32.mrb[0].mxu0
    %3589 = vmatprep.mubr.bf16.mxu0 0
    %3590 = vmatmul.mubr.bf16.gmra.mrb[0].mxu0 %v3347
    %v3591 = vpop.f32.mrb[0].mxu0
    %v3592 = vadd.f32 0.0, %v3591
    %v3593 = vpop.f32.mrb[0].mxu0
    %v3594 = vpop.f32.mrb[0].mxu0
    %v3595 = vadd.f32 0.0, %v3594
    %v3596 = vpop.f32.mrb[0].mxu0
    %3597 = vmatprep.mubr.bf16.mxu0 0
    %3598 = vmatmul.mubr.bf16.gmra.mrb[0].mxu0 %v3348
    %v3599 = vpop.f32.mrb[0].mxu0
    %v3600 = vadd.f32 0.0, %v3599
    %v3601 = vpop.f32.mrb[0].mxu0
    %v3602 = vpop.f32.mrb[0].mxu0
    %v3603 = vadd.f32 0.0, %v3602
    %v3604 = vpop.f32.mrb[0].mxu0
    %3605 = vmatprep.mubr.bf16.mxu0 0
    %3606 = vmatmul.mubr.bf16.gmra.mrb[0].mxu0 %v3349
    %v3607 = vpop.f32.mrb[0].mxu0
    %v3608 = vadd.f32 0.0, %v3607
    %v3609 = vpop.f32.mrb[0].mxu0
    %v3610 = vpop.f32.mrb[0].mxu0
    %v3611 = vadd.f32 0.0, %v3610
    %v3612 = vpop.f32.mrb[0].mxu0
    %3613 = vmatprep.mubr.bf16.mxu0 0
    %3614 = vmatmul.mubr.bf16.gmra.mrb[0].mxu0 %v3350
    %v3615 = vpop.f32.mrb[0].mxu0
    %v3616 = vadd.f32 0.0, %v3615
    %v3617 = vpop.f32.mrb[0].mxu0
    %v3618 = vpop.f32.mrb[0].mxu0
    %v3619 = vadd.f32 0.0, %v3618
    %v3620 = vpop.f32.mrb[0].mxu0
    %3621 = vmatprep.mubr.bf16.mxu0 0
    %3622 = vmatmul.mubr.bf16.gmra.mrb[0].mxu0 %v3351
    %v3623 = vpop.f32.mrb[0].mxu0
    %v3624 = vadd.f32 0.0, %v3623
    %v3625 = vpop.f32.mrb[0].mxu0
    %v3626 = vpop.f32.mrb[0].mxu0
    %v3627 = vadd.f32 0.0, %v3626
    %v3628 = vpop.f32.mrb[0].mxu0
    %3629 = vmatprep.mubr.bf16.mxu0 0
    %3630 = vmatmul.mubr.bf16.gmra.mrb[0].mxu0 %v3352
    %v3631 = vpop.f32.mrb[0].mxu0
    %v3632 = vadd.f32 0.0, %v3631
    %v3633 = vpop.f32.mrb[0].mxu0
    %v3634 = vpop.f32.mrb[0].mxu0
    %v3635 = vadd.f32 0.0, %v3634
    %v3636 = vpop.f32.mrb[0].mxu0
    %3637 = vmatprep.mubr.bf16.mxu0 0
    %3638 = vmatmul.mubr.bf16.gmra.mrb[0].mxu0 %v3353
    %v3639 = vpop.f32.mrb[0].mxu0
    %v3640 = vadd.f32 0.0, %v3639
    %v3641 = vpop.f32.mrb[0].mxu0
    %v3642 = vpop.f32.mrb[0].mxu0
    %v3643 = vadd.f32 0.0, %v3642
    %v3644 = vpop.f32.mrb[0].mxu0
    %3645 = vmatprep.mubr.bf16.mxu0 0
    %3646 = vmatmul.mubr.bf16.gmra.mrb[0].mxu0 %v3354
    %v3647 = vpop.f32.mrb[0].mxu0
    %v3648 = vadd.f32 0.0, %v3647
    %v3649 = vpop.f32.mrb[0].mxu0
    %v3650 = vpop.f32.mrb[0].mxu0
    %v3651 = vadd.f32 0.0, %v3650
    %v3652 = vpop.f32.mrb[0].mxu0
    %3653 = vmatprep.mubr.bf16.mxu0 0
    %3654 = vmatmul.mubr.bf16.gmra.mrb[0].mxu0 %v3355
    %v3655 = vpop.f32.mrb[0].mxu0
    %v3656 = vadd.f32 0.0, %v3655
    %v3657 = vpop.f32.mrb[0].mxu0
    %v3658 = vpop.f32.mrb[0].mxu0
    %v3659 = vadd.f32 0.0, %v3658
    %v3660 = vpop.f32.mrb[0].mxu0
    %3661 = vmatprep.mubr.bf16.mxu0 0
    %3662 = vmatmul.mubr.bf16.gmra.mrb[0].mxu0 %v3356
    %v3663 = vpop.f32.mrb[0].mxu0
    %v3664 = vadd.f32 0.0, %v3663
    %v3665 = vpop.f32.mrb[0].mxu0
    %v3666 = vpop.f32.mrb[0].mxu0
    %v3667 = vadd.f32 0.0, %v3666
    %v3668 = vpop.f32.mrb[0].mxu0
    %3669 = vmatprep.mubr.bf16.mxu0 0
    %3670 = vmatmul.mubr.bf16.gmra.mrb[0].mxu0 %v3357
    %v3671 = vpop.f32.mrb[0].mxu0
    %v3672 = vadd.f32 0.0, %v3671
    %v3673 = vpop.f32.mrb[0].mxu0
    %v3674 = vpop.f32.mrb[0].mxu0
    %v3675 = vadd.f32 0.0, %v3674
    %v3676 = vpop.f32.mrb[0].mxu0
    %3677 = vmatprep.mubr.bf16.mxu0 0
    %3678 = vmatmul.mubr.bf16.gmra.mrb[0].mxu0 %v3358
    %v3679 = vpop.f32.mrb[0].mxu0
    %v3680 = vadd.f32 0.0, %v3679
    %v3681 = vpop.f32.mrb[0].mxu0
    %v3682 = vpop.f32.mrb[0].mxu0
    %v3683 = vadd.f32 0.0, %v3682
    %v3684 = vpop.f32.mrb[0].mxu0
    %3685 = vmatprep.mubr.bf16.mxu0 0
    %3686 = vmatmul.mubr.bf16.gmra.mrb[0].mxu0 %v3359
    %v3687 = vpop.f32.mrb[0].mxu0
    %v3688 = vadd.f32 0.0, %v3687
    %v3689 = vpop.f32.mrb[0].mxu0
    %v3690 = vpop.f32.mrb[0].mxu0
    %v3691 = vadd.f32 0.0, %v3690
    %v3692 = vpop.f32.mrb[0].mxu0
    %3693 = vmatprep.mubr.bf16.mxu0 0
    %3694 = vmatmul.mubr.bf16.gmra.mrb[0].mxu0 %v3360
    %v3695 = vpop.f32.mrb[0].mxu0
    %v3696 = vadd.f32 0.0, %v3695
    %v3697 = vpop.f32.mrb[0].mxu0
    %v3698 = vpop.f32.mrb[0].mxu0
    %v3699 = vadd.f32 0.0, %v3698
    %v3700 = vpop.f32.mrb[0].mxu0
    %3701 = vmatprep.mubr.bf16.mxu0 0
    %3702 = vmatmul.mubr.bf16.gmra.mrb[0].mxu0 %v3361
    %v3703 = vpop.f32.mrb[0].mxu0
    %v3704 = vadd.f32 0.0, %v3703
    %v3705 = vpop.f32.mrb[0].mxu0
    %v3706 = vpop.f32.mrb[0].mxu0
    %v3707 = vadd.f32 0.0, %v3706
    %v3708 = vpop.f32.mrb[0].mxu0
    %3709 = vmatprep.mubr.bf16.mxu0 0
    %3710 = vmatmul.mubr.bf16.gmra.mrb[0].mxu0 %v3362
    %v3711 = vpop.f32.mrb[0].mxu0
    %v3712 = vadd.f32 0.0, %v3711
    %v3713 = vpop.f32.mrb[0].mxu0
    %v3714 = vpop.f32.mrb[0].mxu0
    %v3715 = vadd.f32 0.0, %v3714
    %v3716 = vpop.f32.mrb[0].mxu0
    %3717 = vmatprep.mubr.bf16.mxu0 0
    %3718 = vmatmul.mubr.bf16.gmra.mrb[0].mxu0 %v3363
    %v3719 = vpop.f32.mrb[0].mxu0
    %v3720 = vadd.f32 0.0, %v3719
    %v3721 = vpop.f32.mrb[0].mxu0
    %v3722 = vpop.f32.mrb[0].mxu0
    %v3723 = vadd.f32 0.0, %v3722
    %v3724 = vpop.f32.mrb[0].mxu0
    %3725 = vmatprep.mubr.bf16.mxu0 0
    %3726 = vmatmul.mubr.bf16.gmra.mrb[0].mxu0 %v3364
    %v3727 = vpop.f32.mrb[0].mxu0
    %v3728 = vadd.f32 0.0, %v3727
    %v3729 = vpop.f32.mrb[0].mxu0
    %v3730 = vpop.f32.mrb[0].mxu0
    %v3731 = vadd.f32 0.0, %v3730
    %v3732 = vpop.f32.mrb[0].mxu0
    %3733 = vdwg.mxu0
    %v3734 = vadd.f32 %v2740, %v3480
    %v3735 = vadd.f32 %v2743, %v3483
    %v3736 = vadd.f32 %v2748, %v3488
    %v3737 = vadd.f32 %v2751, %v3491
    %v3738 = vadd.f32 %v2756, %v3496
    %v3739 = vadd.f32 %v2759, %v3499
    %v3740 = vadd.f32 %v2764, %v3504
    %v3741 = vadd.f32 %v2767, %v3507
    %v3742 = vadd.f32 %v2772, %v3512
    %v3743 = vadd.f32 %v2775, %v3515
    %v3744 = vadd.f32 %v2780, %v3520
    %v3745 = vadd.f32 %v2783, %v3523
    %v3746 = vadd.f32 %v2788, %v3528
    %v3747 = vadd.f32 %v2791, %v3531
    %v3748 = vadd.f32 %v2796, %v3536
    %v3749 = vadd.f32 %v2799, %v3539
    %v3750 = vadd.f32 %v2804, %v3544
    %v3751 = vadd.f32 %v2807, %v3547
    %v3752 = vadd.f32 %v2812, %v3552
    %v3753 = vadd.f32 %v2815, %v3555
    %v3754 = vadd.f32 %v2820, %v3560
    %v3755 = vadd.f32 %v2823, %v3563
    %v3756 = vadd.f32 %v2828, %v3568
    %v3757 = vadd.f32 %v2831, %v3571
    %v3758 = vadd.f32 %v2836, %v3576
    %v3759 = vadd.f32 %v2839, %v3579
    %v3760 = vadd.f32 %v2844, %v3584
    %v3761 = vadd.f32 %v2847, %v3587
    %v3762 = vadd.f32 %v2852, %v3592
    %v3763 = vadd.f32 %v2855, %v3595
    %v3764 = vadd.f32 %v2860, %v3600
    %v3765 = vadd.f32 %v2863, %v3603
    %v3766 = vadd.f32 %v2868, %v3608
    %v3767 = vadd.f32 %v2871, %v3611
    %v3768 = vadd.f32 %v2876, %v3616
    %v3769 = vadd.f32 %v2879, %v3619
    %v3770 = vadd.f32 %v2884, %v3624
    %v3771 = vadd.f32 %v2887, %v3627
    %v3772 = vadd.f32 %v2892, %v3632
    %v3773 = vadd.f32 %v2895, %v3635
    %v3774 = vadd.f32 %v2900, %v3640
    %v3775 = vadd.f32 %v2903, %v3643
    %v3776 = vadd.f32 %v2908, %v3648
    %v3777 = vadd.f32 %v2911, %v3651
    %v3778 = vadd.f32 %v2916, %v3656
    %v3779 = vadd.f32 %v2919, %v3659
    %v3780 = vadd.f32 %v2924, %v3664
    %v3781 = vadd.f32 %v2927, %v3667
    %v3782 = vadd.f32 %v2932, %v3672
    %v3783 = vadd.f32 %v2935, %v3675
    %v3784 = vadd.f32 %v2940, %v3680
    %v3785 = vadd.f32 %v2943, %v3683
    %v3786 = vadd.f32 %v2948, %v3688
    %v3787 = vadd.f32 %v2951, %v3691
    %v3788 = vadd.f32 %v2956, %v3696
    %v3789 = vadd.f32 %v2959, %v3699
    %v3790 = vadd.f32 %v2964, %v3704
    %v3791 = vadd.f32 %v2967, %v3707
    %v3792 = vadd.f32 %v2972, %v3712
    %v3793 = vadd.f32 %v2975, %v3715
    %v3794 = vadd.f32 %v2980, %v3720
    %v3795 = vadd.f32 %v2983, %v3723
    %v3796 = vadd.f32 %v2988, %v3728
    %v3797 = vadd.f32 %v2991, %v3731
    %v3798 = vld [vmem:[#allocation6 + $0xc0] sm:$0xf]
    %v3799 = vld [vmem:[#allocation6 + $0xc4] sm:$0xf]
    %v3800 = vld [vmem:[#allocation6 + $0xc8] sm:$0xf]
    %v3801 = vld [vmem:[#allocation6 + $0xcc] sm:$0xf]
    %v3802 = vld [vmem:[#allocation6 + $0xd0] sm:$0xf]
    %v3803 = vld [vmem:[#allocation6 + $0xd4] sm:$0xf]
    %v3804 = vld [vmem:[#allocation6 + $0xd8] sm:$0xf]
    %v3805 = vld [vmem:[#allocation6 + $0xdc] sm:$0xf]
    %v3806 = vld [vmem:[#allocation6 + $0xe0] sm:$0xf]
    %v3807 = vld [vmem:[#allocation6 + $0xe4] sm:$0xf]
    %v3808 = vld [vmem:[#allocation6 + $0xe8] sm:$0xf]
    %v3809 = vld [vmem:[#allocation6 + $0xec] sm:$0xf]
    %v3810 = vld [vmem:[#allocation6 + $0xf0] sm:$0xf]
    %v3811 = vld [vmem:[#allocation6 + $0xf4] sm:$0xf]
    %v3812 = vld [vmem:[#allocation6 + $0xf8] sm:$0xf]
    %v3813 = vld [vmem:[#allocation6 + $0xfc] sm:$0xf]
    %v3818 = vunpack.c.l.b16 %v1137
    %v3819 = vunpack.c.l.b16 %v1138
    %v3820 = vunpack.c.l.b16 %v1191
    %v3821 = vunpack.c.l.b16 %v1192
    %v3822 = vpack.c.b16 %v3819, %v3818
    %v3823 = vpack.c.b16 %v3821, %v3820
    %v3842 = vunpack.c.l.b16 %v3798
    %v3843 = vunpack.c.l.b16 %v3799
    %v3844 = vunpack.c.l.b16 %v3800
    %v3845 = vunpack.c.l.b16 %v3801
    %v3846 = vunpack.c.l.b16 %v3802
    %v3847 = vunpack.c.l.b16 %v3803
    %v3848 = vunpack.c.l.b16 %v3804
    %v3849 = vunpack.c.l.b16 %v3805
    %v3850 = vunpack.c.l.b16 %v3806
    %v3851 = vunpack.c.l.b16 %v3807
    %v3852 = vunpack.c.l.b16 %v3808
    %v3853 = vunpack.c.l.b16 %v3809
    %v3854 = vunpack.c.l.b16 %v3810
    %v3855 = vunpack.c.l.b16 %v3811
    %v3856 = vunpack.c.l.b16 %v3812
    %v3857 = vunpack.c.l.b16 %v3813
    %v3858 = vpack.c.b16 %v3843, %v3842
    %v3859 = vpack.c.b16 %v3845, %v3844
    %v3860 = vpack.c.b16 %v3847, %v3846
    %v3861 = vpack.c.b16 %v3849, %v3848
    %v3862 = vpack.c.b16 %v3851, %v3850
    %v3863 = vpack.c.b16 %v3853, %v3852
    %v3864 = vpack.c.b16 %v3855, %v3854
    %v3865 = vpack.c.b16 %v3857, %v3856
    %3874 = vmatprep.subr.bf16.mxu0 0
    %3875 = vmatpush1.bf16.msra.mxu0 %v3858
    %3876 = vmatprep.subr.bf16.mxu0 0
    %3877 = vmatpush1.bf16.msra.mxu0 %v3859
    %3878 = vmatprep.subr.bf16.mxu0 0
    %3879 = vmatpush1.bf16.msra.mxu0 %v3860
    %3880 = vmatprep.subr.bf16.mxu0 0
    %3881 = vmatpush1.bf16.msra.mxu0 %v3861
    %3882 = vmatprep.subr.bf16.mxu0 0
    %3883 = vmatpush1.bf16.msra.mxu0 %v3862
    %3884 = vmatprep.subr.bf16.mxu0 0
    %3885 = vmatpush1.bf16.msra.mxu0 %v3863
    %3886 = vmatprep.subr.bf16.mxu0 0
    %3887 = vmatpush1.bf16.msra.mxu0 %v3864
    %3888 = vmatprep.subr.bf16.mxu0 0
    %3889 = vmatpush1.bf16.msra.mxu0 %v3865
    %3890 = vmatprep.subr.bf16.mxu0 0
    %3891 = vmatpush1.bf16.msra.mxu0 0
    %3892 = vmatprep.subr.bf16.mxu0 0
    %3893 = vmatpush1.bf16.msra.mxu0 0
    %3894 = vmatprep.subr.bf16.mxu0 0
    %3895 = vmatpush1.bf16.msra.mxu0 0
    %3896 = vmatprep.subr.bf16.mxu0 0
    %3897 = vmatpush1.bf16.msra.mxu0 0
    %3898 = vmatprep.subr.bf16.mxu0 0
    %3899 = vmatpush1.bf16.msra.mxu0 0
    %3900 = vmatprep.subr.bf16.mxu0 0
    %3901 = vmatpush1.bf16.msra.mxu0 0
    %3902 = vmatprep.subr.bf16.mxu0 0
    %3903 = vmatpush1.bf16.msra.mxu0 0
    %3904 = vmatprep.subr.bf16.mxu0 0
    %3905 = vmatpush1.bf16.msra.mxu0 0
    %3906 = vmatprep.mubr.bf16.mxu0 0
    %3907 = vmatmul.mubr.bf16.gmra.mrb[0].mxu0 %v2594
    %v3908 = vpop.f32.mrb[0].mxu0
    %v3909 = vadd.f32 0.0, %v3908
    %v3910 = vpop.f32.mrb[0].mxu0
    %v3911 = vpop.f32.mrb[0].mxu0
    %v3912 = vadd.f32 0.0, %v3911
    %v3913 = vpop.f32.mrb[0].mxu0
    %3914 = vmatprep.mubr.bf16.mxu0 0
    %3915 = vmatmul.mubr.bf16.gmra.mrb[0].mxu0 %v2595
    %v3916 = vpop.f32.mrb[0].mxu0
    %v3917 = vadd.f32 0.0, %v3916
    %v3918 = vpop.f32.mrb[0].mxu0
    %v3919 = vpop.f32.mrb[0].mxu0
    %v3920 = vadd.f32 0.0, %v3919
    %v3921 = vpop.f32.mrb[0].mxu0
    %3922 = vmatprep.mubr.bf16.mxu0 0
    %3923 = vmatmul.mubr.bf16.gmra.mrb[0].mxu0 %v2596
    %v3924 = vpop.f32.mrb[0].mxu0
    %v3925 = vadd.f32 0.0, %v3924
    %v3926 = vpop.f32.mrb[0].mxu0
    %v3927 = vpop.f32.mrb[0].mxu0
    %v3928 = vadd.f32 0.0, %v3927
    %v3929 = vpop.f32.mrb[0].mxu0
    %3930 = vmatprep.mubr.bf16.mxu0 0
    %3931 = vmatmul.mubr.bf16.gmra.mrb[0].mxu0 %v2597
    %v3932 = vpop.f32.mrb[0].mxu0
    %v3933 = vadd.f32 0.0, %v3932
    %v3934 = vpop.f32.mrb[0].mxu0
    %v3935 = vpop.f32.mrb[0].mxu0
    %v3936 = vadd.f32 0.0, %v3935
    %v3937 = vpop.f32.mrb[0].mxu0
    %3938 = vmatprep.mubr.bf16.mxu0 0
    %3939 = vmatmul.mubr.bf16.gmra.mrb[0].mxu0 %v2598
    %v3940 = vpop.f32.mrb[0].mxu0
    %v3941 = vadd.f32 0.0, %v3940
    %v3942 = vpop.f32.mrb[0].mxu0
    %v3943 = vpop.f32.mrb[0].mxu0
    %v3944 = vadd.f32 0.0, %v3943
    %v3945 = vpop.f32.mrb[0].mxu0
    %3946 = vmatprep.mubr.bf16.mxu0 0
    %3947 = vmatmul.mubr.bf16.gmra.mrb[0].mxu0 %v2599
    %v3948 = vpop.f32.mrb[0].mxu0
    %v3949 = vadd.f32 0.0, %v3948
    %v3950 = vpop.f32.mrb[0].mxu0
    %v3951 = vpop.f32.mrb[0].mxu0
    %v3952 = vadd.f32 0.0, %v3951
    %v3953 = vpop.f32.mrb[0].mxu0
    %3954 = vmatprep.mubr.bf16.mxu0 0
    %3955 = vmatmul.mubr.bf16.gmra.mrb[0].mxu0 %v2600
    %v3956 = vpop.f32.mrb[0].mxu0
    %v3957 = vadd.f32 0.0, %v3956
    %v3958 = vpop.f32.mrb[0].mxu0
    %v3959 = vpop.f32.mrb[0].mxu0
    %v3960 = vadd.f32 0.0, %v3959
    %v3961 = vpop.f32.mrb[0].mxu0
    %3962 = vmatprep.mubr.bf16.mxu0 0
    %3963 = vmatmul.mubr.bf16.gmra.mrb[0].mxu0 %v2601
    %v3964 = vpop.f32.mrb[0].mxu0
    %v3965 = vadd.f32 0.0, %v3964
    %v3966 = vpop.f32.mrb[0].mxu0
    %v3967 = vpop.f32.mrb[0].mxu0
    %v3968 = vadd.f32 0.0, %v3967
    %v3969 = vpop.f32.mrb[0].mxu0
    %3970 = vmatprep.mubr.bf16.mxu0 0
    %3971 = vmatmul.mubr.bf16.gmra.mrb[0].mxu0 %v2602
    %v3972 = vpop.f32.mrb[0].mxu0
    %v3973 = vadd.f32 0.0, %v3972
    %v3974 = vpop.f32.mrb[0].mxu0
    %v3975 = vpop.f32.mrb[0].mxu0
    %v3976 = vadd.f32 0.0, %v3975
    %v3977 = vpop.f32.mrb[0].mxu0
    %3978 = vmatprep.mubr.bf16.mxu0 0
    %3979 = vmatmul.mubr.bf16.gmra.mrb[0].mxu0 %v2603
    %v3980 = vpop.f32.mrb[0].mxu0
    %v3981 = vadd.f32 0.0, %v3980
    %v3982 = vpop.f32.mrb[0].mxu0
    %v3983 = vpop.f32.mrb[0].mxu0
    %v3984 = vadd.f32 0.0, %v3983
    %v3985 = vpop.f32.mrb[0].mxu0
    %3986 = vmatprep.mubr.bf16.mxu0 0
    %3987 = vmatmul.mubr.bf16.gmra.mrb[0].mxu0 %v2604
    %v3988 = vpop.f32.mrb[0].mxu0
    %v3989 = vadd.f32 0.0, %v3988
    %v3990 = vpop.f32.mrb[0].mxu0
    %v3991 = vpop.f32.mrb[0].mxu0
    %v3992 = vadd.f32 0.0, %v3991
    %v3993 = vpop.f32.mrb[0].mxu0
    %3994 = vmatprep.mubr.bf16.mxu0 0
    %3995 = vmatmul.mubr.bf16.gmra.mrb[0].mxu0 %v2605
    %v3996 = vpop.f32.mrb[0].mxu0
    %v3997 = vadd.f32 0.0, %v3996
    %v3998 = vpop.f32.mrb[0].mxu0
    %v3999 = vpop.f32.mrb[0].mxu0
    %v4000 = vadd.f32 0.0, %v3999
    %v4001 = vpop.f32.mrb[0].mxu0
    %4002 = vmatprep.mubr.bf16.mxu0 0
    %4003 = vmatmul.mubr.bf16.gmra.mrb[0].mxu0 %v2606
    %v4004 = vpop.f32.mrb[0].mxu0
    %v4005 = vadd.f32 0.0, %v4004
    %v4006 = vpop.f32.mrb[0].mxu0
    %v4007 = vpop.f32.mrb[0].mxu0
    %v4008 = vadd.f32 0.0, %v4007
    %v4009 = vpop.f32.mrb[0].mxu0
    %4010 = vmatprep.mubr.bf16.mxu0 0
    %4011 = vmatmul.mubr.bf16.gmra.mrb[0].mxu0 %v2607
    %v4012 = vpop.f32.mrb[0].mxu0
    %v4013 = vadd.f32 0.0, %v4012
    %v4014 = vpop.f32.mrb[0].mxu0
    %v4015 = vpop.f32.mrb[0].mxu0
    %v4016 = vadd.f32 0.0, %v4015
    %v4017 = vpop.f32.mrb[0].mxu0
    %4018 = vmatprep.mubr.bf16.mxu0 0
    %4019 = vmatmul.mubr.bf16.gmra.mrb[0].mxu0 %v2608
    %v4020 = vpop.f32.mrb[0].mxu0
    %v4021 = vadd.f32 0.0, %v4020
    %v4022 = vpop.f32.mrb[0].mxu0
    %v4023 = vpop.f32.mrb[0].mxu0
    %v4024 = vadd.f32 0.0, %v4023
    %v4025 = vpop.f32.mrb[0].mxu0
    %4026 = vmatprep.mubr.bf16.mxu0 0
    %4027 = vmatmul.mubr.bf16.gmra.mrb[0].mxu0 %v3822
    %v4028 = vpop.f32.mrb[0].mxu0
    %v4029 = vadd.f32 0.0, %v4028
    %v4030 = vpop.f32.mrb[0].mxu0
    %v4031 = vpop.f32.mrb[0].mxu0
    %v4032 = vadd.f32 0.0, %v4031
    %v4033 = vpop.f32.mrb[0].mxu0
    %4034 = vmatprep.mubr.bf16.mxu0 0
    %4035 = vmatmul.mubr.bf16.gmra.mrb[0].mxu0 %v2610
    %v4036 = vpop.f32.mrb[0].mxu0
    %v4037 = vadd.f32 0.0, %v4036
    %v4038 = vpop.f32.mrb[0].mxu0
    %v4039 = vpop.f32.mrb[0].mxu0
    %v4040 = vadd.f32 0.0, %v4039
    %v4041 = vpop.f32.mrb[0].mxu0
    %4042 = vmatprep.mubr.bf16.mxu0 0
    %4043 = vmatmul.mubr.bf16.gmra.mrb[0].mxu0 %v2611
    %v4044 = vpop.f32.mrb[0].mxu0
    %v4045 = vadd.f32 0.0, %v4044
    %v4046 = vpop.f32.mrb[0].mxu0
    %v4047 = vpop.f32.mrb[0].mxu0
    %v4048 = vadd.f32 0.0, %v4047
    %v4049 = vpop.f32.mrb[0].mxu0
    %4050 = vmatprep.mubr.bf16.mxu0 0
    %4051 = vmatmul.mubr.bf16.gmra.mrb[0].mxu0 %v2612
    %v4052 = vpop.f32.mrb[0].mxu0
    %v4053 = vadd.f32 0.0, %v4052
    %v4054 = vpop.f32.mrb[0].mxu0
    %v4055 = vpop.f32.mrb[0].mxu0
    %v4056 = vadd.f32 0.0, %v4055
    %v4057 = vpop.f32.mrb[0].mxu0
    %4058 = vmatprep.mubr.bf16.mxu0 0
    %4059 = vmatmul.mubr.bf16.gmra.mrb[0].mxu0 %v2613
    %v4060 = vpop.f32.mrb[0].mxu0
    %v4061 = vadd.f32 0.0, %v4060
    %v4062 = vpop.f32.mrb[0].mxu0
    %v4063 = vpop.f32.mrb[0].mxu0
    %v4064 = vadd.f32 0.0, %v4063
    %v4065 = vpop.f32.mrb[0].mxu0
    %4066 = vmatprep.mubr.bf16.mxu0 0
    %4067 = vmatmul.mubr.bf16.gmra.mrb[0].mxu0 %v2614
    %v4068 = vpop.f32.mrb[0].mxu0
    %v4069 = vadd.f32 0.0, %v4068
    %v4070 = vpop.f32.mrb[0].mxu0
    %v4071 = vpop.f32.mrb[0].mxu0
    %v4072 = vadd.f32 0.0, %v4071
    %v4073 = vpop.f32.mrb[0].mxu0
    %4074 = vmatprep.mubr.bf16.mxu0 0
    %4075 = vmatmul.mubr.bf16.gmra.mrb[0].mxu0 %v2615
    %v4076 = vpop.f32.mrb[0].mxu0
    %v4077 = vadd.f32 0.0, %v4076
    %v4078 = vpop.f32.mrb[0].mxu0
    %v4079 = vpop.f32.mrb[0].mxu0
    %v4080 = vadd.f32 0.0, %v4079
    %v4081 = vpop.f32.mrb[0].mxu0
    %4082 = vmatprep.mubr.bf16.mxu0 0
    %4083 = vmatmul.mubr.bf16.gmra.mrb[0].mxu0 %v2616
    %v4084 = vpop.f32.mrb[0].mxu0
    %v4085 = vadd.f32 0.0, %v4084
    %v4086 = vpop.f32.mrb[0].mxu0
    %v4087 = vpop.f32.mrb[0].mxu0
    %v4088 = vadd.f32 0.0, %v4087
    %v4089 = vpop.f32.mrb[0].mxu0
    %4090 = vmatprep.mubr.bf16.mxu0 0
    %4091 = vmatmul.mubr.bf16.gmra.mrb[0].mxu0 %v2617
    %v4092 = vpop.f32.mrb[0].mxu0
    %v4093 = vadd.f32 0.0, %v4092
    %v4094 = vpop.f32.mrb[0].mxu0
    %v4095 = vpop.f32.mrb[0].mxu0
    %v4096 = vadd.f32 0.0, %v4095
    %v4097 = vpop.f32.mrb[0].mxu0
    %4098 = vmatprep.mubr.bf16.mxu0 0
    %4099 = vmatmul.mubr.bf16.gmra.mrb[0].mxu0 %v2618
    %v4100 = vpop.f32.mrb[0].mxu0
    %v4101 = vadd.f32 0.0, %v4100
    %v4102 = vpop.f32.mrb[0].mxu0
    %v4103 = vpop.f32.mrb[0].mxu0
    %v4104 = vadd.f32 0.0, %v4103
    %v4105 = vpop.f32.mrb[0].mxu0
    %4106 = vmatprep.mubr.bf16.mxu0 0
    %4107 = vmatmul.mubr.bf16.gmra.mrb[0].mxu0 %v2619
    %v4108 = vpop.f32.mrb[0].mxu0
    %v4109 = vadd.f32 0.0, %v4108
    %v4110 = vpop.f32.mrb[0].mxu0
    %v4111 = vpop.f32.mrb[0].mxu0
    %v4112 = vadd.f32 0.0, %v4111
    %v4113 = vpop.f32.mrb[0].mxu0
    %4114 = vmatprep.mubr.bf16.mxu0 0
    %4115 = vmatmul.mubr.bf16.gmra.mrb[0].mxu0 %v2620
    %v4116 = vpop.f32.mrb[0].mxu0
    %v4117 = vadd.f32 0.0, %v4116
    %v4118 = vpop.f32.mrb[0].mxu0
    %v4119 = vpop.f32.mrb[0].mxu0
    %v4120 = vadd.f32 0.0, %v4119
    %v4121 = vpop.f32.mrb[0].mxu0
    %4122 = vmatprep.mubr.bf16.mxu0 0
    %4123 = vmatmul.mubr.bf16.gmra.mrb[0].mxu0 %v2621
    %v4124 = vpop.f32.mrb[0].mxu0
    %v4125 = vadd.f32 0.0, %v4124
    %v4126 = vpop.f32.mrb[0].mxu0
    %v4127 = vpop.f32.mrb[0].mxu0
    %v4128 = vadd.f32 0.0, %v4127
    %v4129 = vpop.f32.mrb[0].mxu0
    %4130 = vmatprep.mubr.bf16.mxu0 0
    %4131 = vmatmul.mubr.bf16.gmra.mrb[0].mxu0 %v2622
    %v4132 = vpop.f32.mrb[0].mxu0
    %v4133 = vadd.f32 0.0, %v4132
    %v4134 = vpop.f32.mrb[0].mxu0
    %v4135 = vpop.f32.mrb[0].mxu0
    %v4136 = vadd.f32 0.0, %v4135
    %v4137 = vpop.f32.mrb[0].mxu0
    %4138 = vmatprep.mubr.bf16.mxu0 0
    %4139 = vmatmul.mubr.bf16.gmra.mrb[0].mxu0 %v2623
    %v4140 = vpop.f32.mrb[0].mxu0
    %v4141 = vadd.f32 0.0, %v4140
    %v4142 = vpop.f32.mrb[0].mxu0
    %v4143 = vpop.f32.mrb[0].mxu0
    %v4144 = vadd.f32 0.0, %v4143
    %v4145 = vpop.f32.mrb[0].mxu0
    %4146 = vmatprep.mubr.bf16.mxu0 0
    %4147 = vmatmul.mubr.bf16.gmra.mrb[0].mxu0 %v2624
    %v4148 = vpop.f32.mrb[0].mxu0
    %v4149 = vadd.f32 0.0, %v4148
    %v4150 = vpop.f32.mrb[0].mxu0
    %v4151 = vpop.f32.mrb[0].mxu0
    %v4152 = vadd.f32 0.0, %v4151
    %v4153 = vpop.f32.mrb[0].mxu0
    %4154 = vmatprep.mubr.bf16.mxu0 0
    %4155 = vmatmul.mubr.bf16.gmra.mrb[0].mxu0 %v3823
    %v4156 = vpop.f32.mrb[0].mxu0
    %v4157 = vadd.f32 0.0, %v4156
    %v4158 = vpop.f32.mrb[0].mxu0
    %v4159 = vpop.f32.mrb[0].mxu0
    %v4160 = vadd.f32 0.0, %v4159
    %v4161 = vpop.f32.mrb[0].mxu0
    %4162 = vdwg.mxu0
    %v4163 = vadd.f32 %v3734, %v3909
    %v4164 = vadd.f32 %v3735, %v3912
    %v4165 = vadd.f32 %v3736, %v3917
    %v4166 = vadd.f32 %v3737, %v3920
    %v4167 = vadd.f32 %v3738, %v3925
    %v4168 = vadd.f32 %v3739, %v3928
    %v4169 = vadd.f32 %v3740, %v3933
    %v4170 = vadd.f32 %v3741, %v3936
    %v4171 = vadd.f32 %v3742, %v3941
    %v4172 = vadd.f32 %v3743, %v3944
    %v4173 = vadd.f32 %v3744, %v3949
    %v4174 = vadd.f32 %v3745, %v3952
    %v4175 = vadd.f32 %v3746, %v3957
    %v4176 = vadd.f32 %v3747, %v3960
    %v4177 = vadd.f32 %v3748, %v3965
    %v4178 = vadd.f32 %v3749, %v3968
    %v4179 = vadd.f32 %v3750, %v3973
    %v4180 = vadd.f32 %v3751, %v3976
    %v4181 = vadd.f32 %v3752, %v3981
    %v4182 = vadd.f32 %v3753, %v3984
    %v4183 = vadd.f32 %v3754, %v3989
    %v4184 = vadd.f32 %v3755, %v3992
    %v4185 = vadd.f32 %v3756, %v3997
    %v4186 = vadd.f32 %v3757, %v4000
    %v4187 = vadd.f32 %v3758, %v4005
    %v4188 = vadd.f32 %v3759, %v4008
    %v4189 = vadd.f32 %v3760, %v4013
    %v4190 = vadd.f32 %v3761, %v4016
    %v4191 = vadd.f32 %v3762, %v4021
    %v4192 = vadd.f32 %v3763, %v4024
    %v4193 = vadd.f32 %v3764, %v4029
    %v4194 = vadd.f32 %v3765, %v4032
    %v4195 = vadd.f32 %v3766, %v4037
    %v4196 = vadd.f32 %v3767, %v4040
    %v4197 = vadd.f32 %v3768, %v4045
    %v4198 = vadd.f32 %v3769, %v4048
    %v4199 = vadd.f32 %v3770, %v4053
    %v4200 = vadd.f32 %v3771, %v4056
    %v4201 = vadd.f32 %v3772, %v4061
    %v4202 = vadd.f32 %v3773, %v4064
    %v4203 = vadd.f32 %v3774, %v4069
    %v4204 = vadd.f32 %v3775, %v4072
    %v4205 = vadd.f32 %v3776, %v4077
    %v4206 = vadd.f32 %v3777, %v4080
    %v4207 = vadd.f32 %v3778, %v4085
    %v4208 = vadd.f32 %v3779, %v4088
    %v4209 = vadd.f32 %v3780, %v4093
    %v4210 = vadd.f32 %v3781, %v4096
    %v4211 = vadd.f32 %v3782, %v4101
    %v4212 = vadd.f32 %v3783, %v4104
    %v4213 = vadd.f32 %v3784, %v4109
    %v4214 = vadd.f32 %v3785, %v4112
    %v4215 = vadd.f32 %v3786, %v4117
    %v4216 = vadd.f32 %v3787, %v4120
    %v4217 = vadd.f32 %v3788, %v4125
    %v4218 = vadd.f32 %v3789, %v4128
    %v4219 = vadd.f32 %v3790, %v4133
    %v4220 = vadd.f32 %v3791, %v4136
    %v4221 = vadd.f32 %v3792, %v4141
    %v4222 = vadd.f32 %v3793, %v4144
    %v4223 = vadd.f32 %v3794, %v4149
    %v4224 = vadd.f32 %v3795, %v4152
    %v4225 = vadd.f32 %v3796, %v4157
    %v4226 = vadd.f32 %v3797, %v4160
    %v4228 = vshrl.u32 %v1137, 16
    %v4230 = vrot.slane %v4228, 4
    %v4231 = vshll.u32 %v1137, 16
    %v4233 = vrot.slane %v4231, 5
    %v4234 = vor.u32 %v4230, %v4233
    %v4235 = vrot.slane %v4234, 4
    %v4237 = vshll.u32 %v1138, 16
    %v4239 = vrot.slane %v4237, 5
    %v4240 = vsel %vm1215, %v4235, %v4239
    %v4241 = vshrl.u32 %v1138, 16
    %v4243 = vrot.slane %v4241, 4
    %v4244 = vor.u32 %v4243, %v4239
    %v4245 = vrot.slane %v4244, 4
    %v4247 = vshll.u32 %v1139, 16
    %v4249 = vrot.slane %v4247, 5
    %v4250 = vsel %vm1215, %v4245, %v4249
    %v4252 = vshrl.u32 %v1191, 16
    %v4254 = vrot.slane %v4252, 4
    %v4255 = vshll.u32 %v1191, 16
    %v4257 = vrot.slane %v4255, 5
    %v4258 = vor.u32 %v4254, %v4257
    %v4259 = vrot.slane %v4258, 4
    %v4261 = vshll.u32 %v1192, 16
    %v4263 = vrot.slane %v4261, 5
    %v4264 = vsel %vm1215, %v4259, %v4263
    %v4265 = vshrl.u32 %v1192, 16
    %v4267 = vrot.slane %v4265, 4
    %v4268 = vor.u32 %v4267, %v4263
    %v4269 = vrot.slane %v4268, 4
    %v4271 = vshll.u32 %v1193, 16
    %v4273 = vrot.slane %v4271, 5
    %v4274 = vsel %vm1215, %v4269, %v4273
    %v4275 = vld [vmem:[#allocation6 + $0x100] sm:$0xf]
    %v4276 = vld [vmem:[#allocation6 + $0x104] sm:$0xf]
    %v4277 = vld [vmem:[#allocation6 + $0x108] sm:$0xf]
    %v4278 = vld [vmem:[#allocation6 + $0x10c] sm:$0xf]
    %v4279 = vld [vmem:[#allocation6 + $0x110] sm:$0xf]
    %v4280 = vld [vmem:[#allocation6 + $0x114] sm:$0xf]
    %v4281 = vld [vmem:[#allocation6 + $0x118] sm:$0xf]
    %v4282 = vld [vmem:[#allocation6 + $0x11c] sm:$0xf]
    %v4283 = vld [vmem:[#allocation6 + $0x120] sm:$0xf]
    %v4284 = vld [vmem:[#allocation6 + $0x124] sm:$0xf]
    %v4285 = vld [vmem:[#allocation6 + $0x128] sm:$0xf]
    %v4286 = vld [vmem:[#allocation6 + $0x12c] sm:$0xf]
    %v4287 = vld [vmem:[#allocation6 + $0x130] sm:$0xf]
    %v4288 = vld [vmem:[#allocation6 + $0x134] sm:$0xf]
    %v4289 = vld [vmem:[#allocation6 + $0x138] sm:$0xf]
    %v4290 = vld [vmem:[#allocation6 + $0x13c] sm:$0xf]
    %v4291 = vunpack.c.l.b16 %v4240
    %v4292 = vunpack.c.l.b16 %v4250
    %v4293 = vunpack.c.l.b16 %v4264
    %v4294 = vunpack.c.l.b16 %v4274
    %v4295 = vpack.c.b16 %v4292, %v4291
    %v4296 = vpack.c.b16 %v4294, %v4293
    %v4315 = vunpack.c.l.b16 %v4275
    %v4316 = vunpack.c.l.b16 %v4276
    %v4317 = vunpack.c.l.b16 %v4277
    %v4318 = vunpack.c.l.b16 %v4278
    %v4319 = vunpack.c.l.b16 %v4279
    %v4320 = vunpack.c.l.b16 %v4280
    %v4321 = vunpack.c.l.b16 %v4281
    %v4322 = vunpack.c.l.b16 %v4282
    %v4323 = vunpack.c.l.b16 %v4283
    %v4324 = vunpack.c.l.b16 %v4284
    %v4325 = vunpack.c.l.b16 %v4285
    %v4326 = vunpack.c.l.b16 %v4286
    %v4327 = vunpack.c.l.b16 %v4287
    %v4328 = vunpack.c.l.b16 %v4288
    %v4329 = vunpack.c.l.b16 %v4289
    %v4330 = vunpack.c.l.b16 %v4290
    %v4331 = vpack.c.b16 %v4316, %v4315
    %v4332 = vpack.c.b16 %v4318, %v4317
    %v4333 = vpack.c.b16 %v4320, %v4319
    %v4334 = vpack.c.b16 %v4322, %v4321
    %v4335 = vpack.c.b16 %v4324, %v4323
    %v4336 = vpack.c.b16 %v4326, %v4325
    %v4337 = vpack.c.b16 %v4328, %v4327
    %v4338 = vpack.c.b16 %v4330, %v4329
    %4347 = vmatprep.subr.bf16.mxu0 0
    %4348 = vmatpush1.bf16.msra.mxu0 %v4331
    %4349 = vmatprep.subr.bf16.mxu0 0
    %4350 = vmatpush1.bf16.msra.mxu0 %v4332
    %4351 = vmatprep.subr.bf16.mxu0 0
    %4352 = vmatpush1.bf16.msra.mxu0 %v4333
    %4353 = vmatprep.subr.bf16.mxu0 0
    %4354 = vmatpush1.bf16.msra.mxu0 %v4334
    %4355 = vmatprep.subr.bf16.mxu0 0
    %4356 = vmatpush1.bf16.msra.mxu0 %v4335
    %4357 = vmatprep.subr.bf16.mxu0 0
    %4358 = vmatpush1.bf16.msra.mxu0 %v4336
    %4359 = vmatprep.subr.bf16.mxu0 0
    %4360 = vmatpush1.bf16.msra.mxu0 %v4337
    %4361 = vmatprep.subr.bf16.mxu0 0
    %4362 = vmatpush1.bf16.msra.mxu0 %v4338
    %4363 = vmatprep.subr.bf16.mxu0 0
    %4364 = vmatpush1.bf16.msra.mxu0 0
    %4365 = vmatprep.subr.bf16.mxu0 0
    %4366 = vmatpush1.bf16.msra.mxu0 0
    %4367 = vmatprep.subr.bf16.mxu0 0
    %4368 = vmatpush1.bf16.msra.mxu0 0
    %4369 = vmatprep.subr.bf16.mxu0 0
    %4370 = vmatpush1.bf16.msra.mxu0 0
    %4371 = vmatprep.subr.bf16.mxu0 0
    %4372 = vmatpush1.bf16.msra.mxu0 0
    %4373 = vmatprep.subr.bf16.mxu0 0
    %4374 = vmatpush1.bf16.msra.mxu0 0
    %4375 = vmatprep.subr.bf16.mxu0 0
    %4376 = vmatpush1.bf16.msra.mxu0 0
    %4377 = vmatprep.subr.bf16.mxu0 0
    %4378 = vmatpush1.bf16.msra.mxu0 0
    %4379 = vmatprep.mubr.bf16.mxu0 0
    %4380 = vmatmul.mubr.bf16.gmra.mrb[0].mxu0 %v2065
    %v4381 = vpop.f32.mrb[0].mxu0
    %v4382 = vadd.f32 0.0, %v4381
    %v4383 = vpop.f32.mrb[0].mxu0
    %v4384 = vpop.f32.mrb[0].mxu0
    %v4385 = vadd.f32 0.0, %v4384
    %v4386 = vpop.f32.mrb[0].mxu0
    %4387 = vmatprep.mubr.bf16.mxu0 0
    %4388 = vmatmul.mubr.bf16.gmra.mrb[0].mxu0 %v2066
    %v4389 = vpop.f32.mrb[0].mxu0
    %v4390 = vadd.f32 0.0, %v4389
    %v4391 = vpop.f32.mrb[0].mxu0
    %v4392 = vpop.f32.mrb[0].mxu0
    %v4393 = vadd.f32 0.0, %v4392
    %v4394 = vpop.f32.mrb[0].mxu0
    %4395 = vmatprep.mubr.bf16.mxu0 0
    %4396 = vmatmul.mubr.bf16.gmra.mrb[0].mxu0 %v2067
    %v4397 = vpop.f32.mrb[0].mxu0
    %v4398 = vadd.f32 0.0, %v4397
    %v4399 = vpop.f32.mrb[0].mxu0
    %v4400 = vpop.f32.mrb[0].mxu0
    %v4401 = vadd.f32 0.0, %v4400
    %v4402 = vpop.f32.mrb[0].mxu0
    %4403 = vmatprep.mubr.bf16.mxu0 0
    %4404 = vmatmul.mubr.bf16.gmra.mrb[0].mxu0 %v2068
    %v4405 = vpop.f32.mrb[0].mxu0
    %v4406 = vadd.f32 0.0, %v4405
    %v4407 = vpop.f32.mrb[0].mxu0
    %v4408 = vpop.f32.mrb[0].mxu0
    %v4409 = vadd.f32 0.0, %v4408
    %v4410 = vpop.f32.mrb[0].mxu0
    %4411 = vmatprep.mubr.bf16.mxu0 0
    %4412 = vmatmul.mubr.bf16.gmra.mrb[0].mxu0 %v2069
    %v4413 = vpop.f32.mrb[0].mxu0
    %v4414 = vadd.f32 0.0, %v4413
    %v4415 = vpop.f32.mrb[0].mxu0
    %v4416 = vpop.f32.mrb[0].mxu0
    %v4417 = vadd.f32 0.0, %v4416
    %v4418 = vpop.f32.mrb[0].mxu0
    %4419 = vmatprep.mubr.bf16.mxu0 0
    %4420 = vmatmul.mubr.bf16.gmra.mrb[0].mxu0 %v2070
    %v4421 = vpop.f32.mrb[0].mxu0
    %v4422 = vadd.f32 0.0, %v4421
    %v4423 = vpop.f32.mrb[0].mxu0
    %v4424 = vpop.f32.mrb[0].mxu0
    %v4425 = vadd.f32 0.0, %v4424
    %v4426 = vpop.f32.mrb[0].mxu0
    %4427 = vmatprep.mubr.bf16.mxu0 0
    %4428 = vmatmul.mubr.bf16.gmra.mrb[0].mxu0 %v2071
    %v4429 = vpop.f32.mrb[0].mxu0
    %v4430 = vadd.f32 0.0, %v4429
    %v4431 = vpop.f32.mrb[0].mxu0
    %v4432 = vpop.f32.mrb[0].mxu0
    %v4433 = vadd.f32 0.0, %v4432
    %v4434 = vpop.f32.mrb[0].mxu0
    %4435 = vmatprep.mubr.bf16.mxu0 0
    %4436 = vmatmul.mubr.bf16.gmra.mrb[0].mxu0 %v2072
    %v4437 = vpop.f32.mrb[0].mxu0
    %v4438 = vadd.f32 0.0, %v4437
    %v4439 = vpop.f32.mrb[0].mxu0
    %v4440 = vpop.f32.mrb[0].mxu0
    %v4441 = vadd.f32 0.0, %v4440
    %v4442 = vpop.f32.mrb[0].mxu0
    %4443 = vmatprep.mubr.bf16.mxu0 0
    %4444 = vmatmul.mubr.bf16.gmra.mrb[0].mxu0 %v2073
    %v4445 = vpop.f32.mrb[0].mxu0
    %v4446 = vadd.f32 0.0, %v4445
    %v4447 = vpop.f32.mrb[0].mxu0
    %v4448 = vpop.f32.mrb[0].mxu0
    %v4449 = vadd.f32 0.0, %v4448
    %v4450 = vpop.f32.mrb[0].mxu0
    %4451 = vmatprep.mubr.bf16.mxu0 0
    %4452 = vmatmul.mubr.bf16.gmra.mrb[0].mxu0 %v2074
    %v4453 = vpop.f32.mrb[0].mxu0
    %v4454 = vadd.f32 0.0, %v4453
    %v4455 = vpop.f32.mrb[0].mxu0
    %v4456 = vpop.f32.mrb[0].mxu0
    %v4457 = vadd.f32 0.0, %v4456
    %v4458 = vpop.f32.mrb[0].mxu0
    %4459 = vmatprep.mubr.bf16.mxu0 0
    %4460 = vmatmul.mubr.bf16.gmra.mrb[0].mxu0 %v2075
    %v4461 = vpop.f32.mrb[0].mxu0
    %v4462 = vadd.f32 0.0, %v4461
    %v4463 = vpop.f32.mrb[0].mxu0
    %v4464 = vpop.f32.mrb[0].mxu0
    %v4465 = vadd.f32 0.0, %v4464
    %v4466 = vpop.f32.mrb[0].mxu0
    %4467 = vmatprep.mubr.bf16.mxu0 0
    %4468 = vmatmul.mubr.bf16.gmra.mrb[0].mxu0 %v2076
    %v4469 = vpop.f32.mrb[0].mxu0
    %v4470 = vadd.f32 0.0, %v4469
    %v4471 = vpop.f32.mrb[0].mxu0
    %v4472 = vpop.f32.mrb[0].mxu0
    %v4473 = vadd.f32 0.0, %v4472
    %v4474 = vpop.f32.mrb[0].mxu0
    %4475 = vmatprep.mubr.bf16.mxu0 0
    %4476 = vmatmul.mubr.bf16.gmra.mrb[0].mxu0 %v2077
    %v4477 = vpop.f32.mrb[0].mxu0
    %v4478 = vadd.f32 0.0, %v4477
    %v4479 = vpop.f32.mrb[0].mxu0
    %v4480 = vpop.f32.mrb[0].mxu0
    %v4481 = vadd.f32 0.0, %v4480
    %v4482 = vpop.f32.mrb[0].mxu0
    %4483 = vmatprep.mubr.bf16.mxu0 0
    %4484 = vmatmul.mubr.bf16.gmra.mrb[0].mxu0 %v2078
    %v4485 = vpop.f32.mrb[0].mxu0
    %v4486 = vadd.f32 0.0, %v4485
    %v4487 = vpop.f32.mrb[0].mxu0
    %v4488 = vpop.f32.mrb[0].mxu0
    %v4489 = vadd.f32 0.0, %v4488
    %v4490 = vpop.f32.mrb[0].mxu0
    %4491 = vmatprep.mubr.bf16.mxu0 0
    %4492 = vmatmul.mubr.bf16.gmra.mrb[0].mxu0 %v2079
    %v4493 = vpop.f32.mrb[0].mxu0
    %v4494 = vadd.f32 0.0, %v4493
    %v4495 = vpop.f32.mrb[0].mxu0
    %v4496 = vpop.f32.mrb[0].mxu0
    %v4497 = vadd.f32 0.0, %v4496
    %v4498 = vpop.f32.mrb[0].mxu0
    %4499 = vmatprep.mubr.bf16.mxu0 0
    %4500 = vmatmul.mubr.bf16.gmra.mrb[0].mxu0 %v4295
    %v4501 = vpop.f32.mrb[0].mxu0
    %v4502 = vadd.f32 0.0, %v4501
    %v4503 = vpop.f32.mrb[0].mxu0
    %v4504 = vpop.f32.mrb[0].mxu0
    %v4505 = vadd.f32 0.0, %v4504
    %v4506 = vpop.f32.mrb[0].mxu0
    %4507 = vmatprep.mubr.bf16.mxu0 0
    %4508 = vmatmul.mubr.bf16.gmra.mrb[0].mxu0 %v2081
    %v4509 = vpop.f32.mrb[0].mxu0
    %v4510 = vadd.f32 0.0, %v4509
    %v4511 = vpop.f32.mrb[0].mxu0
    %v4512 = vpop.f32.mrb[0].mxu0
    %v4513 = vadd.f32 0.0, %v4512
    %v4514 = vpop.f32.mrb[0].mxu0
    %4515 = vmatprep.mubr.bf16.mxu0 0
    %4516 = vmatmul.mubr.bf16.gmra.mrb[0].mxu0 %v2082
    %v4517 = vpop.f32.mrb[0].mxu0
    %v4518 = vadd.f32 0.0, %v4517
    %v4519 = vpop.f32.mrb[0].mxu0
    %v4520 = vpop.f32.mrb[0].mxu0
    %v4521 = vadd.f32 0.0, %v4520
    %v4522 = vpop.f32.mrb[0].mxu0
    %4523 = vmatprep.mubr.bf16.mxu0 0
    %4524 = vmatmul.mubr.bf16.gmra.mrb[0].mxu0 %v2083
    %v4525 = vpop.f32.mrb[0].mxu0
    %v4526 = vadd.f32 0.0, %v4525
    %v4527 = vpop.f32.mrb[0].mxu0
    %v4528 = vpop.f32.mrb[0].mxu0
    %v4529 = vadd.f32 0.0, %v4528
    %v4530 = vpop.f32.mrb[0].mxu0
    %4531 = vmatprep.mubr.bf16.mxu0 0
    %4532 = vmatmul.mubr.bf16.gmra.mrb[0].mxu0 %v2084
    %v4533 = vpop.f32.mrb[0].mxu0
    %v4534 = vadd.f32 0.0, %v4533
    %v4535 = vpop.f32.mrb[0].mxu0
    %v4536 = vpop.f32.mrb[0].mxu0
    %v4537 = vadd.f32 0.0, %v4536
    %v4538 = vpop.f32.mrb[0].mxu0
    %4539 = vmatprep.mubr.bf16.mxu0 0
    %4540 = vmatmul.mubr.bf16.gmra.mrb[0].mxu0 %v2085
    %v4541 = vpop.f32.mrb[0].mxu0
    %v4542 = vadd.f32 0.0, %v4541
    %v4543 = vpop.f32.mrb[0].mxu0
    %v4544 = vpop.f32.mrb[0].mxu0
    %v4545 = vadd.f32 0.0, %v4544
    %v4546 = vpop.f32.mrb[0].mxu0
    %4547 = vmatprep.mubr.bf16.mxu0 0
    %4548 = vmatmul.mubr.bf16.gmra.mrb[0].mxu0 %v2086
    %v4549 = vpop.f32.mrb[0].mxu0
    %v4550 = vadd.f32 0.0, %v4549
    %v4551 = vpop.f32.mrb[0].mxu0
    %v4552 = vpop.f32.mrb[0].mxu0
    %v4553 = vadd.f32 0.0, %v4552
    %v4554 = vpop.f32.mrb[0].mxu0
    %4555 = vmatprep.mubr.bf16.mxu0 0
    %4556 = vmatmul.mubr.bf16.gmra.mrb[0].mxu0 %v2087
    %v4557 = vpop.f32.mrb[0].mxu0
    %v4558 = vadd.f32 0.0, %v4557
    %v4559 = vpop.f32.mrb[0].mxu0
    %v4560 = vpop.f32.mrb[0].mxu0
    %v4561 = vadd.f32 0.0, %v4560
    %v4562 = vpop.f32.mrb[0].mxu0
    %4563 = vmatprep.mubr.bf16.mxu0 0
    %4564 = vmatmul.mubr.bf16.gmra.mrb[0].mxu0 %v2088
    %v4565 = vpop.f32.mrb[0].mxu0
    %v4566 = vadd.f32 0.0, %v4565
    %v4567 = vpop.f32.mrb[0].mxu0
    %v4568 = vpop.f32.mrb[0].mxu0
    %v4569 = vadd.f32 0.0, %v4568
    %v4570 = vpop.f32.mrb[0].mxu0
    %4571 = vmatprep.mubr.bf16.mxu0 0
    %4572 = vmatmul.mubr.bf16.gmra.mrb[0].mxu0 %v2089
    %v4573 = vpop.f32.mrb[0].mxu0
    %v4574 = vadd.f32 0.0, %v4573
    %v4575 = vpop.f32.mrb[0].mxu0
    %v4576 = vpop.f32.mrb[0].mxu0
    %v4577 = vadd.f32 0.0, %v4576
    %v4578 = vpop.f32.mrb[0].mxu0
    %4579 = vmatprep.mubr.bf16.mxu0 0
    %4580 = vmatmul.mubr.bf16.gmra.mrb[0].mxu0 %v2090
    %v4581 = vpop.f32.mrb[0].mxu0
    %v4582 = vadd.f32 0.0, %v4581
    %v4583 = vpop.f32.mrb[0].mxu0
    %v4584 = vpop.f32.mrb[0].mxu0
    %v4585 = vadd.f32 0.0, %v4584
    %v4586 = vpop.f32.mrb[0].mxu0
    %4587 = vmatprep.mubr.bf16.mxu0 0
    %4588 = vmatmul.mubr.bf16.gmra.mrb[0].mxu0 %v2091
    %v4589 = vpop.f32.mrb[0].mxu0
    %v4590 = vadd.f32 0.0, %v4589
    %v4591 = vpop.f32.mrb[0].mxu0
    %v4592 = vpop.f32.mrb[0].mxu0
    %v4593 = vadd.f32 0.0, %v4592
    %v4594 = vpop.f32.mrb[0].mxu0
    %4595 = vmatprep.mubr.bf16.mxu0 0
    %4596 = vmatmul.mubr.bf16.gmra.mrb[0].mxu0 %v2092
    %v4597 = vpop.f32.mrb[0].mxu0
    %v4598 = vadd.f32 0.0, %v4597
    %v4599 = vpop.f32.mrb[0].mxu0
    %v4600 = vpop.f32.mrb[0].mxu0
    %v4601 = vadd.f32 0.0, %v4600
    %v4602 = vpop.f32.mrb[0].mxu0
    %4603 = vmatprep.mubr.bf16.mxu0 0
    %4604 = vmatmul.mubr.bf16.gmra.mrb[0].mxu0 %v2093
    %v4605 = vpop.f32.mrb[0].mxu0
    %v4606 = vadd.f32 0.0, %v4605
    %v4607 = vpop.f32.mrb[0].mxu0
    %v4608 = vpop.f32.mrb[0].mxu0
    %v4609 = vadd.f32 0.0, %v4608
    %v4610 = vpop.f32.mrb[0].mxu0
    %4611 = vmatprep.mubr.bf16.mxu0 0
    %4612 = vmatmul.mubr.bf16.gmra.mrb[0].mxu0 %v2094
    %v4613 = vpop.f32.mrb[0].mxu0
    %v4614 = vadd.f32 0.0, %v4613
    %v4615 = vpop.f32.mrb[0].mxu0
    %v4616 = vpop.f32.mrb[0].mxu0
    %v4617 = vadd.f32 0.0, %v4616
    %v4618 = vpop.f32.mrb[0].mxu0
    %4619 = vmatprep.mubr.bf16.mxu0 0
    %4620 = vmatmul.mubr.bf16.gmra.mrb[0].mxu0 %v2095
    %v4621 = vpop.f32.mrb[0].mxu0
    %v4622 = vadd.f32 0.0, %v4621
    %v4623 = vpop.f32.mrb[0].mxu0
    %v4624 = vpop.f32.mrb[0].mxu0
    %v4625 = vadd.f32 0.0, %v4624
    %v4626 = vpop.f32.mrb[0].mxu0
    %4627 = vmatprep.mubr.bf16.mxu0 0
    %4628 = vmatmul.mubr.bf16.gmra.mrb[0].mxu0 %v4296
    %v4629 = vpop.f32.mrb[0].mxu0
    %v4630 = vadd.f32 0.0, %v4629
    %v4631 = vpop.f32.mrb[0].mxu0
    %v4632 = vpop.f32.mrb[0].mxu0
    %v4633 = vadd.f32 0.0, %v4632
    %v4634 = vpop.f32.mrb[0].mxu0
    %4635 = vdwg.mxu0
    %v4636 = vadd.f32 %v4163, %v4382
    %v4637 = vadd.f32 %v4164, %v4385
    %v4638 = vadd.f32 %v4165, %v4390
    %v4639 = vadd.f32 %v4166, %v4393
    %v4640 = vadd.f32 %v4167, %v4398
    %v4641 = vadd.f32 %v4168, %v4401
    %v4642 = vadd.f32 %v4169, %v4406
    %v4643 = vadd.f32 %v4170, %v4409
    %v4644 = vadd.f32 %v4171, %v4414
    %v4645 = vadd.f32 %v4172, %v4417
    %v4646 = vadd.f32 %v4173, %v4422
    %v4647 = vadd.f32 %v4174, %v4425
    %v4648 = vadd.f32 %v4175, %v4430
    %v4649 = vadd.f32 %v4176, %v4433
    %v4650 = vadd.f32 %v4177, %v4438
    %v4651 = vadd.f32 %v4178, %v4441
    %v4652 = vadd.f32 %v4179, %v4446
    %v4653 = vadd.f32 %v4180, %v4449
    %v4654 = vadd.f32 %v4181, %v4454
    %v4655 = vadd.f32 %v4182, %v4457
    %v4656 = vadd.f32 %v4183, %v4462
    %v4657 = vadd.f32 %v4184, %v4465
    %v4658 = vadd.f32 %v4185, %v4470
    %v4659 = vadd.f32 %v4186, %v4473
    %v4660 = vadd.f32 %v4187, %v4478
    %v4661 = vadd.f32 %v4188, %v4481
    %v4662 = vadd.f32 %v4189, %v4486
    %v4663 = vadd.f32 %v4190, %v4489
    %v4664 = vadd.f32 %v4191, %v4494
    %v4665 = vadd.f32 %v4192, %v4497
    %v4666 = vadd.f32 %v4193, %v4502
    %v4667 = vadd.f32 %v4194, %v4505
    %v4668 = vadd.f32 %v4195, %v4510
    %v4669 = vadd.f32 %v4196, %v4513
    %v4670 = vadd.f32 %v4197, %v4518
    %v4671 = vadd.f32 %v4198, %v4521
    %v4672 = vadd.f32 %v4199, %v4526
    %v4673 = vadd.f32 %v4200, %v4529
    %v4674 = vadd.f32 %v4201, %v4534
    %v4675 = vadd.f32 %v4202, %v4537
    %v4676 = vadd.f32 %v4203, %v4542
    %v4677 = vadd.f32 %v4204, %v4545
    %v4678 = vadd.f32 %v4205, %v4550
    %v4679 = vadd.f32 %v4206, %v4553
    %v4680 = vadd.f32 %v4207, %v4558
    %v4681 = vadd.f32 %v4208, %v4561
    %v4682 = vadd.f32 %v4209, %v4566
    %v4683 = vadd.f32 %v4210, %v4569
    %v4684 = vadd.f32 %v4211, %v4574
    %v4685 = vadd.f32 %v4212, %v4577
    %v4686 = vadd.f32 %v4213, %v4582
    %v4687 = vadd.f32 %v4214, %v4585
    %v4688 = vadd.f32 %v4215, %v4590
    %v4689 = vadd.f32 %v4216, %v4593
    %v4690 = vadd.f32 %v4217, %v4598
    %v4691 = vadd.f32 %v4218, %v4601
    %v4692 = vadd.f32 %v4219, %v4606
    %v4693 = vadd.f32 %v4220, %v4609
    %v4694 = vadd.f32 %v4221, %v4614
    %v4695 = vadd.f32 %v4222, %v4617
    %v4696 = vadd.f32 %v4223, %v4622
    %v4697 = vadd.f32 %v4224, %v4625
    %v4698 = vadd.f32 %v4225, %v4630
    %v4699 = vadd.f32 %v4226, %v4633
    %v4702 = vrot.slane %v1137, 5
    %v4703 = vrot.slane %v4702, 4
    %v4704 = vrot.slane %v1138, 5
    %v4705 = vsel %vm3028, %v4703, %v4704
    %v4706 = vrot.slane %v4704, 4
    %v4707 = vrot.slane %v1139, 5
    %v4708 = vsel %vm3028, %v4706, %v4707
    %v4709 = vrot.slane %v1191, 5
    %v4710 = vrot.slane %v4709, 4
    %v4711 = vrot.slane %v1192, 5
    %v4712 = vsel %vm3028, %v4710, %v4711
    %v4713 = vrot.slane %v4711, 4
    %v4714 = vrot.slane %v1193, 5
    %v4715 = vsel %vm3028, %v4713, %v4714
    %v4716 = vld [vmem:[#allocation6 + $0x140] sm:$0xf]
    %v4717 = vld [vmem:[#allocation6 + $0x144] sm:$0xf]
    %v4718 = vld [vmem:[#allocation6 + $0x148] sm:$0xf]
    %v4719 = vld [vmem:[#allocation6 + $0x14c] sm:$0xf]
    %v4720 = vld [vmem:[#allocation6 + $0x150] sm:$0xf]
    %v4721 = vld [vmem:[#allocation6 + $0x154] sm:$0xf]
    %v4722 = vld [vmem:[#allocation6 + $0x158] sm:$0xf]
    %v4723 = vld [vmem:[#allocation6 + $0x15c] sm:$0xf]
    %v4724 = vld [vmem:[#allocation6 + $0x160] sm:$0xf]
    %v4725 = vld [vmem:[#allocation6 + $0x164] sm:$0xf]
    %v4726 = vld [vmem:[#allocation6 + $0x168] sm:$0xf]
    %v4727 = vld [vmem:[#allocation6 + $0x16c] sm:$0xf]
    %v4728 = vld [vmem:[#allocation6 + $0x170] sm:$0xf]
    %v4729 = vld [vmem:[#allocation6 + $0x174] sm:$0xf]
    %v4730 = vld [vmem:[#allocation6 + $0x178] sm:$0xf]
    %v4731 = vld [vmem:[#allocation6 + $0x17c] sm:$0xf]
    %v4732 = vunpack.c.l.b16 %v4705
    %v4733 = vunpack.c.l.b16 %v4708
    %v4734 = vunpack.c.l.b16 %v4712
    %v4735 = vunpack.c.l.b16 %v4715
    %v4736 = vpack.c.b16 %v4733, %v4732
    %v4737 = vpack.c.b16 %v4735, %v4734
    %v4756 = vunpack.c.l.b16 %v4716
    %v4757 = vunpack.c.l.b16 %v4717
    %v4758 = vunpack.c.l.b16 %v4718
    %v4759 = vunpack.c.l.b16 %v4719
    %v4760 = vunpack.c.l.b16 %v4720
    %v4761 = vunpack.c.l.b16 %v4721
    %v4762 = vunpack.c.l.b16 %v4722
    %v4763 = vunpack.c.l.b16 %v4723
    %v4764 = vunpack.c.l.b16 %v4724
    %v4765 = vunpack.c.l.b16 %v4725
    %v4766 = vunpack.c.l.b16 %v4726
    %v4767 = vunpack.c.l.b16 %v4727
    %v4768 = vunpack.c.l.b16 %v4728
    %v4769 = vunpack.c.l.b16 %v4729
    %v4770 = vunpack.c.l.b16 %v4730
    %v4771 = vunpack.c.l.b16 %v4731
    %v4772 = vpack.c.b16 %v4757, %v4756
    %v4773 = vpack.c.b16 %v4759, %v4758
    %v4774 = vpack.c.b16 %v4761, %v4760
    %v4775 = vpack.c.b16 %v4763, %v4762
    %v4776 = vpack.c.b16 %v4765, %v4764
    %v4777 = vpack.c.b16 %v4767, %v4766
    %v4778 = vpack.c.b16 %v4769, %v4768
    %v4779 = vpack.c.b16 %v4771, %v4770
    %4788 = vmatprep.subr.bf16.mxu0 0
    %4789 = vmatpush1.bf16.msra.mxu0 %v4772
    %4790 = vmatprep.subr.bf16.mxu0 0
    %4791 = vmatpush1.bf16.msra.mxu0 %v4773
    %4792 = vmatprep.subr.bf16.mxu0 0
    %4793 = vmatpush1.bf16.msra.mxu0 %v4774
    %4794 = vmatprep.subr.bf16.mxu0 0
    %4795 = vmatpush1.bf16.msra.mxu0 %v4775
    %4796 = vmatprep.subr.bf16.mxu0 0
    %4797 = vmatpush1.bf16.msra.mxu0 %v4776
    %4798 = vmatprep.subr.bf16.mxu0 0
    %4799 = vmatpush1.bf16.msra.mxu0 %v4777
    %4800 = vmatprep.subr.bf16.mxu0 0
    %4801 = vmatpush1.bf16.msra.mxu0 %v4778
    %4802 = vmatprep.subr.bf16.mxu0 0
    %4803 = vmatpush1.bf16.msra.mxu0 %v4779
    %4804 = vmatprep.subr.bf16.mxu0 0
    %4805 = vmatpush1.bf16.msra.mxu0 0
    %4806 = vmatprep.subr.bf16.mxu0 0
    %4807 = vmatpush1.bf16.msra.mxu0 0
    %4808 = vmatprep.subr.bf16.mxu0 0
    %4809 = vmatpush1.bf16.msra.mxu0 0
    %4810 = vmatprep.subr.bf16.mxu0 0
    %4811 = vmatpush1.bf16.msra.mxu0 0
    %4812 = vmatprep.subr.bf16.mxu0 0
    %4813 = vmatpush1.bf16.msra.mxu0 0
    %4814 = vmatprep.subr.bf16.mxu0 0
    %4815 = vmatpush1.bf16.msra.mxu0 0
    %4816 = vmatprep.subr.bf16.mxu0 0
    %4817 = vmatpush1.bf16.msra.mxu0 0
    %4818 = vmatprep.subr.bf16.mxu0 0
    %4819 = vmatpush1.bf16.msra.mxu0 0
    %4820 = vmatprep.mubr.bf16.mxu0 0
    %4821 = vmatmul.mubr.bf16.gmra.mrb[0].mxu0 %v3334
    %v4822 = vpop.f32.mrb[0].mxu0
    %v4823 = vadd.f32 0.0, %v4822
    %v4824 = vpop.f32.mrb[0].mxu0
    %v4825 = vpop.f32.mrb[0].mxu0
    %v4826 = vadd.f32 0.0, %v4825
    %v4827 = vpop.f32.mrb[0].mxu0
    %4828 = vmatprep.mubr.bf16.mxu0 0
    %4829 = vmatmul.mubr.bf16.gmra.mrb[0].mxu0 %v3335
    %v4830 = vpop.f32.mrb[0].mxu0
    %v4831 = vadd.f32 0.0, %v4830
    %v4832 = vpop.f32.mrb[0].mxu0
    %v4833 = vpop.f32.mrb[0].mxu0
    %v4834 = vadd.f32 0.0, %v4833
    %v4835 = vpop.f32.mrb[0].mxu0
    %4836 = vmatprep.mubr.bf16.mxu0 0
    %4837 = vmatmul.mubr.bf16.gmra.mrb[0].mxu0 %v3336
    %v4838 = vpop.f32.mrb[0].mxu0
    %v4839 = vadd.f32 0.0, %v4838
    %v4840 = vpop.f32.mrb[0].mxu0
    %v4841 = vpop.f32.mrb[0].mxu0
    %v4842 = vadd.f32 0.0, %v4841
    %v4843 = vpop.f32.mrb[0].mxu0
    %4844 = vmatprep.mubr.bf16.mxu0 0
    %4845 = vmatmul.mubr.bf16.gmra.mrb[0].mxu0 %v3337
    %v4846 = vpop.f32.mrb[0].mxu0
    %v4847 = vadd.f32 0.0, %v4846
    %v4848 = vpop.f32.mrb[0].mxu0
    %v4849 = vpop.f32.mrb[0].mxu0
    %v4850 = vadd.f32 0.0, %v4849
    %v4851 = vpop.f32.mrb[0].mxu0
    %4852 = vmatprep.mubr.bf16.mxu0 0
    %4853 = vmatmul.mubr.bf16.gmra.mrb[0].mxu0 %v3338
    %v4854 = vpop.f32.mrb[0].mxu0
    %v4855 = vadd.f32 0.0, %v4854
    %v4856 = vpop.f32.mrb[0].mxu0
    %v4857 = vpop.f32.mrb[0].mxu0
    %v4858 = vadd.f32 0.0, %v4857
    %v4859 = vpop.f32.mrb[0].mxu0
    %4860 = vmatprep.mubr.bf16.mxu0 0
    %4861 = vmatmul.mubr.bf16.gmra.mrb[0].mxu0 %v3339
    %v4862 = vpop.f32.mrb[0].mxu0
    %v4863 = vadd.f32 0.0, %v4862
    %v4864 = vpop.f32.mrb[0].mxu0
    %v4865 = vpop.f32.mrb[0].mxu0
    %v4866 = vadd.f32 0.0, %v4865
    %v4867 = vpop.f32.mrb[0].mxu0
    %4868 = vmatprep.mubr.bf16.mxu0 0
    %4869 = vmatmul.mubr.bf16.gmra.mrb[0].mxu0 %v3340
    %v4870 = vpop.f32.mrb[0].mxu0
    %v4871 = vadd.f32 0.0, %v4870
    %v4872 = vpop.f32.mrb[0].mxu0
    %v4873 = vpop.f32.mrb[0].mxu0
    %v4874 = vadd.f32 0.0, %v4873
    %v4875 = vpop.f32.mrb[0].mxu0
    %4876 = vmatprep.mubr.bf16.mxu0 0
    %4877 = vmatmul.mubr.bf16.gmra.mrb[0].mxu0 %v3341
    %v4878 = vpop.f32.mrb[0].mxu0
    %v4879 = vadd.f32 0.0, %v4878
    %v4880 = vpop.f32.mrb[0].mxu0
    %v4881 = vpop.f32.mrb[0].mxu0
    %v4882 = vadd.f32 0.0, %v4881
    %v4883 = vpop.f32.mrb[0].mxu0
    %4884 = vmatprep.mubr.bf16.mxu0 0
    %4885 = vmatmul.mubr.bf16.gmra.mrb[0].mxu0 %v3342
    %v4886 = vpop.f32.mrb[0].mxu0
    %v4887 = vadd.f32 0.0, %v4886
    %v4888 = vpop.f32.mrb[0].mxu0
    %v4889 = vpop.f32.mrb[0].mxu0
    %v4890 = vadd.f32 0.0, %v4889
    %v4891 = vpop.f32.mrb[0].mxu0
    %4892 = vmatprep.mubr.bf16.mxu0 0
    %4893 = vmatmul.mubr.bf16.gmra.mrb[0].mxu0 %v3343
    %v4894 = vpop.f32.mrb[0].mxu0
    %v4895 = vadd.f32 0.0, %v4894
    %v4896 = vpop.f32.mrb[0].mxu0
    %v4897 = vpop.f32.mrb[0].mxu0
    %v4898 = vadd.f32 0.0, %v4897
    %v4899 = vpop.f32.mrb[0].mxu0
    %4900 = vmatprep.mubr.bf16.mxu0 0
    %4901 = vmatmul.mubr.bf16.gmra.mrb[0].mxu0 %v3344
    %v4902 = vpop.f32.mrb[0].mxu0
    %v4903 = vadd.f32 0.0, %v4902
    %v4904 = vpop.f32.mrb[0].mxu0
    %v4905 = vpop.f32.mrb[0].mxu0
    %v4906 = vadd.f32 0.0, %v4905
    %v4907 = vpop.f32.mrb[0].mxu0
    %4908 = vmatprep.mubr.bf16.mxu0 0
    %4909 = vmatmul.mubr.bf16.gmra.mrb[0].mxu0 %v3345
    %v4910 = vpop.f32.mrb[0].mxu0
    %v4911 = vadd.f32 0.0, %v4910
    %v4912 = vpop.f32.mrb[0].mxu0
    %v4913 = vpop.f32.mrb[0].mxu0
    %v4914 = vadd.f32 0.0, %v4913
    %v4915 = vpop.f32.mrb[0].mxu0
    %4916 = vmatprep.mubr.bf16.mxu0 0
    %4917 = vmatmul.mubr.bf16.gmra.mrb[0].mxu0 %v3346
    %v4918 = vpop.f32.mrb[0].mxu0
    %v4919 = vadd.f32 0.0, %v4918
    %v4920 = vpop.f32.mrb[0].mxu0
    %v4921 = vpop.f32.mrb[0].mxu0
    %v4922 = vadd.f32 0.0, %v4921
    %v4923 = vpop.f32.mrb[0].mxu0
    %4924 = vmatprep.mubr.bf16.mxu0 0
    %4925 = vmatmul.mubr.bf16.gmra.mrb[0].mxu0 %v3347
    %v4926 = vpop.f32.mrb[0].mxu0
    %v4927 = vadd.f32 0.0, %v4926
    %v4928 = vpop.f32.mrb[0].mxu0
    %v4929 = vpop.f32.mrb[0].mxu0
    %v4930 = vadd.f32 0.0, %v4929
    %v4931 = vpop.f32.mrb[0].mxu0
    %4932 = vmatprep.mubr.bf16.mxu0 0
    %4933 = vmatmul.mubr.bf16.gmra.mrb[0].mxu0 %v3348
    %v4934 = vpop.f32.mrb[0].mxu0
    %v4935 = vadd.f32 0.0, %v4934
    %v4936 = vpop.f32.mrb[0].mxu0
    %v4937 = vpop.f32.mrb[0].mxu0
    %v4938 = vadd.f32 0.0, %v4937
    %v4939 = vpop.f32.mrb[0].mxu0
    %4940 = vmatprep.mubr.bf16.mxu0 0
    %4941 = vmatmul.mubr.bf16.gmra.mrb[0].mxu0 %v4736
    %v4942 = vpop.f32.mrb[0].mxu0
    %v4943 = vadd.f32 0.0, %v4942
    %v4944 = vpop.f32.mrb[0].mxu0
    %v4945 = vpop.f32.mrb[0].mxu0
    %v4946 = vadd.f32 0.0, %v4945
    %v4947 = vpop.f32.mrb[0].mxu0
    %4948 = vmatprep.mubr.bf16.mxu0 0
    %4949 = vmatmul.mubr.bf16.gmra.mrb[0].mxu0 %v3350
    %v4950 = vpop.f32.mrb[0].mxu0
    %v4951 = vadd.f32 0.0, %v4950
    %v4952 = vpop.f32.mrb[0].mxu0
    %v4953 = vpop.f32.mrb[0].mxu0
    %v4954 = vadd.f32 0.0, %v4953
    %v4955 = vpop.f32.mrb[0].mxu0
    %4956 = vmatprep.mubr.bf16.mxu0 0
    %4957 = vmatmul.mubr.bf16.gmra.mrb[0].mxu0 %v3351
    %v4958 = vpop.f32.mrb[0].mxu0
    %v4959 = vadd.f32 0.0, %v4958
    %v4960 = vpop.f32.mrb[0].mxu0
    %v4961 = vpop.f32.mrb[0].mxu0
    %v4962 = vadd.f32 0.0, %v4961
    %v4963 = vpop.f32.mrb[0].mxu0
    %4964 = vmatprep.mubr.bf16.mxu0 0
    %4965 = vmatmul.mubr.bf16.gmra.mrb[0].mxu0 %v3352
    %v4966 = vpop.f32.mrb[0].mxu0
    %v4967 = vadd.f32 0.0, %v4966
    %v4968 = vpop.f32.mrb[0].mxu0
    %v4969 = vpop.f32.mrb[0].mxu0
    %v4970 = vadd.f32 0.0, %v4969
    %v4971 = vpop.f32.mrb[0].mxu0
    %4972 = vmatprep.mubr.bf16.mxu0 0
    %4973 = vmatmul.mubr.bf16.gmra.mrb[0].mxu0 %v3353
    %v4974 = vpop.f32.mrb[0].mxu0
    %v4975 = vadd.f32 0.0, %v4974
    %v4976 = vpop.f32.mrb[0].mxu0
    %v4977 = vpop.f32.mrb[0].mxu0
    %v4978 = vadd.f32 0.0, %v4977
    %v4979 = vpop.f32.mrb[0].mxu0
    %4980 = vmatprep.mubr.bf16.mxu0 0
    %4981 = vmatmul.mubr.bf16.gmra.mrb[0].mxu0 %v3354
    %v4982 = vpop.f32.mrb[0].mxu0
    %v4983 = vadd.f32 0.0, %v4982
    %v4984 = vpop.f32.mrb[0].mxu0
    %v4985 = vpop.f32.mrb[0].mxu0
    %v4986 = vadd.f32 0.0, %v4985
    %v4987 = vpop.f32.mrb[0].mxu0
    %4988 = vmatprep.mubr.bf16.mxu0 0
    %4989 = vmatmul.mubr.bf16.gmra.mrb[0].mxu0 %v3355
    %v4990 = vpop.f32.mrb[0].mxu0
    %v4991 = vadd.f32 0.0, %v4990
    %v4992 = vpop.f32.mrb[0].mxu0
    %v4993 = vpop.f32.mrb[0].mxu0
    %v4994 = vadd.f32 0.0, %v4993
    %v4995 = vpop.f32.mrb[0].mxu0
    %4996 = vmatprep.mubr.bf16.mxu0 0
    %4997 = vmatmul.mubr.bf16.gmra.mrb[0].mxu0 %v3356
    %v4998 = vpop.f32.mrb[0].mxu0
    %v4999 = vadd.f32 0.0, %v4998
    %v5000 = vpop.f32.mrb[0].mxu0
    %v5001 = vpop.f32.mrb[0].mxu0
    %v5002 = vadd.f32 0.0, %v5001
    %v5003 = vpop.f32.mrb[0].mxu0
    %5004 = vmatprep.mubr.bf16.mxu0 0
    %5005 = vmatmul.mubr.bf16.gmra.mrb[0].mxu0 %v3357
    %v5006 = vpop.f32.mrb[0].mxu0
    %v5007 = vadd.f32 0.0, %v5006
    %v5008 = vpop.f32.mrb[0].mxu0
    %v5009 = vpop.f32.mrb[0].mxu0
    %v5010 = vadd.f32 0.0, %v5009
    %v5011 = vpop.f32.mrb[0].mxu0
    %5012 = vmatprep.mubr.bf16.mxu0 0
    %5013 = vmatmul.mubr.bf16.gmra.mrb[0].mxu0 %v3358
    %v5014 = vpop.f32.mrb[0].mxu0
    %v5015 = vadd.f32 0.0, %v5014
    %v5016 = vpop.f32.mrb[0].mxu0
    %v5017 = vpop.f32.mrb[0].mxu0
    %v5018 = vadd.f32 0.0, %v5017
    %v5019 = vpop.f32.mrb[0].mxu0
    %5020 = vmatprep.mubr.bf16.mxu0 0
    %5021 = vmatmul.mubr.bf16.gmra.mrb[0].mxu0 %v3359
    %v5022 = vpop.f32.mrb[0].mxu0
    %v5023 = vadd.f32 0.0, %v5022
    %v5024 = vpop.f32.mrb[0].mxu0
    %v5025 = vpop.f32.mrb[0].mxu0
    %v5026 = vadd.f32 0.0, %v5025
    %v5027 = vpop.f32.mrb[0].mxu0
    %5028 = vmatprep.mubr.bf16.mxu0 0
    %5029 = vmatmul.mubr.bf16.gmra.mrb[0].mxu0 %v3360
    %v5030 = vpop.f32.mrb[0].mxu0
    %v5031 = vadd.f32 0.0, %v5030
    %v5032 = vpop.f32.mrb[0].mxu0
    %v5033 = vpop.f32.mrb[0].mxu0
    %v5034 = vadd.f32 0.0, %v5033
    %v5035 = vpop.f32.mrb[0].mxu0
    %5036 = vmatprep.mubr.bf16.mxu0 0
    %5037 = vmatmul.mubr.bf16.gmra.mrb[0].mxu0 %v3361
    %v5038 = vpop.f32.mrb[0].mxu0
    %v5039 = vadd.f32 0.0, %v5038
    %v5040 = vpop.f32.mrb[0].mxu0
    %v5041 = vpop.f32.mrb[0].mxu0
    %v5042 = vadd.f32 0.0, %v5041
    %v5043 = vpop.f32.mrb[0].mxu0
    %5044 = vmatprep.mubr.bf16.mxu0 0
    %5045 = vmatmul.mubr.bf16.gmra.mrb[0].mxu0 %v3362
    %v5046 = vpop.f32.mrb[0].mxu0
    %v5047 = vadd.f32 0.0, %v5046
    %v5048 = vpop.f32.mrb[0].mxu0
    %v5049 = vpop.f32.mrb[0].mxu0
    %v5050 = vadd.f32 0.0, %v5049
    %v5051 = vpop.f32.mrb[0].mxu0
    %5052 = vmatprep.mubr.bf16.mxu0 0
    %5053 = vmatmul.mubr.bf16.gmra.mrb[0].mxu0 %v3363
    %v5054 = vpop.f32.mrb[0].mxu0
    %v5055 = vadd.f32 0.0, %v5054
    %v5056 = vpop.f32.mrb[0].mxu0
    %v5057 = vpop.f32.mrb[0].mxu0
    %v5058 = vadd.f32 0.0, %v5057
    %v5059 = vpop.f32.mrb[0].mxu0
    %5060 = vmatprep.mubr.bf16.mxu0 0
    %5061 = vmatmul.mubr.bf16.gmra.mrb[0].mxu0 %v3364
    %v5062 = vpop.f32.mrb[0].mxu0
    %v5063 = vadd.f32 0.0, %v5062
    %v5064 = vpop.f32.mrb[0].mxu0
    %v5065 = vpop.f32.mrb[0].mxu0
    %v5066 = vadd.f32 0.0, %v5065
    %v5067 = vpop.f32.mrb[0].mxu0
    %5068 = vmatprep.mubr.bf16.mxu0 0
    %5069 = vmatmul.mubr.bf16.gmra.mrb[0].mxu0 %v4737
    %v5070 = vpop.f32.mrb[0].mxu0
    %v5071 = vadd.f32 0.0, %v5070
    %v5072 = vpop.f32.mrb[0].mxu0
    %v5073 = vpop.f32.mrb[0].mxu0
    %v5074 = vadd.f32 0.0, %v5073
    %v5075 = vpop.f32.mrb[0].mxu0
    %5076 = vdwg.mxu0
    %v5077 = vadd.f32 %v4636, %v4823
    %v5078 = vadd.f32 %v4637, %v4826
    %v5079 = vadd.f32 %v4638, %v4831
    %v5080 = vadd.f32 %v4639, %v4834
    %v5081 = vadd.f32 %v4640, %v4839
    %v5082 = vadd.f32 %v4641, %v4842
    %v5083 = vadd.f32 %v4642, %v4847
    %v5084 = vadd.f32 %v4643, %v4850
    %v5085 = vadd.f32 %v4644, %v4855
    %v5086 = vadd.f32 %v4645, %v4858
    %v5087 = vadd.f32 %v4646, %v4863
    %v5088 = vadd.f32 %v4647, %v4866
    %v5089 = vadd.f32 %v4648, %v4871
    %v5090 = vadd.f32 %v4649, %v4874
    %v5091 = vadd.f32 %v4650, %v4879
    %v5092 = vadd.f32 %v4651, %v4882
    %v5093 = vadd.f32 %v4652, %v4887
    %v5094 = vadd.f32 %v4653, %v4890
    %v5095 = vadd.f32 %v4654, %v4895
    %v5096 = vadd.f32 %v4655, %v4898
    %v5097 = vadd.f32 %v4656, %v4903
    %v5098 = vadd.f32 %v4657, %v4906
    %v5099 = vadd.f32 %v4658, %v4911
    %v5100 = vadd.f32 %v4659, %v4914
    %v5101 = vadd.f32 %v4660, %v4919
    %v5102 = vadd.f32 %v4661, %v4922
    %v5103 = vadd.f32 %v4662, %v4927
    %v5104 = vadd.f32 %v4663, %v4930
    %v5105 = vadd.f32 %v4664, %v4935
    %v5106 = vadd.f32 %v4665, %v4938
    %v5107 = vadd.f32 %v4666, %v4943
    %v5108 = vadd.f32 %v4667, %v4946
    %v5109 = vadd.f32 %v4668, %v4951
    %v5110 = vadd.f32 %v4669, %v4954
    %v5111 = vadd.f32 %v4670, %v4959
    %v5112 = vadd.f32 %v4671, %v4962
    %v5113 = vadd.f32 %v4672, %v4967
    %v5114 = vadd.f32 %v4673, %v4970
    %v5115 = vadd.f32 %v4674, %v4975
    %v5116 = vadd.f32 %v4675, %v4978
    %v5117 = vadd.f32 %v4676, %v4983
    %v5118 = vadd.f32 %v4677, %v4986
    %v5119 = vadd.f32 %v4678, %v4991
    %v5120 = vadd.f32 %v4679, %v4994
    %v5121 = vadd.f32 %v4680, %v4999
    %v5122 = vadd.f32 %v4681, %v5002
    %v5123 = vadd.f32 %v4682, %v5007
    %v5124 = vadd.f32 %v4683, %v5010
    %v5125 = vadd.f32 %v4684, %v5015
    %v5126 = vadd.f32 %v4685, %v5018
    %v5127 = vadd.f32 %v4686, %v5023
    %v5128 = vadd.f32 %v4687, %v5026
    %v5129 = vadd.f32 %v4688, %v5031
    %v5130 = vadd.f32 %v4689, %v5034
    %v5131 = vadd.f32 %v4690, %v5039
    %v5132 = vadd.f32 %v4691, %v5042
    %v5133 = vadd.f32 %v4692, %v5047
    %v5134 = vadd.f32 %v4693, %v5050
    %v5135 = vadd.f32 %v4694, %v5055
    %v5136 = vadd.f32 %v4695, %v5058
    %v5137 = vadd.f32 %v4696, %v5063
    %v5138 = vadd.f32 %v4697, %v5066
    %v5139 = vadd.f32 %v4698, %v5071
    %v5140 = vadd.f32 %v4699, %v5074
    %v5141 = vld [vmem:[#allocation6 + $0x180] sm:$0xf]
    %v5142 = vld [vmem:[#allocation6 + $0x184] sm:$0xf]
    %v5143 = vld [vmem:[#allocation6 + $0x188] sm:$0xf]
    %v5144 = vld [vmem:[#allocation6 + $0x18c] sm:$0xf]
    %v5145 = vld [vmem:[#allocation6 + $0x190] sm:$0xf]
    %v5146 = vld [vmem:[#allocation6 + $0x194] sm:$0xf]
    %v5147 = vld [vmem:[#allocation6 + $0x198] sm:$0xf]
    %v5148 = vld [vmem:[#allocation6 + $0x19c] sm:$0xf]
    %v5149 = vld [vmem:[#allocation6 + $0x1a0] sm:$0xf]
    %v5150 = vld [vmem:[#allocation6 + $0x1a4] sm:$0xf]
    %v5151 = vld [vmem:[#allocation6 + $0x1a8] sm:$0xf]
    %v5152 = vld [vmem:[#allocation6 + $0x1ac] sm:$0xf]
    %v5153 = vld [vmem:[#allocation6 + $0x1b0] sm:$0xf]
    %v5154 = vld [vmem:[#allocation6 + $0x1b4] sm:$0xf]
    %v5155 = vld [vmem:[#allocation6 + $0x1b8] sm:$0xf]
    %v5156 = vld [vmem:[#allocation6 + $0x1bc] sm:$0xf]
    %v5161 = vunpack.c.l.b16 %v1140
    %v5162 = vunpack.c.l.b16 %v1141
    %v5163 = vunpack.c.l.b16 %v1194
    %v5164 = vunpack.c.l.b16 %v1195
    %v5165 = vpack.c.b16 %v5162, %v5161
    %v5166 = vpack.c.b16 %v5164, %v5163
    %v5185 = vunpack.c.l.b16 %v5141
    %v5186 = vunpack.c.l.b16 %v5142
    %v5187 = vunpack.c.l.b16 %v5143
    %v5188 = vunpack.c.l.b16 %v5144
    %v5189 = vunpack.c.l.b16 %v5145
    %v5190 = vunpack.c.l.b16 %v5146
    %v5191 = vunpack.c.l.b16 %v5147
    %v5192 = vunpack.c.l.b16 %v5148
    %v5193 = vunpack.c.l.b16 %v5149
    %v5194 = vunpack.c.l.b16 %v5150
    %v5195 = vunpack.c.l.b16 %v5151
    %v5196 = vunpack.c.l.b16 %v5152
    %v5197 = vunpack.c.l.b16 %v5153
    %v5198 = vunpack.c.l.b16 %v5154
    %v5199 = vunpack.c.l.b16 %v5155
    %v5200 = vunpack.c.l.b16 %v5156
    %v5201 = vpack.c.b16 %v5186, %v5185
    %v5202 = vpack.c.b16 %v5188, %v5187
    %v5203 = vpack.c.b16 %v5190, %v5189
    %v5204 = vpack.c.b16 %v5192, %v5191
    %v5205 = vpack.c.b16 %v5194, %v5193
    %v5206 = vpack.c.b16 %v5196, %v5195
    %v5207 = vpack.c.b16 %v5198, %v5197
    %v5208 = vpack.c.b16 %v5200, %v5199
    %5217 = vmatprep.subr.bf16.mxu0 0
    %5218 = vmatpush1.bf16.msra.mxu0 %v5201
    %5219 = vmatprep.subr.bf16.mxu0 0
    %5220 = vmatpush1.bf16.msra.mxu0 %v5202
    %5221 = vmatprep.subr.bf16.mxu0 0
    %5222 = vmatpush1.bf16.msra.mxu0 %v5203
    %5223 = vmatprep.subr.bf16.mxu0 0
    %5224 = vmatpush1.bf16.msra.mxu0 %v5204
    %5225 = vmatprep.subr.bf16.mxu0 0
    %5226 = vmatpush1.bf16.msra.mxu0 %v5205
    %5227 = vmatprep.subr.bf16.mxu0 0
    %5228 = vmatpush1.bf16.msra.mxu0 %v5206
    %5229 = vmatprep.subr.bf16.mxu0 0
    %5230 = vmatpush1.bf16.msra.mxu0 %v5207
    %5231 = vmatprep.subr.bf16.mxu0 0
    %5232 = vmatpush1.bf16.msra.mxu0 %v5208
    %5233 = vmatprep.subr.bf16.mxu0 0
    %5234 = vmatpush1.bf16.msra.mxu0 0
    %5235 = vmatprep.subr.bf16.mxu0 0
    %5236 = vmatpush1.bf16.msra.mxu0 0
    %5237 = vmatprep.subr.bf16.mxu0 0
    %5238 = vmatpush1.bf16.msra.mxu0 0
    %5239 = vmatprep.subr.bf16.mxu0 0
    %5240 = vmatpush1.bf16.msra.mxu0 0
    %5241 = vmatprep.subr.bf16.mxu0 0
    %5242 = vmatpush1.bf16.msra.mxu0 0
    %5243 = vmatprep.subr.bf16.mxu0 0
    %5244 = vmatpush1.bf16.msra.mxu0 0
    %5245 = vmatprep.subr.bf16.mxu0 0
    %5246 = vmatpush1.bf16.msra.mxu0 0
    %5247 = vmatprep.subr.bf16.mxu0 0
    %5248 = vmatpush1.bf16.msra.mxu0 0
    %5249 = vmatprep.mubr.bf16.mxu0 0
    %5250 = vmatmul.mubr.bf16.gmra.mrb[0].mxu0 %v2595
    %v5251 = vpop.f32.mrb[0].mxu0
    %v5252 = vadd.f32 0.0, %v5251
    %v5253 = vpop.f32.mrb[0].mxu0
    %v5254 = vpop.f32.mrb[0].mxu0
    %v5255 = vadd.f32 0.0, %v5254
    %v5256 = vpop.f32.mrb[0].mxu0
    %5257 = vmatprep.mubr.bf16.mxu0 0
    %5258 = vmatmul.mubr.bf16.gmra.mrb[0].mxu0 %v2596
    %v5259 = vpop.f32.mrb[0].mxu0
    %v5260 = vadd.f32 0.0, %v5259
    %v5261 = vpop.f32.mrb[0].mxu0
    %v5262 = vpop.f32.mrb[0].mxu0
    %v5263 = vadd.f32 0.0, %v5262
    %v5264 = vpop.f32.mrb[0].mxu0
    %5265 = vmatprep.mubr.bf16.mxu0 0
    %5266 = vmatmul.mubr.bf16.gmra.mrb[0].mxu0 %v2597
    %v5267 = vpop.f32.mrb[0].mxu0
    %v5268 = vadd.f32 0.0, %v5267
    %v5269 = vpop.f32.mrb[0].mxu0
    %v5270 = vpop.f32.mrb[0].mxu0
    %v5271 = vadd.f32 0.0, %v5270
    %v5272 = vpop.f32.mrb[0].mxu0
    %5273 = vmatprep.mubr.bf16.mxu0 0
    %5274 = vmatmul.mubr.bf16.gmra.mrb[0].mxu0 %v2598
    %v5275 = vpop.f32.mrb[0].mxu0
    %v5276 = vadd.f32 0.0, %v5275
    %v5277 = vpop.f32.mrb[0].mxu0
    %v5278 = vpop.f32.mrb[0].mxu0
    %v5279 = vadd.f32 0.0, %v5278
    %v5280 = vpop.f32.mrb[0].mxu0
    %5281 = vmatprep.mubr.bf16.mxu0 0
    %5282 = vmatmul.mubr.bf16.gmra.mrb[0].mxu0 %v2599
    %v5283 = vpop.f32.mrb[0].mxu0
    %v5284 = vadd.f32 0.0, %v5283
    %v5285 = vpop.f32.mrb[0].mxu0
    %v5286 = vpop.f32.mrb[0].mxu0
    %v5287 = vadd.f32 0.0, %v5286
    %v5288 = vpop.f32.mrb[0].mxu0
    %5289 = vmatprep.mubr.bf16.mxu0 0
    %5290 = vmatmul.mubr.bf16.gmra.mrb[0].mxu0 %v2600
    %v5291 = vpop.f32.mrb[0].mxu0
    %v5292 = vadd.f32 0.0, %v5291
    %v5293 = vpop.f32.mrb[0].mxu0
    %v5294 = vpop.f32.mrb[0].mxu0
    %v5295 = vadd.f32 0.0, %v5294
    %v5296 = vpop.f32.mrb[0].mxu0
    %5297 = vmatprep.mubr.bf16.mxu0 0
    %5298 = vmatmul.mubr.bf16.gmra.mrb[0].mxu0 %v2601
    %v5299 = vpop.f32.mrb[0].mxu0
    %v5300 = vadd.f32 0.0, %v5299
    %v5301 = vpop.f32.mrb[0].mxu0
    %v5302 = vpop.f32.mrb[0].mxu0
    %v5303 = vadd.f32 0.0, %v5302
    %v5304 = vpop.f32.mrb[0].mxu0
    %5305 = vmatprep.mubr.bf16.mxu0 0
    %5306 = vmatmul.mubr.bf16.gmra.mrb[0].mxu0 %v2602
    %v5307 = vpop.f32.mrb[0].mxu0
    %v5308 = vadd.f32 0.0, %v5307
    %v5309 = vpop.f32.mrb[0].mxu0
    %v5310 = vpop.f32.mrb[0].mxu0
    %v5311 = vadd.f32 0.0, %v5310
    %v5312 = vpop.f32.mrb[0].mxu0
    %5313 = vmatprep.mubr.bf16.mxu0 0
    %5314 = vmatmul.mubr.bf16.gmra.mrb[0].mxu0 %v2603
    %v5315 = vpop.f32.mrb[0].mxu0
    %v5316 = vadd.f32 0.0, %v5315
    %v5317 = vpop.f32.mrb[0].mxu0
    %v5318 = vpop.f32.mrb[0].mxu0
    %v5319 = vadd.f32 0.0, %v5318
    %v5320 = vpop.f32.mrb[0].mxu0
    %5321 = vmatprep.mubr.bf16.mxu0 0
    %5322 = vmatmul.mubr.bf16.gmra.mrb[0].mxu0 %v2604
    %v5323 = vpop.f32.mrb[0].mxu0
    %v5324 = vadd.f32 0.0, %v5323
    %v5325 = vpop.f32.mrb[0].mxu0
    %v5326 = vpop.f32.mrb[0].mxu0
    %v5327 = vadd.f32 0.0, %v5326
    %v5328 = vpop.f32.mrb[0].mxu0
    %5329 = vmatprep.mubr.bf16.mxu0 0
    %5330 = vmatmul.mubr.bf16.gmra.mrb[0].mxu0 %v2605
    %v5331 = vpop.f32.mrb[0].mxu0
    %v5332 = vadd.f32 0.0, %v5331
    %v5333 = vpop.f32.mrb[0].mxu0
    %v5334 = vpop.f32.mrb[0].mxu0
    %v5335 = vadd.f32 0.0, %v5334
    %v5336 = vpop.f32.mrb[0].mxu0
    %5337 = vmatprep.mubr.bf16.mxu0 0
    %5338 = vmatmul.mubr.bf16.gmra.mrb[0].mxu0 %v2606
    %v5339 = vpop.f32.mrb[0].mxu0
    %v5340 = vadd.f32 0.0, %v5339
    %v5341 = vpop.f32.mrb[0].mxu0
    %v5342 = vpop.f32.mrb[0].mxu0
    %v5343 = vadd.f32 0.0, %v5342
    %v5344 = vpop.f32.mrb[0].mxu0
    %5345 = vmatprep.mubr.bf16.mxu0 0
    %5346 = vmatmul.mubr.bf16.gmra.mrb[0].mxu0 %v2607
    %v5347 = vpop.f32.mrb[0].mxu0
    %v5348 = vadd.f32 0.0, %v5347
    %v5349 = vpop.f32.mrb[0].mxu0
    %v5350 = vpop.f32.mrb[0].mxu0
    %v5351 = vadd.f32 0.0, %v5350
    %v5352 = vpop.f32.mrb[0].mxu0
    %5353 = vmatprep.mubr.bf16.mxu0 0
    %5354 = vmatmul.mubr.bf16.gmra.mrb[0].mxu0 %v2608
    %v5355 = vpop.f32.mrb[0].mxu0
    %v5356 = vadd.f32 0.0, %v5355
    %v5357 = vpop.f32.mrb[0].mxu0
    %v5358 = vpop.f32.mrb[0].mxu0
    %v5359 = vadd.f32 0.0, %v5358
    %v5360 = vpop.f32.mrb[0].mxu0
    %5361 = vmatprep.mubr.bf16.mxu0 0
    %5362 = vmatmul.mubr.bf16.gmra.mrb[0].mxu0 %v3822
    %v5363 = vpop.f32.mrb[0].mxu0
    %v5364 = vadd.f32 0.0, %v5363
    %v5365 = vpop.f32.mrb[0].mxu0
    %v5366 = vpop.f32.mrb[0].mxu0
    %v5367 = vadd.f32 0.0, %v5366
    %v5368 = vpop.f32.mrb[0].mxu0
    %5369 = vmatprep.mubr.bf16.mxu0 0
    %5370 = vmatmul.mubr.bf16.gmra.mrb[0].mxu0 %v5165
    %v5371 = vpop.f32.mrb[0].mxu0
    %v5372 = vadd.f32 0.0, %v5371
    %v5373 = vpop.f32.mrb[0].mxu0
    %v5374 = vpop.f32.mrb[0].mxu0
    %v5375 = vadd.f32 0.0, %v5374
    %v5376 = vpop.f32.mrb[0].mxu0
    %5377 = vmatprep.mubr.bf16.mxu0 0
    %5378 = vmatmul.mubr.bf16.gmra.mrb[0].mxu0 %v2611
    %v5379 = vpop.f32.mrb[0].mxu0
    %v5380 = vadd.f32 0.0, %v5379
    %v5381 = vpop.f32.mrb[0].mxu0
    %v5382 = vpop.f32.mrb[0].mxu0
    %v5383 = vadd.f32 0.0, %v5382
    %v5384 = vpop.f32.mrb[0].mxu0
    %5385 = vmatprep.mubr.bf16.mxu0 0
    %5386 = vmatmul.mubr.bf16.gmra.mrb[0].mxu0 %v2612
    %v5387 = vpop.f32.mrb[0].mxu0
    %v5388 = vadd.f32 0.0, %v5387
    %v5389 = vpop.f32.mrb[0].mxu0
    %v5390 = vpop.f32.mrb[0].mxu0
    %v5391 = vadd.f32 0.0, %v5390
    %v5392 = vpop.f32.mrb[0].mxu0
    %5393 = vmatprep.mubr.bf16.mxu0 0
    %5394 = vmatmul.mubr.bf16.gmra.mrb[0].mxu0 %v2613
    %v5395 = vpop.f32.mrb[0].mxu0
    %v5396 = vadd.f32 0.0, %v5395
    %v5397 = vpop.f32.mrb[0].mxu0
    %v5398 = vpop.f32.mrb[0].mxu0
    %v5399 = vadd.f32 0.0, %v5398
    %v5400 = vpop.f32.mrb[0].mxu0
    %5401 = vmatprep.mubr.bf16.mxu0 0
    %5402 = vmatmul.mubr.bf16.gmra.mrb[0].mxu0 %v2614
    %v5403 = vpop.f32.mrb[0].mxu0
    %v5404 = vadd.f32 0.0, %v5403
    %v5405 = vpop.f32.mrb[0].mxu0
    %v5406 = vpop.f32.mrb[0].mxu0
    %v5407 = vadd.f32 0.0, %v5406
    %v5408 = vpop.f32.mrb[0].mxu0
    %5409 = vmatprep.mubr.bf16.mxu0 0
    %5410 = vmatmul.mubr.bf16.gmra.mrb[0].mxu0 %v2615
    %v5411 = vpop.f32.mrb[0].mxu0
    %v5412 = vadd.f32 0.0, %v5411
    %v5413 = vpop.f32.mrb[0].mxu0
    %v5414 = vpop.f32.mrb[0].mxu0
    %v5415 = vadd.f32 0.0, %v5414
    %v5416 = vpop.f32.mrb[0].mxu0
    %5417 = vmatprep.mubr.bf16.mxu0 0
    %5418 = vmatmul.mubr.bf16.gmra.mrb[0].mxu0 %v2616
    %v5419 = vpop.f32.mrb[0].mxu0
    %v5420 = vadd.f32 0.0, %v5419
    %v5421 = vpop.f32.mrb[0].mxu0
    %v5422 = vpop.f32.mrb[0].mxu0
    %v5423 = vadd.f32 0.0, %v5422
    %v5424 = vpop.f32.mrb[0].mxu0
    %5425 = vmatprep.mubr.bf16.mxu0 0
    %5426 = vmatmul.mubr.bf16.gmra.mrb[0].mxu0 %v2617
    %v5427 = vpop.f32.mrb[0].mxu0
    %v5428 = vadd.f32 0.0, %v5427
    %v5429 = vpop.f32.mrb[0].mxu0
    %v5430 = vpop.f32.mrb[0].mxu0
    %v5431 = vadd.f32 0.0, %v5430
    %v5432 = vpop.f32.mrb[0].mxu0
    %5433 = vmatprep.mubr.bf16.mxu0 0
    %5434 = vmatmul.mubr.bf16.gmra.mrb[0].mxu0 %v2618
    %v5435 = vpop.f32.mrb[0].mxu0
    %v5436 = vadd.f32 0.0, %v5435
    %v5437 = vpop.f32.mrb[0].mxu0
    %v5438 = vpop.f32.mrb[0].mxu0
    %v5439 = vadd.f32 0.0, %v5438
    %v5440 = vpop.f32.mrb[0].mxu0
    %5441 = vmatprep.mubr.bf16.mxu0 0
    %5442 = vmatmul.mubr.bf16.gmra.mrb[0].mxu0 %v2619
    %v5443 = vpop.f32.mrb[0].mxu0
    %v5444 = vadd.f32 0.0, %v5443
    %v5445 = vpop.f32.mrb[0].mxu0
    %v5446 = vpop.f32.mrb[0].mxu0
    %v5447 = vadd.f32 0.0, %v5446
    %v5448 = vpop.f32.mrb[0].mxu0
    %5449 = vmatprep.mubr.bf16.mxu0 0
    %5450 = vmatmul.mubr.bf16.gmra.mrb[0].mxu0 %v2620
    %v5451 = vpop.f32.mrb[0].mxu0
    %v5452 = vadd.f32 0.0, %v5451
    %v5453 = vpop.f32.mrb[0].mxu0
    %v5454 = vpop.f32.mrb[0].mxu0
    %v5455 = vadd.f32 0.0, %v5454
    %v5456 = vpop.f32.mrb[0].mxu0
    %5457 = vmatprep.mubr.bf16.mxu0 0
    %5458 = vmatmul.mubr.bf16.gmra.mrb[0].mxu0 %v2621
    %v5459 = vpop.f32.mrb[0].mxu0
    %v5460 = vadd.f32 0.0, %v5459
    %v5461 = vpop.f32.mrb[0].mxu0
    %v5462 = vpop.f32.mrb[0].mxu0
    %v5463 = vadd.f32 0.0, %v5462
    %v5464 = vpop.f32.mrb[0].mxu0
    %5465 = vmatprep.mubr.bf16.mxu0 0
    %5466 = vmatmul.mubr.bf16.gmra.mrb[0].mxu0 %v2622
    %v5467 = vpop.f32.mrb[0].mxu0
    %v5468 = vadd.f32 0.0, %v5467
    %v5469 = vpop.f32.mrb[0].mxu0
    %v5470 = vpop.f32.mrb[0].mxu0
    %v5471 = vadd.f32 0.0, %v5470
    %v5472 = vpop.f32.mrb[0].mxu0
    %5473 = vmatprep.mubr.bf16.mxu0 0
    %5474 = vmatmul.mubr.bf16.gmra.mrb[0].mxu0 %v2623
    %v5475 = vpop.f32.mrb[0].mxu0
    %v5476 = vadd.f32 0.0, %v5475
    %v5477 = vpop.f32.mrb[0].mxu0
    %v5478 = vpop.f32.mrb[0].mxu0
    %v5479 = vadd.f32 0.0, %v5478
    %v5480 = vpop.f32.mrb[0].mxu0
    %5481 = vmatprep.mubr.bf16.mxu0 0
    %5482 = vmatmul.mubr.bf16.gmra.mrb[0].mxu0 %v2624
    %v5483 = vpop.f32.mrb[0].mxu0
    %v5484 = vadd.f32 0.0, %v5483
    %v5485 = vpop.f32.mrb[0].mxu0
    %v5486 = vpop.f32.mrb[0].mxu0
    %v5487 = vadd.f32 0.0, %v5486
    %v5488 = vpop.f32.mrb[0].mxu0
    %5489 = vmatprep.mubr.bf16.mxu0 0
    %5490 = vmatmul.mubr.bf16.gmra.mrb[0].mxu0 %v3823
    %v5491 = vpop.f32.mrb[0].mxu0
    %v5492 = vadd.f32 0.0, %v5491
    %v5493 = vpop.f32.mrb[0].mxu0
    %v5494 = vpop.f32.mrb[0].mxu0
    %v5495 = vadd.f32 0.0, %v5494
    %v5496 = vpop.f32.mrb[0].mxu0
    %5497 = vmatprep.mubr.bf16.mxu0 0
    %5498 = vmatmul.mubr.bf16.gmra.mrb[0].mxu0 %v5166
    %v5499 = vpop.f32.mrb[0].mxu0
    %v5500 = vadd.f32 0.0, %v5499
    %v5501 = vpop.f32.mrb[0].mxu0
    %v5502 = vpop.f32.mrb[0].mxu0
    %v5503 = vadd.f32 0.0, %v5502
    %v5504 = vpop.f32.mrb[0].mxu0
    %5505 = vdwg.mxu0
    %v5506 = vadd.f32 %v5077, %v5252
    %v5507 = vadd.f32 %v5078, %v5255
    %v5508 = vadd.f32 %v5079, %v5260
    %v5509 = vadd.f32 %v5080, %v5263
    %v5510 = vadd.f32 %v5081, %v5268
    %v5511 = vadd.f32 %v5082, %v5271
    %v5512 = vadd.f32 %v5083, %v5276
    %v5513 = vadd.f32 %v5084, %v5279
    %v5514 = vadd.f32 %v5085, %v5284
    %v5515 = vadd.f32 %v5086, %v5287
    %v5516 = vadd.f32 %v5087, %v5292
    %v5517 = vadd.f32 %v5088, %v5295
    %v5518 = vadd.f32 %v5089, %v5300
    %v5519 = vadd.f32 %v5090, %v5303
    %v5520 = vadd.f32 %v5091, %v5308
    %v5521 = vadd.f32 %v5092, %v5311
    %v5522 = vadd.f32 %v5093, %v5316
    %v5523 = vadd.f32 %v5094, %v5319
    %v5524 = vadd.f32 %v5095, %v5324
    %v5525 = vadd.f32 %v5096, %v5327
    %v5526 = vadd.f32 %v5097, %v5332
    %v5527 = vadd.f32 %v5098, %v5335
    %v5528 = vadd.f32 %v5099, %v5340
    %v5529 = vadd.f32 %v5100, %v5343
    %v5530 = vadd.f32 %v5101, %v5348
    %v5531 = vadd.f32 %v5102, %v5351
    %v5532 = vadd.f32 %v5103, %v5356
    %v5533 = vadd.f32 %v5104, %v5359
    %v5534 = vadd.f32 %v5105, %v5364
    %v5535 = vadd.f32 %v5106, %v5367
    %v5536 = vadd.f32 %v5107, %v5372
    %v5537 = vadd.f32 %v5108, %v5375
    %v5538 = vadd.f32 %v5109, %v5380
    %v5539 = vadd.f32 %v5110, %v5383
    %v5540 = vadd.f32 %v5111, %v5388
    %v5541 = vadd.f32 %v5112, %v5391
    %v5542 = vadd.f32 %v5113, %v5396
    %v5543 = vadd.f32 %v5114, %v5399
    %v5544 = vadd.f32 %v5115, %v5404
    %v5545 = vadd.f32 %v5116, %v5407
    %v5546 = vadd.f32 %v5117, %v5412
    %v5547 = vadd.f32 %v5118, %v5415
    %v5548 = vadd.f32 %v5119, %v5420
    %v5549 = vadd.f32 %v5120, %v5423
    %v5550 = vadd.f32 %v5121, %v5428
    %v5551 = vadd.f32 %v5122, %v5431
    %v5552 = vadd.f32 %v5123, %v5436
    %v5553 = vadd.f32 %v5124, %v5439
    %v5554 = vadd.f32 %v5125, %v5444
    %v5555 = vadd.f32 %v5126, %v5447
    %v5556 = vadd.f32 %v5127, %v5452
    %v5557 = vadd.f32 %v5128, %v5455
    %v5558 = vadd.f32 %v5129, %v5460
    %v5559 = vadd.f32 %v5130, %v5463
    %v5560 = vadd.f32 %v5131, %v5468
    %v5561 = vadd.f32 %v5132, %v5471
    %v5562 = vadd.f32 %v5133, %v5476
    %v5563 = vadd.f32 %v5134, %v5479
    %v5564 = vadd.f32 %v5135, %v5484
    %v5565 = vadd.f32 %v5136, %v5487
    %v5566 = vadd.f32 %v5137, %v5492
    %v5567 = vadd.f32 %v5138, %v5495
    %v5568 = vadd.f32 %v5139, %v5500
    %v5569 = vadd.f32 %v5140, %v5503
    %v5571 = vshrl.u32 %v1140, 16
    %v5573 = vrot.slane %v5571, 4
    %v5574 = vshll.u32 %v1140, 16
    %v5576 = vrot.slane %v5574, 5
    %v5577 = vor.u32 %v5573, %v5576
    %v5578 = vrot.slane %v5577, 4
    %v5580 = vshll.u32 %v1141, 16
    %v5582 = vrot.slane %v5580, 5
    %v5583 = vsel %vm1215, %v5578, %v5582
    %v5584 = vshrl.u32 %v1141, 16
    %v5586 = vrot.slane %v5584, 4
    %v5587 = vor.u32 %v5586, %v5582
    %v5588 = vrot.slane %v5587, 4
    %v5590 = vshll.u32 %v1142, 16
    %v5592 = vrot.slane %v5590, 5
    %v5593 = vsel %vm1215, %v5588, %v5592
    %v5595 = vshrl.u32 %v1194, 16
    %v5597 = vrot.slane %v5595, 4
    %v5598 = vshll.u32 %v1194, 16
    %v5600 = vrot.slane %v5598, 5
    %v5601 = vor.u32 %v5597, %v5600
    %v5602 = vrot.slane %v5601, 4
    %v5604 = vshll.u32 %v1195, 16
    %v5606 = vrot.slane %v5604, 5
    %v5607 = vsel %vm1215, %v5602, %v5606
    %v5608 = vshrl.u32 %v1195, 16
    %v5610 = vrot.slane %v5608, 4
    %v5611 = vor.u32 %v5610, %v5606
    %v5612 = vrot.slane %v5611, 4
    %v5614 = vshll.u32 %v1196, 16
    %v5616 = vrot.slane %v5614, 5
    %v5617 = vsel %vm1215, %v5612, %v5616
    %v5618 = vld [vmem:[#allocation6 + $0x1c0] sm:$0xf]
    %v5619 = vld [vmem:[#allocation6 + $0x1c4] sm:$0xf]
    %v5620 = vld [vmem:[#allocation6 + $0x1c8] sm:$0xf]
    %v5621 = vld [vmem:[#allocation6 + $0x1cc] sm:$0xf]
    %v5622 = vld [vmem:[#allocation6 + $0x1d0] sm:$0xf]
    %v5623 = vld [vmem:[#allocation6 + $0x1d4] sm:$0xf]
    %v5624 = vld [vmem:[#allocation6 + $0x1d8] sm:$0xf]
    %v5625 = vld [vmem:[#allocation6 + $0x1dc] sm:$0xf]
    %v5626 = vld [vmem:[#allocation6 + $0x1e0] sm:$0xf]
    %v5627 = vld [vmem:[#allocation6 + $0x1e4] sm:$0xf]
    %v5628 = vld [vmem:[#allocation6 + $0x1e8] sm:$0xf]
    %v5629 = vld [vmem:[#allocation6 + $0x1ec] sm:$0xf]
    %v5630 = vld [vmem:[#allocation6 + $0x1f0] sm:$0xf]
    %v5631 = vld [vmem:[#allocation6 + $0x1f4] sm:$0xf]
    %v5632 = vld [vmem:[#allocation6 + $0x1f8] sm:$0xf]
    %v5633 = vld [vmem:[#allocation6 + $0x1fc] sm:$0xf]
    %v5634 = vunpack.c.l.b16 %v5583
    %v5635 = vunpack.c.l.b16 %v5593
    %v5636 = vunpack.c.l.b16 %v5607
    %v5637 = vunpack.c.l.b16 %v5617
    %v5638 = vpack.c.b16 %v5635, %v5634
    %v5639 = vpack.c.b16 %v5637, %v5636
    %v5658 = vunpack.c.l.b16 %v5618
    %v5659 = vunpack.c.l.b16 %v5619
    %v5660 = vunpack.c.l.b16 %v5620
    %v5661 = vunpack.c.l.b16 %v5621
    %v5662 = vunpack.c.l.b16 %v5622
    %v5663 = vunpack.c.l.b16 %v5623
    %v5664 = vunpack.c.l.b16 %v5624
    %v5665 = vunpack.c.l.b16 %v5625
    %v5666 = vunpack.c.l.b16 %v5626
    %v5667 = vunpack.c.l.b16 %v5627
    %v5668 = vunpack.c.l.b16 %v5628
    %v5669 = vunpack.c.l.b16 %v5629
    %v5670 = vunpack.c.l.b16 %v5630
    %v5671 = vunpack.c.l.b16 %v5631
    %v5672 = vunpack.c.l.b16 %v5632
    %v5673 = vunpack.c.l.b16 %v5633
    %v5674 = vpack.c.b16 %v5659, %v5658
    %v5675 = vpack.c.b16 %v5661, %v5660
    %v5676 = vpack.c.b16 %v5663, %v5662
    %v5677 = vpack.c.b16 %v5665, %v5664
    %v5678 = vpack.c.b16 %v5667, %v5666
    %v5679 = vpack.c.b16 %v5669, %v5668
    %v5680 = vpack.c.b16 %v5671, %v5670
    %v5681 = vpack.c.b16 %v5673, %v5672
    %5690 = vmatprep.subr.bf16.mxu0 0
    %5691 = vmatpush1.bf16.msra.mxu0 %v5674
    %5692 = vmatprep.subr.bf16.mxu0 0
    %5693 = vmatpush1.bf16.msra.mxu0 %v5675
    %5694 = vmatprep.subr.bf16.mxu0 0
    %5695 = vmatpush1.bf16.msra.mxu0 %v5676
    %5696 = vmatprep.subr.bf16.mxu0 0
    %5697 = vmatpush1.bf16.msra.mxu0 %v5677
    %5698 = vmatprep.subr.bf16.mxu0 0
    %5699 = vmatpush1.bf16.msra.mxu0 %v5678
    %5700 = vmatprep.subr.bf16.mxu0 0
    %5701 = vmatpush1.bf16.msra.mxu0 %v5679
    %5702 = vmatprep.subr.bf16.mxu0 0
    %5703 = vmatpush1.bf16.msra.mxu0 %v5680
    %5704 = vmatprep.subr.bf16.mxu0 0
    %5705 = vmatpush1.bf16.msra.mxu0 %v5681
    %5706 = vmatprep.subr.bf16.mxu0 0
    %5707 = vmatpush1.bf16.msra.mxu0 0
    %5708 = vmatprep.subr.bf16.mxu0 0
    %5709 = vmatpush1.bf16.msra.mxu0 0
    %5710 = vmatprep.subr.bf16.mxu0 0
    %5711 = vmatpush1.bf16.msra.mxu0 0
    %5712 = vmatprep.subr.bf16.mxu0 0
    %5713 = vmatpush1.bf16.msra.mxu0 0
    %5714 = vmatprep.subr.bf16.mxu0 0
    %5715 = vmatpush1.bf16.msra.mxu0 0
    %5716 = vmatprep.subr.bf16.mxu0 0
    %5717 = vmatpush1.bf16.msra.mxu0 0
    %5718 = vmatprep.subr.bf16.mxu0 0
    %5719 = vmatpush1.bf16.msra.mxu0 0
    %5720 = vmatprep.subr.bf16.mxu0 0
    %5721 = vmatpush1.bf16.msra.mxu0 0
    %5722 = vmatprep.mubr.bf16.mxu0 0
    %5723 = vmatmul.mubr.bf16.gmra.mrb[0].mxu0 %v2066
    %v5724 = vpop.f32.mrb[0].mxu0
    %v5725 = vadd.f32 0.0, %v5724
    %v5726 = vpop.f32.mrb[0].mxu0
    %v5727 = vpop.f32.mrb[0].mxu0
    %v5728 = vadd.f32 0.0, %v5727
    %v5729 = vpop.f32.mrb[0].mxu0
    %5730 = vmatprep.mubr.bf16.mxu0 0
    %5731 = vmatmul.mubr.bf16.gmra.mrb[0].mxu0 %v2067
    %v5732 = vpop.f32.mrb[0].mxu0
    %v5733 = vadd.f32 0.0, %v5732
    %v5734 = vpop.f32.mrb[0].mxu0
    %v5735 = vpop.f32.mrb[0].mxu0
    %v5736 = vadd.f32 0.0, %v5735
    %v5737 = vpop.f32.mrb[0].mxu0
    %5738 = vmatprep.mubr.bf16.mxu0 0
    %5739 = vmatmul.mubr.bf16.gmra.mrb[0].mxu0 %v2068
    %v5740 = vpop.f32.mrb[0].mxu0
    %v5741 = vadd.f32 0.0, %v5740
    %v5742 = vpop.f32.mrb[0].mxu0
    %v5743 = vpop.f32.mrb[0].mxu0
    %v5744 = vadd.f32 0.0, %v5743
    %v5745 = vpop.f32.mrb[0].mxu0
    %5746 = vmatprep.mubr.bf16.mxu0 0
    %5747 = vmatmul.mubr.bf16.gmra.mrb[0].mxu0 %v2069
    %v5748 = vpop.f32.mrb[0].mxu0
    %v5749 = vadd.f32 0.0, %v5748
    %v5750 = vpop.f32.mrb[0].mxu0
    %v5751 = vpop.f32.mrb[0].mxu0
    %v5752 = vadd.f32 0.0, %v5751
    %v5753 = vpop.f32.mrb[0].mxu0
    %5754 = vmatprep.mubr.bf16.mxu0 0
    %5755 = vmatmul.mubr.bf16.gmra.mrb[0].mxu0 %v2070
    %v5756 = vpop.f32.mrb[0].mxu0
    %v5757 = vadd.f32 0.0, %v5756
    %v5758 = vpop.f32.mrb[0].mxu0
    %v5759 = vpop.f32.mrb[0].mxu0
    %v5760 = vadd.f32 0.0, %v5759
    %v5761 = vpop.f32.mrb[0].mxu0
    %5762 = vmatprep.mubr.bf16.mxu0 0
    %5763 = vmatmul.mubr.bf16.gmra.mrb[0].mxu0 %v2071
    %v5764 = vpop.f32.mrb[0].mxu0
    %v5765 = vadd.f32 0.0, %v5764
    %v5766 = vpop.f32.mrb[0].mxu0
    %v5767 = vpop.f32.mrb[0].mxu0
    %v5768 = vadd.f32 0.0, %v5767
    %v5769 = vpop.f32.mrb[0].mxu0
    %5770 = vmatprep.mubr.bf16.mxu0 0
    %5771 = vmatmul.mubr.bf16.gmra.mrb[0].mxu0 %v2072
    %v5772 = vpop.f32.mrb[0].mxu0
    %v5773 = vadd.f32 0.0, %v5772
    %v5774 = vpop.f32.mrb[0].mxu0
    %v5775 = vpop.f32.mrb[0].mxu0
    %v5776 = vadd.f32 0.0, %v5775
    %v5777 = vpop.f32.mrb[0].mxu0
    %5778 = vmatprep.mubr.bf16.mxu0 0
    %5779 = vmatmul.mubr.bf16.gmra.mrb[0].mxu0 %v2073
    %v5780 = vpop.f32.mrb[0].mxu0
    %v5781 = vadd.f32 0.0, %v5780
    %v5782 = vpop.f32.mrb[0].mxu0
    %v5783 = vpop.f32.mrb[0].mxu0
    %v5784 = vadd.f32 0.0, %v5783
    %v5785 = vpop.f32.mrb[0].mxu0
    %5786 = vmatprep.mubr.bf16.mxu0 0
    %5787 = vmatmul.mubr.bf16.gmra.mrb[0].mxu0 %v2074
    %v5788 = vpop.f32.mrb[0].mxu0
    %v5789 = vadd.f32 0.0, %v5788
    %v5790 = vpop.f32.mrb[0].mxu0
    %v5791 = vpop.f32.mrb[0].mxu0
    %v5792 = vadd.f32 0.0, %v5791
    %v5793 = vpop.f32.mrb[0].mxu0
    %5794 = vmatprep.mubr.bf16.mxu0 0
    %5795 = vmatmul.mubr.bf16.gmra.mrb[0].mxu0 %v2075
    %v5796 = vpop.f32.mrb[0].mxu0
    %v5797 = vadd.f32 0.0, %v5796
    %v5798 = vpop.f32.mrb[0].mxu0
    %v5799 = vpop.f32.mrb[0].mxu0
    %v5800 = vadd.f32 0.0, %v5799
    %v5801 = vpop.f32.mrb[0].mxu0
    %5802 = vmatprep.mubr.bf16.mxu0 0
    %5803 = vmatmul.mubr.bf16.gmra.mrb[0].mxu0 %v2076
    %v5804 = vpop.f32.mrb[0].mxu0
    %v5805 = vadd.f32 0.0, %v5804
    %v5806 = vpop.f32.mrb[0].mxu0
    %v5807 = vpop.f32.mrb[0].mxu0
    %v5808 = vadd.f32 0.0, %v5807
    %v5809 = vpop.f32.mrb[0].mxu0
    %5810 = vmatprep.mubr.bf16.mxu0 0
    %5811 = vmatmul.mubr.bf16.gmra.mrb[0].mxu0 %v2077
    %v5812 = vpop.f32.mrb[0].mxu0
    %v5813 = vadd.f32 0.0, %v5812
    %v5814 = vpop.f32.mrb[0].mxu0
    %v5815 = vpop.f32.mrb[0].mxu0
    %v5816 = vadd.f32 0.0, %v5815
    %v5817 = vpop.f32.mrb[0].mxu0
    %5818 = vmatprep.mubr.bf16.mxu0 0
    %5819 = vmatmul.mubr.bf16.gmra.mrb[0].mxu0 %v2078
    %v5820 = vpop.f32.mrb[0].mxu0
    %v5821 = vadd.f32 0.0, %v5820
    %v5822 = vpop.f32.mrb[0].mxu0
    %v5823 = vpop.f32.mrb[0].mxu0
    %v5824 = vadd.f32 0.0, %v5823
    %v5825 = vpop.f32.mrb[0].mxu0
    %5826 = vmatprep.mubr.bf16.mxu0 0
    %5827 = vmatmul.mubr.bf16.gmra.mrb[0].mxu0 %v2079
    %v5828 = vpop.f32.mrb[0].mxu0
    %v5829 = vadd.f32 0.0, %v5828
    %v5830 = vpop.f32.mrb[0].mxu0
    %v5831 = vpop.f32.mrb[0].mxu0
    %v5832 = vadd.f32 0.0, %v5831
    %v5833 = vpop.f32.mrb[0].mxu0
    %5834 = vmatprep.mubr.bf16.mxu0 0
    %5835 = vmatmul.mubr.bf16.gmra.mrb[0].mxu0 %v4295
    %v5836 = vpop.f32.mrb[0].mxu0
    %v5837 = vadd.f32 0.0, %v5836
    %v5838 = vpop.f32.mrb[0].mxu0
    %v5839 = vpop.f32.mrb[0].mxu0
    %v5840 = vadd.f32 0.0, %v5839
    %v5841 = vpop.f32.mrb[0].mxu0
    %5842 = vmatprep.mubr.bf16.mxu0 0
    %5843 = vmatmul.mubr.bf16.gmra.mrb[0].mxu0 %v5638
    %v5844 = vpop.f32.mrb[0].mxu0
    %v5845 = vadd.f32 0.0, %v5844
    %v5846 = vpop.f32.mrb[0].mxu0
    %v5847 = vpop.f32.mrb[0].mxu0
    %v5848 = vadd.f32 0.0, %v5847
    %v5849 = vpop.f32.mrb[0].mxu0
    %5850 = vmatprep.mubr.bf16.mxu0 0
    %5851 = vmatmul.mubr.bf16.gmra.mrb[0].mxu0 %v2082
    %v5852 = vpop.f32.mrb[0].mxu0
    %v5853 = vadd.f32 0.0, %v5852
    %v5854 = vpop.f32.mrb[0].mxu0
    %v5855 = vpop.f32.mrb[0].mxu0
    %v5856 = vadd.f32 0.0, %v5855
    %v5857 = vpop.f32.mrb[0].mxu0
    %5858 = vmatprep.mubr.bf16.mxu0 0
    %5859 = vmatmul.mubr.bf16.gmra.mrb[0].mxu0 %v2083
    %v5860 = vpop.f32.mrb[0].mxu0
    %v5861 = vadd.f32 0.0, %v5860
    %v5862 = vpop.f32.mrb[0].mxu0
    %v5863 = vpop.f32.mrb[0].mxu0
    %v5864 = vadd.f32 0.0, %v5863
    %v5865 = vpop.f32.mrb[0].mxu0
    %5866 = vmatprep.mubr.bf16.mxu0 0
    %5867 = vmatmul.mubr.bf16.gmra.mrb[0].mxu0 %v2084
    %v5868 = vpop.f32.mrb[0].mxu0
    %v5869 = vadd.f32 0.0, %v5868
    %v5870 = vpop.f32.mrb[0].mxu0
    %v5871 = vpop.f32.mrb[0].mxu0
    %v5872 = vadd.f32 0.0, %v5871
    %v5873 = vpop.f32.mrb[0].mxu0
    %5874 = vmatprep.mubr.bf16.mxu0 0
    %5875 = vmatmul.mubr.bf16.gmra.mrb[0].mxu0 %v2085
    %v5876 = vpop.f32.mrb[0].mxu0
    %v5877 = vadd.f32 0.0, %v5876
    %v5878 = vpop.f32.mrb[0].mxu0
    %v5879 = vpop.f32.mrb[0].mxu0
    %v5880 = vadd.f32 0.0, %v5879
    %v5881 = vpop.f32.mrb[0].mxu0
    %5882 = vmatprep.mubr.bf16.mxu0 0
    %5883 = vmatmul.mubr.bf16.gmra.mrb[0].mxu0 %v2086
    %v5884 = vpop.f32.mrb[0].mxu0
    %v5885 = vadd.f32 0.0, %v5884
    %v5886 = vpop.f32.mrb[0].mxu0
    %v5887 = vpop.f32.mrb[0].mxu0
    %v5888 = vadd.f32 0.0, %v5887
    %v5889 = vpop.f32.mrb[0].mxu0
    %5890 = vmatprep.mubr.bf16.mxu0 0
    %5891 = vmatmul.mubr.bf16.gmra.mrb[0].mxu0 %v2087
    %v5892 = vpop.f32.mrb[0].mxu0
    %v5893 = vadd.f32 0.0, %v5892
    %v5894 = vpop.f32.mrb[0].mxu0
    %v5895 = vpop.f32.mrb[0].mxu0
    %v5896 = vadd.f32 0.0, %v5895
    %v5897 = vpop.f32.mrb[0].mxu0
    %5898 = vmatprep.mubr.bf16.mxu0 0
    %5899 = vmatmul.mubr.bf16.gmra.mrb[0].mxu0 %v2088
    %v5900 = vpop.f32.mrb[0].mxu0
    %v5901 = vadd.f32 0.0, %v5900
    %v5902 = vpop.f32.mrb[0].mxu0
    %v5903 = vpop.f32.mrb[0].mxu0
    %v5904 = vadd.f32 0.0, %v5903
    %v5905 = vpop.f32.mrb[0].mxu0
    %5906 = vmatprep.mubr.bf16.mxu0 0
    %5907 = vmatmul.mubr.bf16.gmra.mrb[0].mxu0 %v2089
    %v5908 = vpop.f32.mrb[0].mxu0
    %v5909 = vadd.f32 0.0, %v5908
    %v5910 = vpop.f32.mrb[0].mxu0
    %v5911 = vpop.f32.mrb[0].mxu0
    %v5912 = vadd.f32 0.0, %v5911
    %v5913 = vpop.f32.mrb[0].mxu0
    %5914 = vmatprep.mubr.bf16.mxu0 0
    %5915 = vmatmul.mubr.bf16.gmra.mrb[0].mxu0 %v2090
    %v5916 = vpop.f32.mrb[0].mxu0
    %v5917 = vadd.f32 0.0, %v5916
    %v5918 = vpop.f32.mrb[0].mxu0
    %v5919 = vpop.f32.mrb[0].mxu0
    %v5920 = vadd.f32 0.0, %v5919
    %v5921 = vpop.f32.mrb[0].mxu0
    %5922 = vmatprep.mubr.bf16.mxu0 0
    %5923 = vmatmul.mubr.bf16.gmra.mrb[0].mxu0 %v2091
    %v5924 = vpop.f32.mrb[0].mxu0
    %v5925 = vadd.f32 0.0, %v5924
    %v5926 = vpop.f32.mrb[0].mxu0
    %v5927 = vpop.f32.mrb[0].mxu0
    %v5928 = vadd.f32 0.0, %v5927
    %v5929 = vpop.f32.mrb[0].mxu0
    %5930 = vmatprep.mubr.bf16.mxu0 0
    %5931 = vmatmul.mubr.bf16.gmra.mrb[0].mxu0 %v2092
    %v5932 = vpop.f32.mrb[0].mxu0
    %v5933 = vadd.f32 0.0, %v5932
    %v5934 = vpop.f32.mrb[0].mxu0
    %v5935 = vpop.f32.mrb[0].mxu0
    %v5936 = vadd.f32 0.0, %v5935
    %v5937 = vpop.f32.mrb[0].mxu0
    %5938 = vmatprep.mubr.bf16.mxu0 0
    %5939 = vmatmul.mubr.bf16.gmra.mrb[0].mxu0 %v2093
    %v5940 = vpop.f32.mrb[0].mxu0
    %v5941 = vadd.f32 0.0, %v5940
    %v5942 = vpop.f32.mrb[0].mxu0
    %v5943 = vpop.f32.mrb[0].mxu0
    %v5944 = vadd.f32 0.0, %v5943
    %v5945 = vpop.f32.mrb[0].mxu0
    %5946 = vmatprep.mubr.bf16.mxu0 0
    %5947 = vmatmul.mubr.bf16.gmra.mrb[0].mxu0 %v2094
    %v5948 = vpop.f32.mrb[0].mxu0
    %v5949 = vadd.f32 0.0, %v5948
    %v5950 = vpop.f32.mrb[0].mxu0
    %v5951 = vpop.f32.mrb[0].mxu0
    %v5952 = vadd.f32 0.0, %v5951
    %v5953 = vpop.f32.mrb[0].mxu0
    %5954 = vmatprep.mubr.bf16.mxu0 0
    %5955 = vmatmul.mubr.bf16.gmra.mrb[0].mxu0 %v2095
    %v5956 = vpop.f32.mrb[0].mxu0
    %v5957 = vadd.f32 0.0, %v5956
    %v5958 = vpop.f32.mrb[0].mxu0
    %v5959 = vpop.f32.mrb[0].mxu0
    %v5960 = vadd.f32 0.0, %v5959
    %v5961 = vpop.f32.mrb[0].mxu0
    %5962 = vmatprep.mubr.bf16.mxu0 0
    %5963 = vmatmul.mubr.bf16.gmra.mrb[0].mxu0 %v4296
    %v5964 = vpop.f32.mrb[0].mxu0
    %v5965 = vadd.f32 0.0, %v5964
    %v5966 = vpop.f32.mrb[0].mxu0
    %v5967 = vpop.f32.mrb[0].mxu0
    %v5968 = vadd.f32 0.0, %v5967
    %v5969 = vpop.f32.mrb[0].mxu0
    %5970 = vmatprep.mubr.bf16.mxu0 0
    %5971 = vmatmul.mubr.bf16.gmra.mrb[0].mxu0 %v5639
    %v5972 = vpop.f32.mrb[0].mxu0
    %v5973 = vadd.f32 0.0, %v5972
    %v5974 = vpop.f32.mrb[0].mxu0
    %v5975 = vpop.f32.mrb[0].mxu0
    %v5976 = vadd.f32 0.0, %v5975
    %v5977 = vpop.f32.mrb[0].mxu0
    %5978 = vdwg.mxu0
    %v5979 = vadd.f32 %v5506, %v5725
    %v5980 = vadd.f32 %v5507, %v5728
    %v5981 = vadd.f32 %v5508, %v5733
    %v5982 = vadd.f32 %v5509, %v5736
    %v5983 = vadd.f32 %v5510, %v5741
    %v5984 = vadd.f32 %v5511, %v5744
    %v5985 = vadd.f32 %v5512, %v5749
    %v5986 = vadd.f32 %v5513, %v5752
    %v5987 = vadd.f32 %v5514, %v5757
    %v5988 = vadd.f32 %v5515, %v5760
    %v5989 = vadd.f32 %v5516, %v5765
    %v5990 = vadd.f32 %v5517, %v5768
    %v5991 = vadd.f32 %v5518, %v5773
    %v5992 = vadd.f32 %v5519, %v5776
    %v5993 = vadd.f32 %v5520, %v5781
    %v5994 = vadd.f32 %v5521, %v5784
    %v5995 = vadd.f32 %v5522, %v5789
    %v5996 = vadd.f32 %v5523, %v5792
    %v5997 = vadd.f32 %v5524, %v5797
    %v5998 = vadd.f32 %v5525, %v5800
    %v5999 = vadd.f32 %v5526, %v5805
    %v6000 = vadd.f32 %v5527, %v5808
    %v6001 = vadd.f32 %v5528, %v5813
    %v6002 = vadd.f32 %v5529, %v5816
    %v6003 = vadd.f32 %v5530, %v5821
    %v6004 = vadd.f32 %v5531, %v5824
    %v6005 = vadd.f32 %v5532, %v5829
    %v6006 = vadd.f32 %v5533, %v5832
    %v6007 = vadd.f32 %v5534, %v5837
    %v6008 = vadd.f32 %v5535, %v5840
    %v6009 = vadd.f32 %v5536, %v5845
    %v6010 = vadd.f32 %v5537, %v5848
    %v6011 = vadd.f32 %v5538, %v5853
    %v6012 = vadd.f32 %v5539, %v5856
    %v6013 = vadd.f32 %v5540, %v5861
    %v6014 = vadd.f32 %v5541, %v5864
    %v6015 = vadd.f32 %v5542, %v5869
    %v6016 = vadd.f32 %v5543, %v5872
    %v6017 = vadd.f32 %v5544, %v5877
    %v6018 = vadd.f32 %v5545, %v5880
    %v6019 = vadd.f32 %v5546, %v5885
    %v6020 = vadd.f32 %v5547, %v5888
    %v6021 = vadd.f32 %v5548, %v5893
    %v6022 = vadd.f32 %v5549, %v5896
    %v6023 = vadd.f32 %v5550, %v5901
    %v6024 = vadd.f32 %v5551, %v5904
    %v6025 = vadd.f32 %v5552, %v5909
    %v6026 = vadd.f32 %v5553, %v5912
    %v6027 = vadd.f32 %v5554, %v5917
    %v6028 = vadd.f32 %v5555, %v5920
    %v6029 = vadd.f32 %v5556, %v5925
    %v6030 = vadd.f32 %v5557, %v5928
    %v6031 = vadd.f32 %v5558, %v5933
    %v6032 = vadd.f32 %v5559, %v5936
    %v6033 = vadd.f32 %v5560, %v5941
    %v6034 = vadd.f32 %v5561, %v5944
    %v6035 = vadd.f32 %v5562, %v5949
    %v6036 = vadd.f32 %v5563, %v5952
    %v6037 = vadd.f32 %v5564, %v5957
    %v6038 = vadd.f32 %v5565, %v5960
    %v6039 = vadd.f32 %v5566, %v5965
    %v6040 = vadd.f32 %v5567, %v5968
    %v6041 = vadd.f32 %v5568, %v5973
    %v6042 = vadd.f32 %v5569, %v5976
    %v6045 = vrot.slane %v1140, 5
    %v6046 = vrot.slane %v6045, 4
    %v6047 = vrot.slane %v1141, 5
    %v6048 = vsel %vm3028, %v6046, %v6047
    %v6049 = vrot.slane %v6047, 4
    %v6050 = vrot.slane %v1142, 5
    %v6051 = vsel %vm3028, %v6049, %v6050
    %v6052 = vrot.slane %v1194, 5
    %v6053 = vrot.slane %v6052, 4
    %v6054 = vrot.slane %v1195, 5
    %v6055 = vsel %vm3028, %v6053, %v6054
    %v6056 = vrot.slane %v6054, 4
    %v6057 = vrot.slane %v1196, 5
    %v6058 = vsel %vm3028, %v6056, %v6057
    %v6059 = vld [vmem:[#allocation6 + $0x200] sm:$0xf]
    %v6060 = vld [vmem:[#allocation6 + $0x204] sm:$0xf]
    %v6061 = vld [vmem:[#allocation6 + $0x208] sm:$0xf]
    %v6062 = vld [vmem:[#allocation6 + $0x20c] sm:$0xf]
    %v6063 = vld [vmem:[#allocation6 + $0x210] sm:$0xf]
    %v6064 = vld [vmem:[#allocation6 + $0x214] sm:$0xf]
    %v6065 = vld [vmem:[#allocation6 + $0x218] sm:$0xf]
    %v6066 = vld [vmem:[#allocation6 + $0x21c] sm:$0xf]
    %v6067 = vld [vmem:[#allocation6 + $0x220] sm:$0xf]
    %v6068 = vld [vmem:[#allocation6 + $0x224] sm:$0xf]
    %v6069 = vld [vmem:[#allocation6 + $0x228] sm:$0xf]
    %v6070 = vld [vmem:[#allocation6 + $0x22c] sm:$0xf]
    %v6071 = vld [vmem:[#allocation6 + $0x230] sm:$0xf]
    %v6072 = vld [vmem:[#allocation6 + $0x234] sm:$0xf]
    %v6073 = vld [vmem:[#allocation6 + $0x238] sm:$0xf]
    %v6074 = vld [vmem:[#allocation6 + $0x23c] sm:$0xf]
    %v6075 = vunpack.c.l.b16 %v6048
    %v6076 = vunpack.c.l.b16 %v6051
    %v6077 = vunpack.c.l.b16 %v6055
    %v6078 = vunpack.c.l.b16 %v6058
    %v6079 = vpack.c.b16 %v6076, %v6075
    %v6080 = vpack.c.b16 %v6078, %v6077
    %v6099 = vunpack.c.l.b16 %v6059
    %v6100 = vunpack.c.l.b16 %v6060
    %v6101 = vunpack.c.l.b16 %v6061
    %v6102 = vunpack.c.l.b16 %v6062
    %v6103 = vunpack.c.l.b16 %v6063
    %v6104 = vunpack.c.l.b16 %v6064
    %v6105 = vunpack.c.l.b16 %v6065
    %v6106 = vunpack.c.l.b16 %v6066
    %v6107 = vunpack.c.l.b16 %v6067
    %v6108 = vunpack.c.l.b16 %v6068
    %v6109 = vunpack.c.l.b16 %v6069
    %v6110 = vunpack.c.l.b16 %v6070
    %v6111 = vunpack.c.l.b16 %v6071
    %v6112 = vunpack.c.l.b16 %v6072
    %v6113 = vunpack.c.l.b16 %v6073
    %v6114 = vunpack.c.l.b16 %v6074
    %v6115 = vpack.c.b16 %v6100, %v6099
    %v6116 = vpack.c.b16 %v6102, %v6101
    %v6117 = vpack.c.b16 %v6104, %v6103
    %v6118 = vpack.c.b16 %v6106, %v6105
    %v6119 = vpack.c.b16 %v6108, %v6107
    %v6120 = vpack.c.b16 %v6110, %v6109
    %v6121 = vpack.c.b16 %v6112, %v6111
    %v6122 = vpack.c.b16 %v6114, %v6113
    %6131 = vmatprep.subr.bf16.mxu0 0
    %6132 = vmatpush1.bf16.msra.mxu0 %v6115
    %6133 = vmatprep.subr.bf16.mxu0 0
    %6134 = vmatpush1.bf16.msra.mxu0 %v6116
    %6135 = vmatprep.subr.bf16.mxu0 0
    %6136 = vmatpush1.bf16.msra.mxu0 %v6117
    %6137 = vmatprep.subr.bf16.mxu0 0
    %6138 = vmatpush1.bf16.msra.mxu0 %v6118
    %6139 = vmatprep.subr.bf16.mxu0 0
    %6140 = vmatpush1.bf16.msra.mxu0 %v6119
    %6141 = vmatprep.subr.bf16.mxu0 0
    %6142 = vmatpush1.bf16.msra.mxu0 %v6120
    %6143 = vmatprep.subr.bf16.mxu0 0
    %6144 = vmatpush1.bf16.msra.mxu0 %v6121
    %6145 = vmatprep.subr.bf16.mxu0 0
    %6146 = vmatpush1.bf16.msra.mxu0 %v6122
    %6147 = vmatprep.subr.bf16.mxu0 0
    %6148 = vmatpush1.bf16.msra.mxu0 0
    %6149 = vmatprep.subr.bf16.mxu0 0
    %6150 = vmatpush1.bf16.msra.mxu0 0
    %6151 = vmatprep.subr.bf16.mxu0 0
    %6152 = vmatpush1.bf16.msra.mxu0 0
    %6153 = vmatprep.subr.bf16.mxu0 0
    %6154 = vmatpush1.bf16.msra.mxu0 0
    %6155 = vmatprep.subr.bf16.mxu0 0
    %6156 = vmatpush1.bf16.msra.mxu0 0
    %6157 = vmatprep.subr.bf16.mxu0 0
    %6158 = vmatpush1.bf16.msra.mxu0 0
    %6159 = vmatprep.subr.bf16.mxu0 0
    %6160 = vmatpush1.bf16.msra.mxu0 0
    %6161 = vmatprep.subr.bf16.mxu0 0
    %6162 = vmatpush1.bf16.msra.mxu0 0
    %6163 = vmatprep.mubr.bf16.mxu0 0
    %6164 = vmatmul.mubr.bf16.gmra.mrb[0].mxu0 %v3335
    %v6165 = vpop.f32.mrb[0].mxu0
    %v6166 = vadd.f32 0.0, %v6165
    %v6167 = vpop.f32.mrb[0].mxu0
    %v6168 = vpop.f32.mrb[0].mxu0
    %v6169 = vadd.f32 0.0, %v6168
    %v6170 = vpop.f32.mrb[0].mxu0
    %6171 = vmatprep.mubr.bf16.mxu0 0
    %6172 = vmatmul.mubr.bf16.gmra.mrb[0].mxu0 %v3336
    %v6173 = vpop.f32.mrb[0].mxu0
    %v6174 = vadd.f32 0.0, %v6173
    %v6175 = vpop.f32.mrb[0].mxu0
    %v6176 = vpop.f32.mrb[0].mxu0
    %v6177 = vadd.f32 0.0, %v6176
    %v6178 = vpop.f32.mrb[0].mxu0
    %6179 = vmatprep.mubr.bf16.mxu0 0
    %6180 = vmatmul.mubr.bf16.gmra.mrb[0].mxu0 %v3337
    %v6181 = vpop.f32.mrb[0].mxu0
    %v6182 = vadd.f32 0.0, %v6181
    %v6183 = vpop.f32.mrb[0].mxu0
    %v6184 = vpop.f32.mrb[0].mxu0
    %v6185 = vadd.f32 0.0, %v6184
    %v6186 = vpop.f32.mrb[0].mxu0
    %6187 = vmatprep.mubr.bf16.mxu0 0
    %6188 = vmatmul.mubr.bf16.gmra.mrb[0].mxu0 %v3338
    %v6189 = vpop.f32.mrb[0].mxu0
    %v6190 = vadd.f32 0.0, %v6189
    %v6191 = vpop.f32.mrb[0].mxu0
    %v6192 = vpop.f32.mrb[0].mxu0
    %v6193 = vadd.f32 0.0, %v6192
    %v6194 = vpop.f32.mrb[0].mxu0
    %6195 = vmatprep.mubr.bf16.mxu0 0
    %6196 = vmatmul.mubr.bf16.gmra.mrb[0].mxu0 %v3339
    %v6197 = vpop.f32.mrb[0].mxu0
    %v6198 = vadd.f32 0.0, %v6197
    %v6199 = vpop.f32.mrb[0].mxu0
    %v6200 = vpop.f32.mrb[0].mxu0
    %v6201 = vadd.f32 0.0, %v6200
    %v6202 = vpop.f32.mrb[0].mxu0
    %6203 = vmatprep.mubr.bf16.mxu0 0
    %6204 = vmatmul.mubr.bf16.gmra.mrb[0].mxu0 %v3340
    %v6205 = vpop.f32.mrb[0].mxu0
    %v6206 = vadd.f32 0.0, %v6205
    %v6207 = vpop.f32.mrb[0].mxu0
    %v6208 = vpop.f32.mrb[0].mxu0
    %v6209 = vadd.f32 0.0, %v6208
    %v6210 = vpop.f32.mrb[0].mxu0
    %6211 = vmatprep.mubr.bf16.mxu0 0
    %6212 = vmatmul.mubr.bf16.gmra.mrb[0].mxu0 %v3341
    %v6213 = vpop.f32.mrb[0].mxu0
    %v6214 = vadd.f32 0.0, %v6213
    %v6215 = vpop.f32.mrb[0].mxu0
    %v6216 = vpop.f32.mrb[0].mxu0
    %v6217 = vadd.f32 0.0, %v6216
    %v6218 = vpop.f32.mrb[0].mxu0
    %6219 = vmatprep.mubr.bf16.mxu0 0
    %6220 = vmatmul.mubr.bf16.gmra.mrb[0].mxu0 %v3342
    %v6221 = vpop.f32.mrb[0].mxu0
    %v6222 = vadd.f32 0.0, %v6221
    %v6223 = vpop.f32.mrb[0].mxu0
    %v6224 = vpop.f32.mrb[0].mxu0
    %v6225 = vadd.f32 0.0, %v6224
    %v6226 = vpop.f32.mrb[0].mxu0
    %6227 = vmatprep.mubr.bf16.mxu0 0
    %6228 = vmatmul.mubr.bf16.gmra.mrb[0].mxu0 %v3343
    %v6229 = vpop.f32.mrb[0].mxu0
    %v6230 = vadd.f32 0.0, %v6229
    %v6231 = vpop.f32.mrb[0].mxu0
    %v6232 = vpop.f32.mrb[0].mxu0
    %v6233 = vadd.f32 0.0, %v6232
    %v6234 = vpop.f32.mrb[0].mxu0
    %6235 = vmatprep.mubr.bf16.mxu0 0
    %6236 = vmatmul.mubr.bf16.gmra.mrb[0].mxu0 %v3344
    %v6237 = vpop.f32.mrb[0].mxu0
    %v6238 = vadd.f32 0.0, %v6237
    %v6239 = vpop.f32.mrb[0].mxu0
    %v6240 = vpop.f32.mrb[0].mxu0
    %v6241 = vadd.f32 0.0, %v6240
    %v6242 = vpop.f32.mrb[0].mxu0
    %6243 = vmatprep.mubr.bf16.mxu0 0
    %6244 = vmatmul.mubr.bf16.gmra.mrb[0].mxu0 %v3345
    %v6245 = vpop.f32.mrb[0].mxu0
    %v6246 = vadd.f32 0.0, %v6245
    %v6247 = vpop.f32.mrb[0].mxu0
    %v6248 = vpop.f32.mrb[0].mxu0
    %v6249 = vadd.f32 0.0, %v6248
    %v6250 = vpop.f32.mrb[0].mxu0
    %6251 = vmatprep.mubr.bf16.mxu0 0
    %6252 = vmatmul.mubr.bf16.gmra.mrb[0].mxu0 %v3346
    %v6253 = vpop.f32.mrb[0].mxu0
    %v6254 = vadd.f32 0.0, %v6253
    %v6255 = vpop.f32.mrb[0].mxu0
    %v6256 = vpop.f32.mrb[0].mxu0
    %v6257 = vadd.f32 0.0, %v6256
    %v6258 = vpop.f32.mrb[0].mxu0
    %6259 = vmatprep.mubr.bf16.mxu0 0
    %6260 = vmatmul.mubr.bf16.gmra.mrb[0].mxu0 %v3347
    %v6261 = vpop.f32.mrb[0].mxu0
    %v6262 = vadd.f32 0.0, %v6261
    %v6263 = vpop.f32.mrb[0].mxu0
    %v6264 = vpop.f32.mrb[0].mxu0
    %v6265 = vadd.f32 0.0, %v6264
    %v6266 = vpop.f32.mrb[0].mxu0
    %6267 = vmatprep.mubr.bf16.mxu0 0
    %6268 = vmatmul.mubr.bf16.gmra.mrb[0].mxu0 %v3348
    %v6269 = vpop.f32.mrb[0].mxu0
    %v6270 = vadd.f32 0.0, %v6269
    %v6271 = vpop.f32.mrb[0].mxu0
    %v6272 = vpop.f32.mrb[0].mxu0
    %v6273 = vadd.f32 0.0, %v6272
    %v6274 = vpop.f32.mrb[0].mxu0
    %6275 = vmatprep.mubr.bf16.mxu0 0
    %6276 = vmatmul.mubr.bf16.gmra.mrb[0].mxu0 %v4736
    %v6277 = vpop.f32.mrb[0].mxu0
    %v6278 = vadd.f32 0.0, %v6277
    %v6279 = vpop.f32.mrb[0].mxu0
    %v6280 = vpop.f32.mrb[0].mxu0
    %v6281 = vadd.f32 0.0, %v6280
    %v6282 = vpop.f32.mrb[0].mxu0
    %6283 = vmatprep.mubr.bf16.mxu0 0
    %6284 = vmatmul.mubr.bf16.gmra.mrb[0].mxu0 %v6079
    %v6285 = vpop.f32.mrb[0].mxu0
    %v6286 = vadd.f32 0.0, %v6285
    %v6287 = vpop.f32.mrb[0].mxu0
    %v6288 = vpop.f32.mrb[0].mxu0
    %v6289 = vadd.f32 0.0, %v6288
    %v6290 = vpop.f32.mrb[0].mxu0
    %6291 = vmatprep.mubr.bf16.mxu0 0
    %6292 = vmatmul.mubr.bf16.gmra.mrb[0].mxu0 %v3351
    %v6293 = vpop.f32.mrb[0].mxu0
    %v6294 = vadd.f32 0.0, %v6293
    %v6295 = vpop.f32.mrb[0].mxu0
    %v6296 = vpop.f32.mrb[0].mxu0
    %v6297 = vadd.f32 0.0, %v6296
    %v6298 = vpop.f32.mrb[0].mxu0
    %6299 = vmatprep.mubr.bf16.mxu0 0
    %6300 = vmatmul.mubr.bf16.gmra.mrb[0].mxu0 %v3352
    %v6301 = vpop.f32.mrb[0].mxu0
    %v6302 = vadd.f32 0.0, %v6301
    %v6303 = vpop.f32.mrb[0].mxu0
    %v6304 = vpop.f32.mrb[0].mxu0
    %v6305 = vadd.f32 0.0, %v6304
    %v6306 = vpop.f32.mrb[0].mxu0
    %6307 = vmatprep.mubr.bf16.mxu0 0
    %6308 = vmatmul.mubr.bf16.gmra.mrb[0].mxu0 %v3353
    %v6309 = vpop.f32.mrb[0].mxu0
    %v6310 = vadd.f32 0.0, %v6309
    %v6311 = vpop.f32.mrb[0].mxu0
    %v6312 = vpop.f32.mrb[0].mxu0
    %v6313 = vadd.f32 0.0, %v6312
    %v6314 = vpop.f32.mrb[0].mxu0
    %6315 = vmatprep.mubr.bf16.mxu0 0
    %6316 = vmatmul.mubr.bf16.gmra.mrb[0].mxu0 %v3354
    %v6317 = vpop.f32.mrb[0].mxu0
    %v6318 = vadd.f32 0.0, %v6317
    %v6319 = vpop.f32.mrb[0].mxu0
    %v6320 = vpop.f32.mrb[0].mxu0
    %v6321 = vadd.f32 0.0, %v6320
    %v6322 = vpop.f32.mrb[0].mxu0
    %6323 = vmatprep.mubr.bf16.mxu0 0
    %6324 = vmatmul.mubr.bf16.gmra.mrb[0].mxu0 %v3355
    %v6325 = vpop.f32.mrb[0].mxu0
    %v6326 = vadd.f32 0.0, %v6325
    %v6327 = vpop.f32.mrb[0].mxu0
    %v6328 = vpop.f32.mrb[0].mxu0
    %v6329 = vadd.f32 0.0, %v6328
    %v6330 = vpop.f32.mrb[0].mxu0
    %6331 = vmatprep.mubr.bf16.mxu0 0
    %6332 = vmatmul.mubr.bf16.gmra.mrb[0].mxu0 %v3356
    %v6333 = vpop.f32.mrb[0].mxu0
    %v6334 = vadd.f32 0.0, %v6333
    %v6335 = vpop.f32.mrb[0].mxu0
    %v6336 = vpop.f32.mrb[0].mxu0
    %v6337 = vadd.f32 0.0, %v6336
    %v6338 = vpop.f32.mrb[0].mxu0
    %6339 = vmatprep.mubr.bf16.mxu0 0
    %6340 = vmatmul.mubr.bf16.gmra.mrb[0].mxu0 %v3357
    %v6341 = vpop.f32.mrb[0].mxu0
    %v6342 = vadd.f32 0.0, %v6341
    %v6343 = vpop.f32.mrb[0].mxu0
    %v6344 = vpop.f32.mrb[0].mxu0
    %v6345 = vadd.f32 0.0, %v6344
    %v6346 = vpop.f32.mrb[0].mxu0
    %6347 = vmatprep.mubr.bf16.mxu0 0
    %6348 = vmatmul.mubr.bf16.gmra.mrb[0].mxu0 %v3358
    %v6349 = vpop.f32.mrb[0].mxu0
    %v6350 = vadd.f32 0.0, %v6349
    %v6351 = vpop.f32.mrb[0].mxu0
    %v6352 = vpop.f32.mrb[0].mxu0
    %v6353 = vadd.f32 0.0, %v6352
    %v6354 = vpop.f32.mrb[0].mxu0
    %6355 = vmatprep.mubr.bf16.mxu0 0
    %6356 = vmatmul.mubr.bf16.gmra.mrb[0].mxu0 %v3359
    %v6357 = vpop.f32.mrb[0].mxu0
    %v6358 = vadd.f32 0.0, %v6357
    %v6359 = vpop.f32.mrb[0].mxu0
    %v6360 = vpop.f32.mrb[0].mxu0
    %v6361 = vadd.f32 0.0, %v6360
    %v6362 = vpop.f32.mrb[0].mxu0
    %6363 = vmatprep.mubr.bf16.mxu0 0
    %6364 = vmatmul.mubr.bf16.gmra.mrb[0].mxu0 %v3360
    %v6365 = vpop.f32.mrb[0].mxu0
    %v6366 = vadd.f32 0.0, %v6365
    %v6367 = vpop.f32.mrb[0].mxu0
    %v6368 = vpop.f32.mrb[0].mxu0
    %v6369 = vadd.f32 0.0, %v6368
    %v6370 = vpop.f32.mrb[0].mxu0
    %6371 = vmatprep.mubr.bf16.mxu0 0
    %6372 = vmatmul.mubr.bf16.gmra.mrb[0].mxu0 %v3361
    %v6373 = vpop.f32.mrb[0].mxu0
    %v6374 = vadd.f32 0.0, %v6373
    %v6375 = vpop.f32.mrb[0].mxu0
    %v6376 = vpop.f32.mrb[0].mxu0
    %v6377 = vadd.f32 0.0, %v6376
    %v6378 = vpop.f32.mrb[0].mxu0
    %6379 = vmatprep.mubr.bf16.mxu0 0
    %6380 = vmatmul.mubr.bf16.gmra.mrb[0].mxu0 %v3362
    %v6381 = vpop.f32.mrb[0].mxu0
    %v6382 = vadd.f32 0.0, %v6381
    %v6383 = vpop.f32.mrb[0].mxu0
    %v6384 = vpop.f32.mrb[0].mxu0
    %v6385 = vadd.f32 0.0, %v6384
    %v6386 = vpop.f32.mrb[0].mxu0
    %6387 = vmatprep.mubr.bf16.mxu0 0
    %6388 = vmatmul.mubr.bf16.gmra.mrb[0].mxu0 %v3363
    %v6389 = vpop.f32.mrb[0].mxu0
    %v6390 = vadd.f32 0.0, %v6389
    %v6391 = vpop.f32.mrb[0].mxu0
    %v6392 = vpop.f32.mrb[0].mxu0
    %v6393 = vadd.f32 0.0, %v6392
    %v6394 = vpop.f32.mrb[0].mxu0
    %6395 = vmatprep.mubr.bf16.mxu0 0
    %6396 = vmatmul.mubr.bf16.gmra.mrb[0].mxu0 %v3364
    %v6397 = vpop.f32.mrb[0].mxu0
    %v6398 = vadd.f32 0.0, %v6397
    %v6399 = vpop.f32.mrb[0].mxu0
    %v6400 = vpop.f32.mrb[0].mxu0
    %v6401 = vadd.f32 0.0, %v6400
    %v6402 = vpop.f32.mrb[0].mxu0
    %6403 = vmatprep.mubr.bf16.mxu0 0
    %6404 = vmatmul.mubr.bf16.gmra.mrb[0].mxu0 %v4737
    %v6405 = vpop.f32.mrb[0].mxu0
    %v6406 = vadd.f32 0.0, %v6405
    %v6407 = vpop.f32.mrb[0].mxu0
    %v6408 = vpop.f32.mrb[0].mxu0
    %v6409 = vadd.f32 0.0, %v6408
    %v6410 = vpop.f32.mrb[0].mxu0
    %6411 = vmatprep.mubr.bf16.mxu0 0
    %6412 = vmatmul.mubr.bf16.gmra.mrb[0].mxu0 %v6080
    %v6413 = vpop.f32.mrb[0].mxu0
    %v6414 = vadd.f32 0.0, %v6413
    %v6415 = vpop.f32.mrb[0].mxu0
    %v6416 = vpop.f32.mrb[0].mxu0
    %v6417 = vadd.f32 0.0, %v6416
    %v6418 = vpop.f32.mrb[0].mxu0
    %6419 = vdwg.mxu0
    %v6420 = vadd.f32 %v5979, %v6166
    %v6421 = vadd.f32 %v5980, %v6169
    %v6422 = vadd.f32 %v5981, %v6174
    %v6423 = vadd.f32 %v5982, %v6177
    %v6424 = vadd.f32 %v5983, %v6182
    %v6425 = vadd.f32 %v5984, %v6185
    %v6426 = vadd.f32 %v5985, %v6190
    %v6427 = vadd.f32 %v5986, %v6193
    %v6428 = vadd.f32 %v5987, %v6198
    %v6429 = vadd.f32 %v5988, %v6201
    %v6430 = vadd.f32 %v5989, %v6206
    %v6431 = vadd.f32 %v5990, %v6209
    %v6432 = vadd.f32 %v5991, %v6214
    %v6433 = vadd.f32 %v5992, %v6217
    %v6434 = vadd.f32 %v5993, %v6222
    %v6435 = vadd.f32 %v5994, %v6225
    %v6436 = vadd.f32 %v5995, %v6230
    %v6437 = vadd.f32 %v5996, %v6233
    %v6438 = vadd.f32 %v5997, %v6238
    %v6439 = vadd.f32 %v5998, %v6241
    %v6440 = vadd.f32 %v5999, %v6246
    %v6441 = vadd.f32 %v6000, %v6249
    %v6442 = vadd.f32 %v6001, %v6254
    %v6443 = vadd.f32 %v6002, %v6257
    %v6444 = vadd.f32 %v6003, %v6262
    %v6445 = vadd.f32 %v6004, %v6265
    %v6446 = vadd.f32 %v6005, %v6270
    %v6447 = vadd.f32 %v6006, %v6273
    %v6448 = vadd.f32 %v6007, %v6278
    %v6449 = vadd.f32 %v6008, %v6281
    %v6450 = vadd.f32 %v6009, %v6286
    %v6451 = vadd.f32 %v6010, %v6289
    %v6452 = vadd.f32 %v6011, %v6294
    %v6453 = vadd.f32 %v6012, %v6297
    %v6454 = vadd.f32 %v6013, %v6302
    %v6455 = vadd.f32 %v6014, %v6305
    %v6456 = vadd.f32 %v6015, %v6310
    %v6457 = vadd.f32 %v6016, %v6313
    %v6458 = vadd.f32 %v6017, %v6318
    %v6459 = vadd.f32 %v6018, %v6321
    %v6460 = vadd.f32 %v6019, %v6326
    %v6461 = vadd.f32 %v6020, %v6329
    %v6462 = vadd.f32 %v6021, %v6334
    %v6463 = vadd.f32 %v6022, %v6337
    %v6464 = vadd.f32 %v6023, %v6342
    %v6465 = vadd.f32 %v6024, %v6345
    %v6466 = vadd.f32 %v6025, %v6350
    %v6467 = vadd.f32 %v6026, %v6353
    %v6468 = vadd.f32 %v6027, %v6358
    %v6469 = vadd.f32 %v6028, %v6361
    %v6470 = vadd.f32 %v6029, %v6366
    %v6471 = vadd.f32 %v6030, %v6369
    %v6472 = vadd.f32 %v6031, %v6374
    %v6473 = vadd.f32 %v6032, %v6377
    %v6474 = vadd.f32 %v6033, %v6382
    %v6475 = vadd.f32 %v6034, %v6385
    %v6476 = vadd.f32 %v6035, %v6390
    %v6477 = vadd.f32 %v6036, %v6393
    %v6478 = vadd.f32 %v6037, %v6398
    %v6479 = vadd.f32 %v6038, %v6401
    %v6480 = vadd.f32 %v6039, %v6406
    %v6481 = vadd.f32 %v6040, %v6409
    %v6482 = vadd.f32 %v6041, %v6414
    %v6483 = vadd.f32 %v6042, %v6417
    %v6484 = vpack.c.bf16 %v6421, %v6420
    %v6485 = vpack.c.bf16 %v6423, %v6422
    %v6486 = vpack.c.bf16 %v6425, %v6424
    %v6487 = vpack.c.bf16 %v6427, %v6426
    %v6488 = vpack.c.bf16 %v6429, %v6428
    %v6489 = vpack.c.bf16 %v6431, %v6430
    %v6490 = vpack.c.bf16 %v6433, %v6432
    %v6491 = vpack.c.bf16 %v6435, %v6434
    %v6492 = vpack.c.bf16 %v6437, %v6436
    %v6493 = vpack.c.bf16 %v6439, %v6438
    %v6494 = vpack.c.bf16 %v6441, %v6440
    %v6495 = vpack.c.bf16 %v6443, %v6442
    %v6496 = vpack.c.bf16 %v6445, %v6444
    %v6497 = vpack.c.bf16 %v6447, %v6446
    %v6498 = vpack.c.bf16 %v6449, %v6448
    %v6499 = vpack.c.bf16 %v6451, %v6450
    %v6500 = vpack.c.bf16 %v6453, %v6452
    %v6501 = vpack.c.bf16 %v6455, %v6454
    %v6502 = vpack.c.bf16 %v6457, %v6456
    %v6503 = vpack.c.bf16 %v6459, %v6458
    %v6504 = vpack.c.bf16 %v6461, %v6460
    %v6505 = vpack.c.bf16 %v6463, %v6462
    %v6506 = vpack.c.bf16 %v6465, %v6464
    %v6507 = vpack.c.bf16 %v6467, %v6466
    %v6508 = vpack.c.bf16 %v6469, %v6468
    %v6509 = vpack.c.bf16 %v6471, %v6470
    %v6510 = vpack.c.bf16 %v6473, %v6472
    %v6511 = vpack.c.bf16 %v6475, %v6474
    %v6512 = vpack.c.bf16 %v6477, %v6476
    %v6513 = vpack.c.bf16 %v6479, %v6478
    %v6514 = vpack.c.bf16 %v6481, %v6480
    %v6515 = vpack.c.bf16 %v6483, %v6482
    %v6548 = vunpack.c.l.b16 %v6484
    %v6549 = vunpack.c.h.b16 %v6484
    %v6550 = vunpack.c.l.b16 %v6485
    %v6551 = vunpack.c.h.b16 %v6485
    %v6552 = vunpack.c.l.b16 %v6486
    %v6553 = vunpack.c.h.b16 %v6486
    %v6554 = vunpack.c.l.b16 %v6487
    %v6555 = vunpack.c.h.b16 %v6487
    %v6556 = vunpack.c.l.b16 %v6488
    %v6557 = vunpack.c.h.b16 %v6488
    %v6558 = vunpack.c.l.b16 %v6489
    %v6559 = vunpack.c.h.b16 %v6489
    %v6560 = vunpack.c.l.b16 %v6490
    %v6561 = vunpack.c.h.b16 %v6490
    %v6562 = vunpack.c.l.b16 %v6491
    %v6563 = vunpack.c.h.b16 %v6491
    %v6564 = vunpack.c.l.b16 %v6492
    %v6565 = vunpack.c.h.b16 %v6492
    %v6566 = vunpack.c.l.b16 %v6493
    %v6567 = vunpack.c.h.b16 %v6493
    %v6568 = vunpack.c.l.b16 %v6494
    %v6569 = vunpack.c.h.b16 %v6494
    %v6570 = vunpack.c.l.b16 %v6495
    %v6571 = vunpack.c.h.b16 %v6495
    %v6572 = vunpack.c.l.b16 %v6496
    %v6573 = vunpack.c.h.b16 %v6496
    %v6574 = vunpack.c.l.b16 %v6497
    %v6575 = vunpack.c.h.b16 %v6497
    %v6576 = vunpack.c.l.b16 %v6498
    %v6577 = vunpack.c.h.b16 %v6498
    %v6578 = vunpack.c.l.b16 %v6499
    %v6579 = vunpack.c.h.b16 %v6499
    %v6580 = vunpack.c.l.b16 %v6500
    %v6581 = vunpack.c.h.b16 %v6500
    %v6582 = vunpack.c.l.b16 %v6501
    %v6583 = vunpack.c.h.b16 %v6501
    %v6584 = vunpack.c.l.b16 %v6502
    %v6585 = vunpack.c.h.b16 %v6502
    %v6586 = vunpack.c.l.b16 %v6503
    %v6587 = vunpack.c.h.b16 %v6503
    %v6588 = vunpack.c.l.b16 %v6504
    %v6589 = vunpack.c.h.b16 %v6504
    %v6590 = vunpack.c.l.b16 %v6505
    %v6591 = vunpack.c.h.b16 %v6505
    %v6592 = vunpack.c.l.b16 %v6506
    %v6593 = vunpack.c.h.b16 %v6506
    %v6594 = vunpack.c.l.b16 %v6507
    %v6595 = vunpack.c.h.b16 %v6507
    %v6596 = vunpack.c.l.b16 %v6508
    %v6597 = vunpack.c.h.b16 %v6508
    %v6598 = vunpack.c.l.b16 %v6509
    %v6599 = vunpack.c.h.b16 %v6509
    %v6600 = vunpack.c.l.b16 %v6510
    %v6601 = vunpack.c.h.b16 %v6510
    %v6602 = vunpack.c.l.b16 %v6511
    %v6603 = vunpack.c.h.b16 %v6511
    %v6604 = vunpack.c.l.b16 %v6512
    %v6605 = vunpack.c.h.b16 %v6512
    %v6606 = vunpack.c.l.b16 %v6513
    %v6607 = vunpack.c.h.b16 %v6513
    %v6608 = vunpack.c.l.b16 %v6514
    %v6609 = vunpack.c.h.b16 %v6514
    %v6610 = vunpack.c.l.b16 %v6515
    %v6611 = vunpack.c.h.b16 %v6515
    %v6612 = vpack.c.b16 %v6548, %v6548
    %v6613 = vpack.c.b16 %v6549, %v6549
    %v6614 = vpack.c.b16 %v6550, %v6550
    %v6615 = vpack.c.b16 %v6551, %v6551
    %v6616 = vpack.c.b16 %v6552, %v6552
    %v6617 = vpack.c.b16 %v6553, %v6553
    %v6618 = vpack.c.b16 %v6554, %v6554
    %v6619 = vpack.c.b16 %v6555, %v6555
    %v6620 = vpack.c.b16 %v6556, %v6556
    %v6621 = vpack.c.b16 %v6557, %v6557
    %v6622 = vpack.c.b16 %v6558, %v6558
    %v6623 = vpack.c.b16 %v6559, %v6559
    %v6624 = vpack.c.b16 %v6560, %v6560
    %v6625 = vpack.c.b16 %v6561, %v6561
    %v6626 = vpack.c.b16 %v6562, %v6562
    %v6627 = vpack.c.b16 %v6563, %v6563
    %v6628 = vpack.c.b16 %v6564, %v6564
    %v6629 = vpack.c.b16 %v6565, %v6565
    %v6630 = vpack.c.b16 %v6566, %v6566
    %v6631 = vpack.c.b16 %v6567, %v6567
    %v6632 = vpack.c.b16 %v6568, %v6568
    %v6633 = vpack.c.b16 %v6569, %v6569
    %v6634 = vpack.c.b16 %v6570, %v6570
    %v6635 = vpack.c.b16 %v6571, %v6571
    %v6636 = vpack.c.b16 %v6572, %v6572
    %v6637 = vpack.c.b16 %v6573, %v6573
    %v6638 = vpack.c.b16 %v6574, %v6574
    %v6639 = vpack.c.b16 %v6575, %v6575
    %v6640 = vpack.c.b16 %v6576, %v6576
    %v6641 = vpack.c.b16 %v6577, %v6577
    %v6642 = vpack.c.b16 %v6578, %v6578
    %v6643 = vpack.c.b16 %v6579, %v6579
    %v6644 = vpack.c.b16 %v6580, %v6580
    %v6645 = vpack.c.b16 %v6581, %v6581
    %v6646 = vpack.c.b16 %v6582, %v6582
    %v6647 = vpack.c.b16 %v6583, %v6583
    %v6648 = vpack.c.b16 %v6584, %v6584
    %v6649 = vpack.c.b16 %v6585, %v6585
    %v6650 = vpack.c.b16 %v6586, %v6586
    %v6651 = vpack.c.b16 %v6587, %v6587
    %v6652 = vpack.c.b16 %v6588, %v6588
    %v6653 = vpack.c.b16 %v6589, %v6589
    %v6654 = vpack.c.b16 %v6590, %v6590
    %v6655 = vpack.c.b16 %v6591, %v6591
    %v6656 = vpack.c.b16 %v6592, %v6592
    %v6657 = vpack.c.b16 %v6593, %v6593
    %v6658 = vpack.c.b16 %v6594, %v6594
    %v6659 = vpack.c.b16 %v6595, %v6595
    %v6660 = vpack.c.b16 %v6596, %v6596
    %v6661 = vpack.c.b16 %v6597, %v6597
    %v6662 = vpack.c.b16 %v6598, %v6598
    %v6663 = vpack.c.b16 %v6599, %v6599
    %v6664 = vpack.c.b16 %v6600, %v6600
    %v6665 = vpack.c.b16 %v6601, %v6601
    %v6666 = vpack.c.b16 %v6602, %v6602
    %v6667 = vpack.c.b16 %v6603, %v6603
    %v6668 = vpack.c.b16 %v6604, %v6604
    %v6669 = vpack.c.b16 %v6605, %v6605
    %v6670 = vpack.c.b16 %v6606, %v6606
    %v6671 = vpack.c.b16 %v6607, %v6607
    %v6672 = vpack.c.b16 %v6608, %v6608
    %v6673 = vpack.c.b16 %v6609, %v6609
    %v6674 = vpack.c.b16 %v6610, %v6610
    %v6675 = vpack.c.b16 %v6611, %v6611
    %6740 = vst [vmem:[#allocation8] sm:$0xf] %v6612
    %6741 = vst [vmem:[#allocation8 + $0x4] sm:$0xf] %v6613
    %6742 = vst [vmem:[#allocation8 + $0x8] sm:$0xf] %v6614
    %6743 = vst [vmem:[#allocation8 + $0xc] sm:$0xf] %v6615
    %6744 = vst [vmem:[#allocation8 + $0x10] sm:$0xf] %v6616
    %6745 = vst [vmem:[#allocation8 + $0x14] sm:$0xf] %v6617
    %6746 = vst [vmem:[#allocation8 + $0x18] sm:$0xf] %v6618
    %6747 = vst [vmem:[#allocation8 + $0x1c] sm:$0xf] %v6619
    %6748 = vst [vmem:[#allocation8 + $0x20] sm:$0xf] %v6620
    %6749 = vst [vmem:[#allocation8 + $0x24] sm:$0xf] %v6621
    %6750 = vst [vmem:[#allocation8 + $0x28] sm:$0xf] %v6622
    %6751 = vst [vmem:[#allocation8 + $0x2c] sm:$0xf] %v6623
    %6752 = vst [vmem:[#allocation8 + $0x30] sm:$0xf] %v6624
    %6753 = vst [vmem:[#allocation8 + $0x34] sm:$0xf] %v6625
    %6754 = vst [vmem:[#allocation8 + $0x38] sm:$0xf] %v6626
    %6755 = vst [vmem:[#allocation8 + $0x3c] sm:$0xf] %v6627
    %6756 = vst [vmem:[#allocation8 + $0x40] sm:$0xf] %v6628
    %6757 = vst [vmem:[#allocation8 + $0x44] sm:$0xf] %v6629
    %6758 = vst [vmem:[#allocation8 + $0x48] sm:$0xf] %v6630
    %6759 = vst [vmem:[#allocation8 + $0x4c] sm:$0xf] %v6631
    %6760 = vst [vmem:[#allocation8 + $0x50] sm:$0xf] %v6632
    %6761 = vst [vmem:[#allocation8 + $0x54] sm:$0xf] %v6633
    %6762 = vst [vmem:[#allocation8 + $0x58] sm:$0xf] %v6634
    %6763 = vst [vmem:[#allocation8 + $0x5c] sm:$0xf] %v6635
    %6764 = vst [vmem:[#allocation8 + $0x60] sm:$0xf] %v6636
    %6765 = vst [vmem:[#allocation8 + $0x64] sm:$0xf] %v6637
    %6766 = vst [vmem:[#allocation8 + $0x68] sm:$0xf] %v6638
    %6767 = vst [vmem:[#allocation8 + $0x6c] sm:$0xf] %v6639
    %6768 = vst [vmem:[#allocation8 + $0x70] sm:$0xf] %v6640
    %6769 = vst [vmem:[#allocation8 + $0x74] sm:$0xf] %v6641
    %6770 = vst [vmem:[#allocation8 + $0x78] sm:$0xf] %v6642
    %6771 = vst [vmem:[#allocation8 + $0x7c] sm:$0xf] %v6643
    %6772 = vst [vmem:[#allocation8 + $0x80] sm:$0xf] %v6644
    %6773 = vst [vmem:[#allocation8 + $0x84] sm:$0xf] %v6645
    %6774 = vst [vmem:[#allocation8 + $0x88] sm:$0xf] %v6646
    %6775 = vst [vmem:[#allocation8 + $0x8c] sm:$0xf] %v6647
    %6776 = vst [vmem:[#allocation8 + $0x90] sm:$0xf] %v6648
    %6777 = vst [vmem:[#allocation8 + $0x94] sm:$0xf] %v6649
    %6778 = vst [vmem:[#allocation8 + $0x98] sm:$0xf] %v6650
    %6779 = vst [vmem:[#allocation8 + $0x9c] sm:$0xf] %v6651
    %6780 = vst [vmem:[#allocation8 + $0xa0] sm:$0xf] %v6652
    %6781 = vst [vmem:[#allocation8 + $0xa4] sm:$0xf] %v6653
    %6782 = vst [vmem:[#allocation8 + $0xa8] sm:$0xf] %v6654
    %6783 = vst [vmem:[#allocation8 + $0xac] sm:$0xf] %v6655
    %6784 = vst [vmem:[#allocation8 + $0xb0] sm:$0xf] %v6656
    %6785 = vst [vmem:[#allocation8 + $0xb4] sm:$0xf] %v6657
    %6786 = vst [vmem:[#allocation8 + $0xb8] sm:$0xf] %v6658
    %6787 = vst [vmem:[#allocation8 + $0xbc] sm:$0xf] %v6659
    %6788 = vst [vmem:[#allocation8 + $0xc0] sm:$0xf] %v6660
    %6789 = vst [vmem:[#allocation8 + $0xc4] sm:$0xf] %v6661
    %6790 = vst [vmem:[#allocation8 + $0xc8] sm:$0xf] %v6662
    %6791 = vst [vmem:[#allocation8 + $0xcc] sm:$0xf] %v6663
    %6792 = vst [vmem:[#allocation8 + $0xd0] sm:$0xf] %v6664
    %6793 = vst [vmem:[#allocation8 + $0xd4] sm:$0xf] %v6665
    %6794 = vst [vmem:[#allocation8 + $0xd8] sm:$0xf] %v6666
    %6795 = vst [vmem:[#allocation8 + $0xdc] sm:$0xf] %v6667
    %6796 = vst [vmem:[#allocation8 + $0xe0] sm:$0xf] %v6668
    %6797 = vst [vmem:[#allocation8 + $0xe4] sm:$0xf] %v6669
    %6798 = vst [vmem:[#allocation8 + $0xe8] sm:$0xf] %v6670
    %6799 = vst [vmem:[#allocation8 + $0xec] sm:$0xf] %v6671
    %6800 = vst [vmem:[#allocation8 + $0xf0] sm:$0xf] %v6672
    %6801 = vst [vmem:[#allocation8 + $0xf4] sm:$0xf] %v6673
    %6802 = vst [vmem:[#allocation8 + $0xf8] sm:$0xf] %v6674
    %6803 = vst [vmem:[#allocation8 + $0xfc] sm:$0xf] %v6675
    %v6804 = vadd.f32 %v6420, %v6421
    %v6805 = vadd.f32 %v6804, %v6422
    %v6806 = vadd.f32 %v6805, %v6423
    %v6807 = vadd.f32 %v6806, %v6424
    %v6808 = vadd.f32 %v6807, %v6425
    %v6809 = vadd.f32 %v6808, %v6426
    %v6810 = vadd.f32 %v6809, %v6427
    %v6811 = vadd.f32 %v6810, %v6428
    %v6812 = vadd.f32 %v6811, %v6429
    %v6813 = vadd.f32 %v6812, %v6430
    %v6814 = vadd.f32 %v6813, %v6431
    %v6815 = vadd.f32 %v6814, %v6432
    %v6816 = vadd.f32 %v6815, %v6433
    %v6817 = vadd.f32 %v6816, %v6434
    %v6818 = vadd.f32 %v6817, %v6435
    %v6819 = vadd.f32 %v6818, %v6436
    %v6820 = vadd.f32 %v6819, %v6437
    %v6821 = vadd.f32 %v6820, %v6438
    %v6822 = vadd.f32 %v6821, %v6439
    %v6823 = vadd.f32 %v6822, %v6440
    %v6824 = vadd.f32 %v6823, %v6441
    %v6825 = vadd.f32 %v6824, %v6442
    %v6826 = vadd.f32 %v6825, %v6443
    %v6827 = vadd.f32 %v6826, %v6444
    %v6828 = vadd.f32 %v6827, %v6445
    %v6829 = vadd.f32 %v6828, %v6446
    %v6830 = vadd.f32 %v6829, %v6447
    %v6831 = vadd.f32 %v6830, %v6448
    %v6832 = vadd.f32 %v6831, %v6449
    %v6833 = vadd.f32 %v6832, %v6450
    %v6834 = vadd.f32 %v6833, %v6451
    %v6835 = vadd.f32 %v6834, %v6452
    %v6836 = vadd.f32 %v6835, %v6453
    %v6837 = vadd.f32 %v6836, %v6454
    %v6838 = vadd.f32 %v6837, %v6455
    %v6839 = vadd.f32 %v6838, %v6456
    %v6840 = vadd.f32 %v6839, %v6457
    %v6841 = vadd.f32 %v6840, %v6458
    %v6842 = vadd.f32 %v6841, %v6459
    %v6843 = vadd.f32 %v6842, %v6460
    %v6844 = vadd.f32 %v6843, %v6461
    %v6845 = vadd.f32 %v6844, %v6462
    %v6846 = vadd.f32 %v6845, %v6463
    %v6847 = vadd.f32 %v6846, %v6464
    %v6848 = vadd.f32 %v6847, %v6465
    %v6849 = vadd.f32 %v6848, %v6466
    %v6850 = vadd.f32 %v6849, %v6467
    %v6851 = vadd.f32 %v6850, %v6468
    %v6852 = vadd.f32 %v6851, %v6469
    %v6853 = vadd.f32 %v6852, %v6470
    %v6854 = vadd.f32 %v6853, %v6471
    %v6855 = vadd.f32 %v6854, %v6472
    %v6856 = vadd.f32 %v6855, %v6473
    %v6857 = vadd.f32 %v6856, %v6474
    %v6858 = vadd.f32 %v6857, %v6475
    %v6859 = vadd.f32 %v6858, %v6476
    %v6860 = vadd.f32 %v6859, %v6477
    %v6861 = vadd.f32 %v6860, %v6478
    %v6862 = vadd.f32 %v6861, %v6479
    %v6863 = vadd.f32 %v6862, %v6480
    %v6864 = vadd.f32 %v6863, %v6481
    %v6865 = vadd.f32 %v6864, %v6482
    %v6866 = vadd.f32 %v6865, %v6483
    %v6867 = vrot.slane %v6866, 4
    %v6868 = vadd.f32 %v6866, %v6867
    %v6869 = vrot.slane %v6868, 2
    %v6870 = vadd.f32 %v6868, %v6869
    %v6871 = vrot.slane %v6870, 1
    %v6872 = vadd.f32 %v6870, %v6871
    %v6873 = vmul.f32 %v6420, %v6420
    %v6874 = vmul.f32 %v6421, %v6421
    %v6875 = vmul.f32 %v6422, %v6422
    %v6876 = vmul.f32 %v6423, %v6423
    %v6877 = vmul.f32 %v6424, %v6424
    %v6878 = vmul.f32 %v6425, %v6425
    %v6879 = vmul.f32 %v6426, %v6426
    %v6880 = vmul.f32 %v6427, %v6427
    %v6881 = vmul.f32 %v6428, %v6428
    %v6882 = vmul.f32 %v6429, %v6429
    %v6883 = vmul.f32 %v6430, %v6430
    %v6884 = vmul.f32 %v6431, %v6431
    %v6885 = vmul.f32 %v6432, %v6432
    %v6886 = vmul.f32 %v6433, %v6433
    %v6887 = vmul.f32 %v6434, %v6434
    %v6888 = vmul.f32 %v6435, %v6435
    %v6889 = vmul.f32 %v6436, %v6436
    %v6890 = vmul.f32 %v6437, %v6437
    %v6891 = vmul.f32 %v6438, %v6438
    %v6892 = vmul.f32 %v6439, %v6439
    %v6893 = vmul.f32 %v6440, %v6440
    %v6894 = vmul.f32 %v6441, %v6441
    %v6895 = vmul.f32 %v6442, %v6442
    %v6896 = vmul.f32 %v6443, %v6443
    %v6897 = vmul.f32 %v6444, %v6444
    %v6898 = vmul.f32 %v6445, %v6445
    %v6899 = vmul.f32 %v6446, %v6446
    %v6900 = vmul.f32 %v6447, %v6447
    %v6901 = vmul.f32 %v6448, %v6448
    %v6902 = vmul.f32 %v6449, %v6449
    %v6903 = vmul.f32 %v6450, %v6450
    %v6904 = vmul.f32 %v6451, %v6451
    %v6905 = vmul.f32 %v6452, %v6452
    %v6906 = vmul.f32 %v6453, %v6453
    %v6907 = vmul.f32 %v6454, %v6454
    %v6908 = vmul.f32 %v6455, %v6455
    %v6909 = vmul.f32 %v6456, %v6456
    %v6910 = vmul.f32 %v6457, %v6457
    %v6911 = vmul.f32 %v6458, %v6458
    %v6912 = vmul.f32 %v6459, %v6459
    %v6913 = vmul.f32 %v6460, %v6460
    %v6914 = vmul.f32 %v6461, %v6461
    %v6915 = vmul.f32 %v6462, %v6462
    %v6916 = vmul.f32 %v6463, %v6463
    %v6917 = vmul.f32 %v6464, %v6464
    %v6918 = vmul.f32 %v6465, %v6465
    %v6919 = vmul.f32 %v6466, %v6466
    %v6920 = vmul.f32 %v6467, %v6467
    %v6921 = vmul.f32 %v6468, %v6468
    %v6922 = vmul.f32 %v6469, %v6469
    %v6923 = vmul.f32 %v6470, %v6470
    %v6924 = vmul.f32 %v6471, %v6471
    %v6925 = vmul.f32 %v6472, %v6472
    %v6926 = vmul.f32 %v6473, %v6473
    %v6927 = vmul.f32 %v6474, %v6474
    %v6928 = vmul.f32 %v6475, %v6475
    %v6929 = vmul.f32 %v6476, %v6476
    %v6930 = vmul.f32 %v6477, %v6477
    %v6931 = vmul.f32 %v6478, %v6478
    %v6932 = vmul.f32 %v6479, %v6479
    %v6933 = vmul.f32 %v6480, %v6480
    %v6934 = vmul.f32 %v6481, %v6481
    %v6935 = vmul.f32 %v6482, %v6482
    %v6936 = vmul.f32 %v6483, %v6483
    %v6937 = vadd.f32 %v6873, %v6874
    %v6938 = vadd.f32 %v6937, %v6875
    %v6939 = vadd.f32 %v6938, %v6876
    %v6940 = vadd.f32 %v6939, %v6877
    %v6941 = vadd.f32 %v6940, %v6878
    %v6942 = vadd.f32 %v6941, %v6879
    %v6943 = vadd.f32 %v6942, %v6880
    %v6944 = vadd.f32 %v6943, %v6881
    %v6945 = vadd.f32 %v6944, %v6882
    %v6946 = vadd.f32 %v6945, %v6883
    %v6947 = vadd.f32 %v6946, %v6884
    %v6948 = vadd.f32 %v6947, %v6885
    %v6949 = vadd.f32 %v6948, %v6886
    %v6950 = vadd.f32 %v6949, %v6887
    %v6951 = vadd.f32 %v6950, %v6888
    %v6952 = vadd.f32 %v6951, %v6889
    %v6953 = vadd.f32 %v6952, %v6890
    %v6954 = vadd.f32 %v6953, %v6891
    %v6955 = vadd.f32 %v6954, %v6892
    %v6956 = vadd.f32 %v6955, %v6893
    %v6957 = vadd.f32 %v6956, %v6894
    %v6958 = vadd.f32 %v6957, %v6895
    %v6959 = vadd.f32 %v6958, %v6896
    %v6960 = vadd.f32 %v6959, %v6897
    %v6961 = vadd.f32 %v6960, %v6898
    %v6962 = vadd.f32 %v6961, %v6899
    %v6963 = vadd.f32 %v6962, %v6900
    %v6964 = vadd.f32 %v6963, %v6901
    %v6965 = vadd.f32 %v6964, %v6902
    %v6966 = vadd.f32 %v6965, %v6903
    %v6967 = vadd.f32 %v6966, %v6904
    %v6968 = vadd.f32 %v6967, %v6905
    %v6969 = vadd.f32 %v6968, %v6906
    %v6970 = vadd.f32 %v6969, %v6907
    %v6971 = vadd.f32 %v6970, %v6908
    %v6972 = vadd.f32 %v6971, %v6909
    %v6973 = vadd.f32 %v6972, %v6910
    %v6974 = vadd.f32 %v6973, %v6911
    %v6975 = vadd.f32 %v6974, %v6912
    %v6976 = vadd.f32 %v6975, %v6913
    %v6977 = vadd.f32 %v6976, %v6914
    %v6978 = vadd.f32 %v6977, %v6915
    %v6979 = vadd.f32 %v6978, %v6916
    %v6980 = vadd.f32 %v6979, %v6917
    %v6981 = vadd.f32 %v6980, %v6918
    %v6982 = vadd.f32 %v6981, %v6919
    %v6983 = vadd.f32 %v6982, %v6920
    %v6984 = vadd.f32 %v6983, %v6921
    %v6985 = vadd.f32 %v6984, %v6922
    %v6986 = vadd.f32 %v6985, %v6923
    %v6987 = vadd.f32 %v6986, %v6924
    %v6988 = vadd.f32 %v6987, %v6925
    %v6989 = vadd.f32 %v6988, %v6926
    %v6990 = vadd.f32 %v6989, %v6927
    %v6991 = vadd.f32 %v6990, %v6928
    %v6992 = vadd.f32 %v6991, %v6929
    %v6993 = vadd.f32 %v6992, %v6930
    %v6994 = vadd.f32 %v6993, %v6931
    %v6995 = vadd.f32 %v6994, %v6932
    %v6996 = vadd.f32 %v6995, %v6933
    %v6997 = vadd.f32 %v6996, %v6934
    %v6998 = vadd.f32 %v6997, %v6935
    %v6999 = vadd.f32 %v6998, %v6936
    %v7000 = vrot.slane %v6999, 4
    %v7001 = vadd.f32 %v6999, %v7000
    %v7002 = vrot.slane %v7001, 2
    %v7003 = vadd.f32 %v7001, %v7002
    %v7004 = vrot.slane %v7003, 1
    %v7005 = vadd.f32 %v7003, %v7004
    %vm7006 = vcmask 1040384
    %v7007 = vsel %vm7006, %v6872, %v7005
    %7008 = vst [vmem:[#allocation9] sm:$0x3] %v7007
    // Predicated region
    $region18: #{tpu_custom_call.1} parent=1 // pred_check
      _
    $region19: #{tpu_custom_call.1} parent=1 // pred_check_branch
      %7010 = sbr.rel (0) target = $region21
    $region20: #{tpu_custom_call.1} parent=1 // pred_region
      %s7012 = ssub.s32 4096, 4096
      %7013 = vsyncadd [#allocation5], %s7012
      %s7014 = sshll.u32 [#allocation8], 4
      %s7015 = int_to_ptr.vmem [resolvable:$true] %s7014
      %7020 = dma.vmem_to_hbm [thread:$0]  %s7015, 4096, %s2, [#allocation5], 64, 64, 4
    $region21: #{tpu_custom_call.1} parent=1 // pred_fallthru
      _
    // Predicated region
    $region22: #{tpu_custom_call.1} parent=1 // pred_check
      _
    $region23: #{tpu_custom_call.1} parent=1 // pred_check_branch
      %7022 = sbr.rel (0) target = $region25
    $region24: #{tpu_custom_call.1} parent=1 // pred_region
      %s7024 = ssub.s32 32, 32
      %7025 = vsyncadd [#allocation10], %s7024
      %s7027 = sshll.u32 [#allocation9], 4
      %s7028 = int_to_ptr.vmem [resolvable:$true] %s7027
      %7030 = dma.vmem_to_hbm [thread:$0]  %s7028, 32, %s3, [#allocation10]
    $region25: #{tpu_custom_call.1} parent=1 // pred_fallthru
      _
    // Predicated region
    $region26: #{tpu_custom_call.1} parent=1 // pred_check
      _
    $region27: #{tpu_custom_call.1} parent=1 // pred_check_branch
      %7032 = sbr.rel (0) target = $region29
    $region28: #{tpu_custom_call.1} parent=1 // pred_region
      %7033 = dma.done [#allocation5], 4096
    $region29: #{tpu_custom_call.1} parent=1 // pred_fallthru
      _
    // Predicated region
    $region30: #{tpu_custom_call.1} parent=1 // pred_check
      _
    $region31: #{tpu_custom_call.1} parent=1 // pred_check_branch
      %7035 = sbr.rel (0) target = $region33
    $region32: #{tpu_custom_call.1} parent=1 // pred_region
      %7036 = dma.done [#allocation10], 32
    $region33: #{tpu_custom_call.1} parent=1 // pred_fallthru
      _
    %7037 = vsyncpa [#allocation4], 1
    %7038 = vsyncpa [#allocation7], 1
    %7039 = vsyncpa [#allocation5], 1
    %7040 = vsyncpa [#allocation10], 1

</llo_original>
